<compile_context>
chip_gen: v7x
topology: tpu7x:2x2x1
jax: 0.10.0
libtpu: 0.0.40
codegen_flags: <defaults>
</compile_context>

<pallas_src>
import jax
import jax.numpy as jnp
from jax import lax
from jax.experimental import pallas as pl
from jax.experimental.pallas import tpu as pltpu


# ----------------------------- Pallas kernel --------------------------------


def bottleneck_kernel(
    x_ref,            # (1, TH, W, Cin_p)   bf16  interior row strip
    xt_ref,           # (1, 1,  W, Cin_p)   bf16  row above the strip (clamped)
    xb_ref,           # (1, 1,  W, Cin_p)   bf16  row below the strip (clamped)
    w1_ref, b1_ref,   # (Cin_p, Cmid_p) bf16,        (1, Cmid_p) f32
    w2_ref, b2_ref,   # (3, 3, Cmid_p, Cmid_p) bf16, (1, Cmid_p) f32
    w3_ref, b3_ref,   # (Cmid_p, Cout_p) bf16,       (1, Cout_p) f32
    ws_ref, bs_ref,   # (Cin_p, Cout_p) bf16,        (1, Cout_p) f32
    o_ref,            # (1, TH, W, Cout_p)  f32
    pad_ref,          # scratch: (TH + 2, W + 2, Cmid_p) f32
):
    _, TH, W, Cin = x_ref.shape
    Cmid = w1_ref.shape[1]
    Cout = w3_ref.shape[1]
    i = pl.program_id(1)
    last = pl.num_programs(1) - 1
    f32 = jnp.float32
    bf16 = jnp.bfloat16

    x_int = x_ref[0]                              # (TH, W, Cin)
    x2d = x_int.reshape(TH * W, Cin)

    # --- shortcut: 1x1 projection conv (+ folded BN), staged into o_ref ----
    sc = jnp.dot(x2d, ws_ref[...], preferred_element_type=f32) + bs_ref[...]
    o_ref[...] = sc.reshape(1, TH, W, Cout)

    # --- conv1 (1x1) + BN + ReLU on the interior rows and the 2 halo rows --
    w1 = w1_ref[...]
    b1 = b1_ref[...]
    t1 = jnp.maximum(jnp.dot(x2d, w1, preferred_element_type=f32) + b1, 0.0)
    t1_top = jnp.maximum(
        jnp.dot(xt_ref[0].reshape(W, Cin), w1, preferred_element_type=f32) + b1,
        0.0)
    t1_bot = jnp.maximum(
        jnp.dot(xb_ref[0].reshape(W, Cin), w1, preferred_element_type=f32) + b1,
        0.0)

    # --- stage t1 into the zero-padded conv2 input buffer ------------------
    # Only the 1-pixel ring is zeroed; the interior is written directly.
    zcol = jnp.zeros((TH + 2, 1, Cmid), f32)
    pad_ref[:, 0:1, :] = zcol                     # left zero column
    pad_ref[:, W + 1:W + 2, :] = zcol             # right zero column
    pad_ref[1:TH + 1, 1:W + 1, :] = t1.reshape(TH, W, Cmid)
    pad_ref[0, 1:W + 1, :] = t1_top               # row above the strip
    pad_ref[TH + 1, 1:W + 1, :] = t1_bot          # row below the strip

    @pl.when(i == 0)                              # top edge of the image
    def _():
        pad_ref[0, 1:W + 1, :] = jnp.zeros((W, Cmid), f32)

    @pl.when(i == last)                           # bottom edge of the image
    def _():
        pad_ref[TH + 1, 1:W + 1, :] = jnp.zeros((W, Cmid), f32)

    # --- conv2 (3x3, SAME, stride 1) + BN + ReLU: 9 shifted matmuls --------
    # Each tap contracts over K = Cmid_p = 128 (MXU-native depth).
    acc = None
    for dh in range(3):
        for dw in range(3):
            patch = pad_ref[dh:dh + TH, dw:dw + W, :].reshape(TH * W, Cmid)
            d = jnp.dot(patch.astype(bf16), w2_ref[dh, dw],
                        preferred_element_type=f32)
            acc = d if acc is None else acc + d
    t2 = jnp.maximum(acc + b2_ref[...], 0.0).astype(bf16)

    # --- conv3 (1x1) + BN, residual add (from o_ref staging), final ReLU ---
    t3 = jnp.dot(t2, w3_ref[...], preferred_element_type=f32) + b3_ref[...]
    o_ref[...] = jnp.maximum(o_ref[...] + t3.reshape(1, TH, W, Cout), 0.0)


# ------------------------------ host wrapper ---------------------------------


def _cpad(c):
    return ((c + 127) // 128) * 128


def _pad_last(a, n):
    return jnp.pad(a, [(0, 0)] * (a.ndim - 1) + [(0, n - a.shape[-1])])


def _pad_last2(a, n0, n1):
    return jnp.pad(a, [(0, 0)] * (a.ndim - 2)
                   + [(0, n0 - a.shape[-2]), (0, n1 - a.shape[-1])])


def _fold_bn(conv_bias, bn, eps=1e-5):
    gamma, beta, mean, var = bn
    scale = gamma / jnp.sqrt(var + eps)
    return scale, beta + scale * (conv_bias - mean)


@jax.jit
def bottleneck_forward(x_nchw, raw_params):
    """x_nchw: (N, C_in, H, W) f32.  Returns (N, 4*C_mid, H, W) f32."""
    (w1o, b1c, bn1, w2o, b2c, bn2, w3o, b3c, bn3, wso, bsc, bns) = raw_params
    N, Cin, H, W = x_nchw.shape
    Cmid = w1o.shape[0]
    Cexp = w3o.shape[0]

    # fold eval-mode BN into conv weights / biases (host side, trace time).
    s1, b1 = _fold_bn(b1c, bn1)
    s2, b2 = _fold_bn(b2c, bn2)
    s3, b3 = _fold_bn(b3c, bn3)
    ss, bs = _fold_bn(bsc, bns)
    w1 = w1o[:, :, 0, 0].T * s1[None, :]                  # (Cin, Cmid)
    w2 = jnp.transpose(w2o, (2, 3, 1, 0)) * s2            # (3,3,Cmid,Cmid) HWIO
    w3 = w3o[:, :, 0, 0].T * s3[None, :]                  # (Cmid, Cexp)
    ws = wso[:, :, 0, 0].T * ss[None, :]                  # (Cin, Cexp)

    # pad channel axes to 128 lanes; bf16 matmul operands, f32 biases.
    Cin_p, Cmid_p, Cout_p = _cpad(Cin), _cpad(Cmid), _cpad(Cexp)
    bf16 = jnp.bfloat16
    x = jnp.transpose(x_nchw, (0, 2, 3, 1))               # NHWC
    x = _pad_last(x, Cin_p).astype(bf16)
    w1p = _pad_last2(w1, Cin_p, Cmid_p).astype(bf16)
    w2p = _pad_last2(w2, Cmid_p, Cmid_p).astype(bf16)
    w3p = _pad_last2(w3, Cmid_p, Cout_p).astype(bf16)
    wsp = _pad_last2(ws, Cin_p, Cout_p).astype(bf16)
    b1p = _pad_last(b1[None, :], Cmid_p)
    b2p = _pad_last(b2[None, :], Cmid_p)
    b3p = _pad_last(b3[None, :], Cout_p)
    bsp = _pad_last(bs[None, :], Cout_p)

    # grid: (batch, H row strips) — both axes independent -> "parallel".
    TH = 8 if H % 8 == 0 else H
    HB = H // TH

    const2 = lambda n, i: (0, 0)
    const4 = lambda n, i: (0, 0, 0, 0)
    in_specs = [
        # interior rows of the strip (pipelined activation stream)
        pl.BlockSpec((1, TH, W, Cin_p), lambda n, i: (n, i, 0, 0)),
        # one halo row above / below the strip, clamped at the image border
        # (the kernel zeroes them when the strip touches the border).
        pl.BlockSpec((1, 1, W, Cin_p),
                     lambda n, i: (n, jnp.maximum(i * TH - 1, 0), 0, 0)),
        pl.BlockSpec((1, 1, W, Cin_p),
                     lambda n, i: (n, jnp.minimum(i * TH + TH, H - 1), 0, 0)),
        # weights / biases: constant index_map -> fetched once, stay resident
        pl.BlockSpec((Cin_p, Cmid_p), const2),
        pl.BlockSpec((1, Cmid_p), const2),
        pl.BlockSpec((3, 3, Cmid_p, Cmid_p), const4),
        pl.BlockSpec((1, Cmid_p), const2),
        pl.BlockSpec((Cmid_p, Cout_p), const2),
        pl.BlockSpec((1, Cout_p), const2),
        pl.BlockSpec((Cin_p, Cout_p), const2),
        pl.BlockSpec((1, Cout_p), const2),
    ]
    out_spec = pl.BlockSpec((1, TH, W, Cout_p), lambda n, i: (n, i, 0, 0))

    out_p = pl.pallas_call(
        bottleneck_kernel,
        out_shape=jax.ShapeDtypeStruct((N, H, W, Cout_p), jnp.float32),
        grid=(N, HB),
        in_specs=in_specs,
        out_specs=out_spec,
        scratch_shapes=[pltpu.VMEM((TH + 2, W + 2, Cmid_p), jnp.float32)],
        compiler_params=pltpu.CompilerParams(
            dimension_semantics=("parallel", "parallel"),
            vmem_limit_bytes=32 * 1024 * 1024),
    )(x, x, x, w1p, b1p, w2p, b2p, w3p, b3p, wsp, bsp)

    out = out_p[..., :Cexp]                               # drop lane padding
    return jnp.transpose(out, (0, 3, 1, 2))               # back to NCHW


# -------------------------- deterministic params ------------------------------


def make_params(key, c_in, c_mid):
    """Synthetic Conv2d + BatchNorm2d (eval mode) parameters, PyTorch layout."""
    exp = 4
    c_exp = c_mid * exp
    keys = iter(jax.random.split(key, 24))

    def conv_w(cout, cin, kh, kw):
        return 0.1 * jax.random.normal(next(keys), (cout, cin, kh, kw),
                                       jnp.float32)

    def conv_b(c):
        return 0.1 * jax.random.normal(next(keys), (c,), jnp.float32)

    def bn_stats(c):
        gamma = 1.0 + 0.1 * jax.random.normal(next(keys), (c,), jnp.float32)
        beta = 0.1 * jax.random.normal(next(keys), (c,), jnp.float32)
        mean = 0.1 * jax.random.normal(next(keys), (c,), jnp.float32)
        var = jax.random.uniform(next(keys), (c,), jnp.float32, 0.5, 1.5)
        return (gamma, beta, mean, var)

    w1, b1, bn1 = conv_w(c_mid, c_in, 1, 1), conv_b(c_mid), bn_stats(c_mid)
    w2, b2, bn2 = conv_w(c_mid, c_mid, 3, 3), conv_b(c_mid), bn_stats(c_mid)
    w3, b3, bn3 = conv_w(c_exp, c_mid, 1, 1), conv_b(c_exp), bn_stats(c_exp)
    ws, bs, bns = conv_w(c_exp, c_in, 1, 1), conv_b(c_exp), bn_stats(c_exp)
    return (w1, b1, bn1, w2, b2, bn2, w3, b3, bn3, ws, bs, bns)


# ----------------------------- pure-JAX reference -----------------------------


def bottleneck_reference(x_nchw, raw_params, eps=1e-5):
    (w1, b1, bn1, w2, b2, bn2, w3, b3, bn3, ws, bs, bns) = raw_params
    x = jnp.transpose(x_nchw, (0, 2, 3, 1))               # NHWC
    dn = ('NHWC', 'HWIO', 'NHWC')

    def conv(t, w_oihw, b):
        w = jnp.transpose(w_oihw, (2, 3, 1, 0))           # OIHW -> HWIO
        return lax.conv_general_dilated(
            t, w, (1, 1), 'SAME', dimension_numbers=dn) + b

    def bn(t, p):
        gamma, beta, mean, var = p
        return (t - mean) * (gamma / jnp.sqrt(var + eps)) + beta

    t = jnp.maximum(bn(conv(x, w1, b1), bn1), 0.0)
    t = jnp.maximum(bn(conv(t, w2, b2), bn2), 0.0)
    t = bn(conv(t, w3, b3), bn3)
    s = bn(conv(x, ws, bs), bns)
    out = jnp.maximum(t + s, 0.0)
    return jnp.transpose(out, (0, 3, 1, 2))


# ---------------------------------- main --------------------------------------


if __name__ == "__main__":
    key = jax.random.PRNGKey(0)
    k_x, k_p = jax.random.split(key)

    # N=2, C_in=8, C_mid=4 (output channels = 4*C_mid = 16), 16x16 spatial.
    N, C_IN, C_MID, H, W = 2, 8, 4, 16, 16
    x = jax.random.normal(k_x, (N, C_IN, H, W), jnp.float32)
    raw = make_params(k_p, C_IN, C_MID)

    out = jax.block_until_ready(bottleneck_forward(x, raw))
    ref = jax.block_until_ready(bottleneck_reference(x, raw))

    assert out.shape == (N, 4 * C_MID, H, W), out.shape
    # bf16 matmul operands vs. f32 reference -> loosened tolerance.
    max_err = float(jnp.max(jnp.abs(out - ref)))
    assert jnp.allclose(out, ref, atol=5e-2, rtol=5e-2), max_err
    print("KERNEL_OK")
</pallas_src>

<mosaic_0001>
module attributes {stable_mosaic.version = 11 : i64} {
  func.func @bottleneck_kernel(%arg0: i32, %arg1: i32, %arg2: memref<1x8x16x128xbf16, #tpu.memory_space<vmem>>, %arg3: memref<1x1x16x128xbf16, #tpu.memory_space<vmem>>, %arg4: memref<1x1x16x128xbf16, #tpu.memory_space<vmem>>, %arg5: memref<128x128xbf16, #tpu.memory_space<vmem>>, %arg6: memref<1x128xf32, #tpu.memory_space<vmem>>, %arg7: memref<3x3x128x128xbf16, #tpu.memory_space<vmem>>, %arg8: memref<1x128xf32, #tpu.memory_space<vmem>>, %arg9: memref<128x128xbf16, #tpu.memory_space<vmem>>, %arg10: memref<1x128xf32, #tpu.memory_space<vmem>>, %arg11: memref<128x128xbf16, #tpu.memory_space<vmem>>, %arg12: memref<1x128xf32, #tpu.memory_space<vmem>>, %arg13: memref<1x8x16x128xf32, #tpu.memory_space<vmem>>, %arg14: memref<10x18x128xf32, #tpu.memory_space<vmem>>) attributes {dimension_semantics = [#tpu.dimension_semantics<parallel>, #tpu.dimension_semantics<parallel>], iteration_bounds = array<i64: 2, 2>, scalar_prefetch = 0 : i64, scratch_operands = 1 : i64, tpu.core_type = #tpu.core_type<tc>, window_params = [{transform_indices = @transform_0, window_bounds = array<i64: 1, 8, 16, 128>}, {transform_indices = @transform_1, window_bounds = array<i64: 1, 1, 16, 128>}, {transform_indices = @transform_2, window_bounds = array<i64: 1, 1, 16, 128>}, {pipeline_mode = #tpu.pipeline_mode<synchronous>, transform_indices = @transform_3, window_bounds = array<i64: 128, 128>}, {pipeline_mode = #tpu.pipeline_mode<synchronous>, transform_indices = @transform_4, window_bounds = array<i64: 1, 128>}, {pipeline_mode = #tpu.pipeline_mode<synchronous>, transform_indices = @transform_5, window_bounds = array<i64: 3, 3, 128, 128>}, {pipeline_mode = #tpu.pipeline_mode<synchronous>, transform_indices = @transform_6, window_bounds = array<i64: 1, 128>}, {pipeline_mode = #tpu.pipeline_mode<synchronous>, transform_indices = @transform_7, window_bounds = array<i64: 128, 128>}, {pipeline_mode = #tpu.pipeline_mode<synchronous>, transform_indices = @transform_8, window_bounds = array<i64: 1, 128>}, {pipeline_mode = #tpu.pipeline_mode<synchronous>, transform_indices = @transform_9, window_bounds = array<i64: 128, 128>}, {pipeline_mode = #tpu.pipeline_mode<synchronous>, transform_indices = @transform_10, window_bounds = array<i64: 1, 128>}, {transform_indices = @transform_11, window_bounds = array<i64: 1, 8, 16, 128>}]} {
    %c0 = arith.constant 0 : index
    %c0_0 = arith.constant 0 : index
    %c0_1 = arith.constant 0 : index
    %c0_2 = arith.constant 0 : index
    %0 = vector.load %arg2[%c0, %c0_0, %c0_1, %c0_2] : memref<1x8x16x128xbf16, #tpu.memory_space<vmem>>, vector<1x8x16x128xbf16>
    %1 = vector.shape_cast %0 : vector<1x8x16x128xbf16> to vector<8x16x128xbf16>
    %2 = vector.shape_cast %1 : vector<8x16x128xbf16> to vector<128x128xbf16>
    %c0_3 = arith.constant 0 : index
    %c0_4 = arith.constant 0 : index
    %3 = vector.load %arg11[%c0_3, %c0_4] : memref<128x128xbf16, #tpu.memory_space<vmem>>, vector<128x128xbf16>
    %cst = arith.constant dense<0.000000e+00> : vector<128x128xf32>
    %4 = tpu.matmul %2, %3, %cst {dimension_numbers = #tpu.dot_dimension_numbers<[1], [0], [0], [1], [0, 0, 1, 1], [], []>} : vector<128x128xbf16>, vector<128x128xbf16>, vector<128x128xf32> -> vector<128x128xf32>
    %c0_5 = arith.constant 0 : index
    %c0_6 = arith.constant 0 : index
    %5 = vector.load %arg12[%c0_5, %c0_6] : memref<1x128xf32, #tpu.memory_space<vmem>>, vector<1x128xf32>
    %6 = vector.broadcast %5 : vector<1x128xf32> to vector<128x128xf32>
    %7 = arith.addf %4, %6 : vector<128x128xf32>
    %8 = vector.shape_cast %7 : vector<128x128xf32> to vector<1x8x16x128xf32>
    %c0_7 = arith.constant 0 : index
    %c0_8 = arith.constant 0 : index
    %c0_9 = arith.constant 0 : index
    %c0_10 = arith.constant 0 : index
    %9 = vector.load %arg13[%c0_7, %c0_8, %c0_9, %c0_10] : memref<1x8x16x128xf32, #tpu.memory_space<vmem>>, vector<1x8x16x128xf32>
    tpu.vector_store %arg13[%c0_7, %c0_8, %c0_9, %c0_10], %8 {strides = array<i32>} : memref<1x8x16x128xf32, #tpu.memory_space<vmem>>, vector<1x8x16x128xf32>,
    %c0_11 = arith.constant 0 : index
    %c0_12 = arith.constant 0 : index
    %10 = vector.load %arg5[%c0_11, %c0_12] : memref<128x128xbf16, #tpu.memory_space<vmem>>, vector<128x128xbf16>
    %c0_13 = arith.constant 0 : index
    %c0_14 = arith.constant 0 : index
    %11 = vector.load %arg6[%c0_13, %c0_14] : memref<1x128xf32, #tpu.memory_space<vmem>>, vector<1x128xf32>
    %cst_15 = arith.constant dense<0.000000e+00> : vector<128x128xf32>
    %12 = tpu.matmul %2, %10, %cst_15 {dimension_numbers = #tpu.dot_dimension_numbers<[1], [0], [0], [1], [0, 0, 1, 1], [], []>} : vector<128x128xbf16>, vector<128x128xbf16>, vector<128x128xf32> -> vector<128x128xf32>
    %13 = vector.broadcast %11 : vector<1x128xf32> to vector<128x128xf32>
    %14 = arith.addf %12, %13 : vector<128x128xf32>
    %cst_16 = arith.constant 0.000000e+00 : f32
    %15 = vector.broadcast %cst_16 : f32 to vector<128x128xf32>
    %16 = arith.maximumf %14, %15 : vector<128x128xf32>
    %c0_17 = arith.constant 0 : index
    %c0_18 = arith.constant 0 : index
    %c0_19 = arith.constant 0 : index
    %c0_20 = arith.constant 0 : index
    %17 = vector.load %arg3[%c0_17, %c0_18, %c0_19, %c0_20] : memref<1x1x16x128xbf16, #tpu.memory_space<vmem>>, vector<1x1x16x128xbf16>
    %18 = vector.shape_cast %17 : vector<1x1x16x128xbf16> to vector<1x16x128xbf16>
    %19 = vector.shape_cast %18 : vector<1x16x128xbf16> to vector<16x128xbf16>
    %cst_21 = arith.constant dense<0.000000e+00> : vector<16x128xf32>
    %20 = tpu.matmul %19, %10, %cst_21 {dimension_numbers = #tpu.dot_dimension_numbers<[1], [0], [0], [1], [0, 0, 1, 1], [], []>} : vector<16x128xbf16>, vector<128x128xbf16>, vector<16x128xf32> -> vector<16x128xf32>
    %21 = vector.broadcast %11 : vector<1x128xf32> to vector<16x128xf32>
    %22 = arith.addf %20, %21 : vector<16x128xf32>
    %cst_22 = arith.constant 0.000000e+00 : f32
    %23 = vector.broadcast %cst_22 : f32 to vector<16x128xf32>
    %24 = arith.maximumf %22, %23 : vector<16x128xf32>
    %c0_23 = arith.constant 0 : index
    %c0_24 = arith.constant 0 : index
    %c0_25 = arith.constant 0 : index
    %c0_26 = arith.constant 0 : index
    %25 = vector.load %arg4[%c0_23, %c0_24, %c0_25, %c0_26] : memref<1x1x16x128xbf16, #tpu.memory_space<vmem>>, vector<1x1x16x128xbf16>
    %26 = vector.shape_cast %25 : vector<1x1x16x128xbf16> to vector<1x16x128xbf16>
    %27 = vector.shape_cast %26 : vector<1x16x128xbf16> to vector<16x128xbf16>
    %cst_27 = arith.constant dense<0.000000e+00> : vector<16x128xf32>
    %28 = tpu.matmul %27, %10, %cst_27 {dimension_numbers = #tpu.dot_dimension_numbers<[1], [0], [0], [1], [0, 0, 1, 1], [], []>} : vector<16x128xbf16>, vector<128x128xbf16>, vector<16x128xf32> -> vector<16x128xf32>
    %29 = vector.broadcast %11 : vector<1x128xf32> to vector<16x128xf32>
    %30 = arith.addf %28, %29 : vector<16x128xf32>
    %cst_28 = arith.constant 0.000000e+00 : f32
    %31 = vector.broadcast %cst_28 : f32 to vector<16x128xf32>
    %32 = arith.maximumf %30, %31 : vector<16x128xf32>
    %cst_29 = arith.constant 0.000000e+00 : f32
    %33 = vector.broadcast %cst_29 : f32 to vector<10x1x128xf32>
    %c0_30 = arith.constant 0 : index
    %c0_31 = arith.constant 0 : index
    %c0_32 = arith.constant 0 : index
    %34 = vector.load %arg14[%c0_30, %c0_31, %c0_32] : memref<10x18x128xf32, #tpu.memory_space<vmem>>, vector<10x1x128xf32>
    tpu.vector_store %arg14[%c0_30, %c0_31, %c0_32], %33 {strides = array<i32>} : memref<10x18x128xf32, #tpu.memory_space<vmem>>, vector<10x1x128xf32>,
    %c0_33 = arith.constant 0 : index
    %c17 = arith.constant 17 : index
    %c0_34 = arith.constant 0 : index
    %35 = vector.load %arg14[%c0_33, %c17, %c0_34] : memref<10x18x128xf32, #tpu.memory_space<vmem>>, vector<10x1x128xf32>
    tpu.vector_store %arg14[%c0_33, %c17, %c0_34], %33 {strides = array<i32>} : memref<10x18x128xf32, #tpu.memory_space<vmem>>, vector<10x1x128xf32>,
    %36 = vector.shape_cast %16 : vector<128x128xf32> to vector<8x16x128xf32>
    %c1 = arith.constant 1 : index
    %c1_35 = arith.constant 1 : index
    %c0_36 = arith.constant 0 : index
    %37 = vector.load %arg14[%c1, %c1_35, %c0_36] : memref<10x18x128xf32, #tpu.memory_space<vmem>>, vector<8x16x128xf32>
    tpu.vector_store %arg14[%c1, %c1_35, %c0_36], %36 {strides = array<i32>} : memref<10x18x128xf32, #tpu.memory_space<vmem>>, vector<8x16x128xf32>,
    %c0_37 = arith.constant 0 : index
    %c1_38 = arith.constant 1 : index
    %c0_39 = arith.constant 0 : index
    %38 = vector.load %arg14[%c0_37, %c1_38, %c0_39] : memref<10x18x128xf32, #tpu.memory_space<vmem>>, vector<1x16x128xf32>
    %39 = vector.shape_cast %38 : vector<1x16x128xf32> to vector<16x128xf32>
    %40 = vector.shape_cast %24 : vector<16x128xf32> to vector<1x16x128xf32>
    tpu.vector_store %arg14[%c0_37, %c1_38, %c0_39], %40 {strides = array<i32>} : memref<10x18x128xf32, #tpu.memory_space<vmem>>, vector<1x16x128xf32>,
    %c9 = arith.constant 9 : index
    %c1_40 = arith.constant 1 : index
    %c0_41 = arith.constant 0 : index
    %41 = vector.load %arg14[%c9, %c1_40, %c0_41] : memref<10x18x128xf32, #tpu.memory_space<vmem>>, vector<1x16x128xf32>
    %42 = vector.shape_cast %41 : vector<1x16x128xf32> to vector<16x128xf32>
    %43 = vector.shape_cast %32 : vector<16x128xf32> to vector<1x16x128xf32>
    tpu.vector_store %arg14[%c9, %c1_40, %c0_41], %43 {strides = array<i32>} : memref<10x18x128xf32, #tpu.memory_space<vmem>>, vector<1x16x128xf32>,
    %c0_i32 = arith.constant 0 : i32
    %44 = arith.cmpi eq, %arg1, %c0_i32 : i32
    %45 = arith.extui %44 : i1 to i32
    %c0_i32_42 = arith.constant 0 : i32
    %46 = arith.cmpi ne, %45, %c0_i32_42 : i32
    scf.if %46 {
      %cst_132 = arith.constant 0.000000e+00 : f32
      %129 = vector.broadcast %cst_132 : f32 to vector<16x128xf32>
      %c0_133 = arith.constant 0 : index
      %c1_134 = arith.constant 1 : index
      %c0_135 = arith.constant 0 : index
      %130 = vector.load %arg14[%c0_133, %c1_134, %c0_135] : memref<10x18x128xf32, #tpu.memory_space<vmem>>, vector<1x16x128xf32>
      %131 = vector.shape_cast %130 : vector<1x16x128xf32> to vector<16x128xf32>
      %132 = vector.shape_cast %129 : vector<16x128xf32> to vector<1x16x128xf32>
      tpu.vector_store %arg14[%c0_133, %c1_134, %c0_135], %132 {strides = array<i32>} : memref<10x18x128xf32, #tpu.memory_space<vmem>>, vector<1x16x128xf32>,
    } else {
    }
    %c1_i32 = arith.constant 1 : i32
    %47 = arith.cmpi eq, %arg1, %c1_i32 : i32
    %48 = arith.extui %47 : i1 to i32
    %c0_i32_43 = arith.constant 0 : i32
    %49 = arith.cmpi ne, %48, %c0_i32_43 : i32
    scf.if %49 {
      %cst_132 = arith.constant 0.000000e+00 : f32
      %129 = vector.broadcast %cst_132 : f32 to vector<16x128xf32>
      %c9_133 = arith.constant 9 : index
      %c1_134 = arith.constant 1 : index
      %c0_135 = arith.constant 0 : index
      %130 = vector.load %arg14[%c9_133, %c1_134, %c0_135] : memref<10x18x128xf32, #tpu.memory_space<vmem>>, vector<1x16x128xf32>
      %131 = vector.shape_cast %130 : vector<1x16x128xf32> to vector<16x128xf32>
      %132 = vector.shape_cast %129 : vector<16x128xf32> to vector<1x16x128xf32>
      tpu.vector_store %arg14[%c9_133, %c1_134, %c0_135], %132 {strides = array<i32>} : memref<10x18x128xf32, #tpu.memory_space<vmem>>, vector<1x16x128xf32>,
    } else {
    }
    %c0_44 = arith.constant 0 : index
    %c0_45 = arith.constant 0 : index
    %c0_46 = arith.constant 0 : index
    %50 = vector.load %arg14[%c0_44, %c0_45, %c0_46] : memref<10x18x128xf32, #tpu.memory_space<vmem>>, vector<8x16x128xf32>
    %51 = vector.shape_cast %50 : vector<8x16x128xf32> to vector<128x128xf32>
    %52 = arith.truncf %51 : vector<128x128xf32> to vector<128x128xbf16>
    %c0_47 = arith.constant 0 : index
    %c0_48 = arith.constant 0 : index
    %c0_49 = arith.constant 0 : index
    %c0_50 = arith.constant 0 : index
    %53 = vector.load %arg7[%c0_47, %c0_48, %c0_49, %c0_50] : memref<3x3x128x128xbf16, #tpu.memory_space<vmem>>, vector<1x1x128x128xbf16>
    %54 = vector.shape_cast %53 : vector<1x1x128x128xbf16> to vector<128x128xbf16>
    %cst_51 = arith.constant dense<0.000000e+00> : vector<128x128xf32>
    %55 = tpu.matmul %52, %54, %cst_51 {dimension_numbers = #tpu.dot_dimension_numbers<[1], [0], [0], [1], [0, 0, 1, 1], [], []>} : vector<128x128xbf16>, vector<128x128xbf16>, vector<128x128xf32> -> vector<128x128xf32>
    %c0_52 = arith.constant 0 : index
    %c1_53 = arith.constant 1 : index
    %c0_54 = arith.constant 0 : index
    %56 = vector.load %arg14[%c0_52, %c1_53, %c0_54] : memref<10x18x128xf32, #tpu.memory_space<vmem>>, vector<8x16x128xf32>
    %57 = vector.shape_cast %56 : vector<8x16x128xf32> to vector<128x128xf32>
    %58 = arith.truncf %57 : vector<128x128xf32> to vector<128x128xbf16>
    %c0_55 = arith.constant 0 : index
    %c1_56 = arith.constant 1 : index
    %c0_57 = arith.constant 0 : index
    %c0_58 = arith.constant 0 : index
    %59 = vector.load %arg7[%c0_55, %c1_56, %c0_57, %c0_58] : memref<3x3x128x128xbf16, #tpu.memory_space<vmem>>, vector<1x1x128x128xbf16>
    %60 = vector.shape_cast %59 : vector<1x1x128x128xbf16> to vector<128x128xbf16>
    %cst_59 = arith.constant dense<0.000000e+00> : vector<128x128xf32>
    %61 = tpu.matmul %58, %60, %cst_59 {dimension_numbers = #tpu.dot_dimension_numbers<[1], [0], [0], [1], [0, 0, 1, 1], [], []>} : vector<128x128xbf16>, vector<128x128xbf16>, vector<128x128xf32> -> vector<128x128xf32>
    %62 = arith.addf %55, %61 : vector<128x128xf32>
    %c0_60 = arith.constant 0 : index
    %c2 = arith.constant 2 : index
    %c0_61 = arith.constant 0 : index
    %63 = vector.load %arg14[%c0_60, %c2, %c0_61] : memref<10x18x128xf32, #tpu.memory_space<vmem>>, vector<8x16x128xf32>
    %64 = vector.shape_cast %63 : vector<8x16x128xf32> to vector<128x128xf32>
    %65 = arith.truncf %64 : vector<128x128xf32> to vector<128x128xbf16>
    %c0_62 = arith.constant 0 : index
    %c2_63 = arith.constant 2 : index
    %c0_64 = arith.constant 0 : index
    %c0_65 = arith.constant 0 : index
    %66 = vector.load %arg7[%c0_62, %c2_63, %c0_64, %c0_65] : memref<3x3x128x128xbf16, #tpu.memory_space<vmem>>, vector<1x1x128x128xbf16>
    %67 = vector.shape_cast %66 : vector<1x1x128x128xbf16> to vector<128x128xbf16>
    %cst_66 = arith.constant dense<0.000000e+00> : vector<128x128xf32>
    %68 = tpu.matmul %65, %67, %cst_66 {dimension_numbers = #tpu.dot_dimension_numbers<[1], [0], [0], [1], [0, 0, 1, 1], [], []>} : vector<128x128xbf16>, vector<128x128xbf16>, vector<128x128xf32> -> vector<128x128xf32>
    %69 = arith.addf %62, %68 : vector<128x128xf32>
    %c1_67 = arith.constant 1 : index
    %c0_68 = arith.constant 0 : index
    %c0_69 = arith.constant 0 : index
    %70 = vector.load %arg14[%c1_67, %c0_68, %c0_69] : memref<10x18x128xf32, #tpu.memory_space<vmem>>, vector<8x16x128xf32>
    %71 = vector.shape_cast %70 : vector<8x16x128xf32> to vector<128x128xf32>
    %72 = arith.truncf %71 : vector<128x128xf32> to vector<128x128xbf16>
    %c1_70 = arith.constant 1 : index
    %c0_71 = arith.constant 0 : index
    %c0_72 = arith.constant 0 : index
    %c0_73 = arith.constant 0 : index
    %73 = vector.load %arg7[%c1_70, %c0_71, %c0_72, %c0_73] : memref<3x3x128x128xbf16, #tpu.memory_space<vmem>>, vector<1x1x128x128xbf16>
    %74 = vector.shape_cast %73 : vector<1x1x128x128xbf16> to vector<128x128xbf16>
    %cst_74 = arith.constant dense<0.000000e+00> : vector<128x128xf32>
    %75 = tpu.matmul %72, %74, %cst_74 {dimension_numbers = #tpu.dot_dimension_numbers<[1], [0], [0], [1], [0, 0, 1, 1], [], []>} : vector<128x128xbf16>, vector<128x128xbf16>, vector<128x128xf32> -> vector<128x128xf32>
    %76 = arith.addf %69, %75 : vector<128x128xf32>
    %c1_75 = arith.constant 1 : index
    %c1_76 = arith.constant 1 : index
    %c0_77 = arith.constant 0 : index
    %77 = vector.load %arg14[%c1_75, %c1_76, %c0_77] : memref<10x18x128xf32, #tpu.memory_space<vmem>>, vector<8x16x128xf32>
    %78 = vector.shape_cast %77 : vector<8x16x128xf32> to vector<128x128xf32>
    %79 = arith.truncf %78 : vector<128x128xf32> to vector<128x128xbf16>
    %c1_78 = arith.constant 1 : index
    %c1_79 = arith.constant 1 : index
    %c0_80 = arith.constant 0 : index
    %c0_81 = arith.constant 0 : index
    %80 = vector.load %arg7[%c1_78, %c1_79, %c0_80, %c0_81] : memref<3x3x128x128xbf16, #tpu.memory_space<vmem>>, vector<1x1x128x128xbf16>
    %81 = vector.shape_cast %80 : vector<1x1x128x128xbf16> to vector<128x128xbf16>
    %cst_82 = arith.constant dense<0.000000e+00> : vector<128x128xf32>
    %82 = tpu.matmul %79, %81, %cst_82 {dimension_numbers = #tpu.dot_dimension_numbers<[1], [0], [0], [1], [0, 0, 1, 1], [], []>} : vector<128x128xbf16>, vector<128x128xbf16>, vector<128x128xf32> -> vector<128x128xf32>
    %83 = arith.addf %76, %82 : vector<128x128xf32>
    %c1_83 = arith.constant 1 : index
    %c2_84 = arith.constant 2 : index
    %c0_85 = arith.constant 0 : index
    %84 = vector.load %arg14[%c1_83, %c2_84, %c0_85] : memref<10x18x128xf32, #tpu.memory_space<vmem>>, vector<8x16x128xf32>
    %85 = vector.shape_cast %84 : vector<8x16x128xf32> to vector<128x128xf32>
    %86 = arith.truncf %85 : vector<128x128xf32> to vector<128x128xbf16>
    %c1_86 = arith.constant 1 : index
    %c2_87 = arith.constant 2 : index
    %c0_88 = arith.constant 0 : index
    %c0_89 = arith.constant 0 : index
    %87 = vector.load %arg7[%c1_86, %c2_87, %c0_88, %c0_89] : memref<3x3x128x128xbf16, #tpu.memory_space<vmem>>, vector<1x1x128x128xbf16>
    %88 = vector.shape_cast %87 : vector<1x1x128x128xbf16> to vector<128x128xbf16>
    %cst_90 = arith.constant dense<0.000000e+00> : vector<128x128xf32>
    %89 = tpu.matmul %86, %88, %cst_90 {dimension_numbers = #tpu.dot_dimension_numbers<[1], [0], [0], [1], [0, 0, 1, 1], [], []>} : vector<128x128xbf16>, vector<128x128xbf16>, vector<128x128xf32> -> vector<128x128xf32>
    %90 = arith.addf %83, %89 : vector<128x128xf32>
    %c2_91 = arith.constant 2 : index
    %c0_92 = arith.constant 0 : index
    %c0_93 = arith.constant 0 : index
    %91 = vector.load %arg14[%c2_91, %c0_92, %c0_93] : memref<10x18x128xf32, #tpu.memory_space<vmem>>, vector<8x16x128xf32>
    %92 = vector.shape_cast %91 : vector<8x16x128xf32> to vector<128x128xf32>
    %93 = arith.truncf %92 : vector<128x128xf32> to vector<128x128xbf16>
    %c2_94 = arith.constant 2 : index
    %c0_95 = arith.constant 0 : index
    %c0_96 = arith.constant 0 : index
    %c0_97 = arith.constant 0 : index
    %94 = vector.load %arg7[%c2_94, %c0_95, %c0_96, %c0_97] : memref<3x3x128x128xbf16, #tpu.memory_space<vmem>>, vector<1x1x128x128xbf16>
    %95 = vector.shape_cast %94 : vector<1x1x128x128xbf16> to vector<128x128xbf16>
    %cst_98 = arith.constant dense<0.000000e+00> : vector<128x128xf32>
    %96 = tpu.matmul %93, %95, %cst_98 {dimension_numbers = #tpu.dot_dimension_numbers<[1], [0], [0], [1], [0, 0, 1, 1], [], []>} : vector<128x128xbf16>, vector<128x128xbf16>, vector<128x128xf32> -> vector<128x128xf32>
    %97 = arith.addf %90, %96 : vector<128x128xf32>
    %c2_99 = arith.constant 2 : index
    %c1_100 = arith.constant 1 : index
    %c0_101 = arith.constant 0 : index
    %98 = vector.load %arg14[%c2_99, %c1_100, %c0_101] : memref<10x18x128xf32, #tpu.memory_space<vmem>>, vector<8x16x128xf32>
    %99 = vector.shape_cast %98 : vector<8x16x128xf32> to vector<128x128xf32>
    %100 = arith.truncf %99 : vector<128x128xf32> to vector<128x128xbf16>
    %c2_102 = arith.constant 2 : index
    %c1_103 = arith.constant 1 : index
    %c0_104 = arith.constant 0 : index
    %c0_105 = arith.constant 0 : index
    %101 = vector.load %arg7[%c2_102, %c1_103, %c0_104, %c0_105] : memref<3x3x128x128xbf16, #tpu.memory_space<vmem>>, vector<1x1x128x128xbf16>
    %102 = vector.shape_cast %101 : vector<1x1x128x128xbf16> to vector<128x128xbf16>
    %cst_106 = arith.constant dense<0.000000e+00> : vector<128x128xf32>
    %103 = tpu.matmul %100, %102, %cst_106 {dimension_numbers = #tpu.dot_dimension_numbers<[1], [0], [0], [1], [0, 0, 1, 1], [], []>} : vector<128x128xbf16>, vector<128x128xbf16>, vector<128x128xf32> -> vector<128x128xf32>
    %104 = arith.addf %97, %103 : vector<128x128xf32>
    %c2_107 = arith.constant 2 : index
    %c2_108 = arith.constant 2 : index
    %c0_109 = arith.constant 0 : index
    %105 = vector.load %arg14[%c2_107, %c2_108, %c0_109] : memref<10x18x128xf32, #tpu.memory_space<vmem>>, vector<8x16x128xf32>
    %106 = vector.shape_cast %105 : vector<8x16x128xf32> to vector<128x128xf32>
    %107 = arith.truncf %106 : vector<128x128xf32> to vector<128x128xbf16>
    %c2_110 = arith.constant 2 : index
    %c2_111 = arith.constant 2 : index
    %c0_112 = arith.constant 0 : index
    %c0_113 = arith.constant 0 : index
    %108 = vector.load %arg7[%c2_110, %c2_111, %c0_112, %c0_113] : memref<3x3x128x128xbf16, #tpu.memory_space<vmem>>, vector<1x1x128x128xbf16>
    %109 = vector.shape_cast %108 : vector<1x1x128x128xbf16> to vector<128x128xbf16>
    %cst_114 = arith.constant dense<0.000000e+00> : vector<128x128xf32>
    %110 = tpu.matmul %107, %109, %cst_114 {dimension_numbers = #tpu.dot_dimension_numbers<[1], [0], [0], [1], [0, 0, 1, 1], [], []>} : vector<128x128xbf16>, vector<128x128xbf16>, vector<128x128xf32> -> vector<128x128xf32>
    %111 = arith.addf %104, %110 : vector<128x128xf32>
    %c0_115 = arith.constant 0 : index
    %c0_116 = arith.constant 0 : index
    %112 = vector.load %arg8[%c0_115, %c0_116] : memref<1x128xf32, #tpu.memory_space<vmem>>, vector<1x128xf32>
    %113 = vector.broadcast %112 : vector<1x128xf32> to vector<128x128xf32>
    %114 = arith.addf %111, %113 : vector<128x128xf32>
    %cst_117 = arith.constant 0.000000e+00 : f32
    %115 = vector.broadcast %cst_117 : f32 to vector<128x128xf32>
    %116 = arith.maximumf %114, %115 : vector<128x128xf32>
    %117 = arith.truncf %116 : vector<128x128xf32> to vector<128x128xbf16>
    %c0_118 = arith.constant 0 : index
    %c0_119 = arith.constant 0 : index
    %118 = vector.load %arg9[%c0_118, %c0_119] : memref<128x128xbf16, #tpu.memory_space<vmem>>, vector<128x128xbf16>
    %cst_120 = arith.constant dense<0.000000e+00> : vector<128x128xf32>
    %119 = tpu.matmul %117, %118, %cst_120 {dimension_numbers = #tpu.dot_dimension_numbers<[1], [0], [0], [1], [0, 0, 1, 1], [], []>} : vector<128x128xbf16>, vector<128x128xbf16>, vector<128x128xf32> -> vector<128x128xf32>
    %c0_121 = arith.constant 0 : index
    %c0_122 = arith.constant 0 : index
    %120 = vector.load %arg10[%c0_121, %c0_122] : memref<1x128xf32, #tpu.memory_space<vmem>>, vector<1x128xf32>
    %121 = vector.broadcast %120 : vector<1x128xf32> to vector<128x128xf32>
    %122 = arith.addf %119, %121 : vector<128x128xf32>
    %c0_123 = arith.constant 0 : index
    %c0_124 = arith.constant 0 : index
    %c0_125 = arith.constant 0 : index
    %c0_126 = arith.constant 0 : index
    %123 = vector.load %arg13[%c0_123, %c0_124, %c0_125, %c0_126] : memref<1x8x16x128xf32, #tpu.memory_space<vmem>>, vector<1x8x16x128xf32>
    %124 = vector.shape_cast %122 : vector<128x128xf32> to vector<1x8x16x128xf32>
    %125 = arith.addf %123, %124 : vector<1x8x16x128xf32>
    %cst_127 = arith.constant 0.000000e+00 : f32
    %126 = vector.broadcast %cst_127 : f32 to vector<1x8x16x128xf32>
    %127 = arith.maximumf %125, %126 : vector<1x8x16x128xf32>
    %c0_128 = arith.constant 0 : index
    %c0_129 = arith.constant 0 : index
    %c0_130 = arith.constant 0 : index
    %c0_131 = arith.constant 0 : index
    %128 = vector.load %arg13[%c0_128, %c0_129, %c0_130, %c0_131] : memref<1x8x16x128xf32, #tpu.memory_space<vmem>>, vector<1x8x16x128xf32>
    tpu.vector_store %arg13[%c0_128, %c0_129, %c0_130, %c0_131], %127 {strides = array<i32>} : memref<1x8x16x128xf32, #tpu.memory_space<vmem>>, vector<1x8x16x128xf32>,
    return
  }
  func.func @transform_0(%arg0: i32, %arg1: i32) -> (i32, i32, i32, i32) {
    %c0_i32 = arith.constant 0 : i32
    %c0_i32_0 = arith.constant 0 : i32
    %c0_i32_1 = arith.constant 0 : i32
    return %arg0, %arg1, %c0_i32, %c0_i32_0 : i32, i32, i32, i32
  }
  func.func @transform_1(%arg0: i32, %arg1: i32) -> (i32, i32, i32, i32) {
    %c8_i32 = arith.constant 8 : i32
    %0 = arith.muli %arg1, %c8_i32 : i32
    %c1_i32 = arith.constant 1 : i32
    %1 = arith.subi %0, %c1_i32 : i32
    %c0_i32 = arith.constant 0 : i32
    %2 = arith.maxsi %1, %c0_i32 : i32
    %c0_i32_0 = arith.constant 0 : i32
    %c0_i32_1 = arith.constant 0 : i32
    %c0_i32_2 = arith.constant 0 : i32
    return %arg0, %2, %c0_i32_0, %c0_i32_1 : i32, i32, i32, i32
  }
  func.func @transform_2(%arg0: i32, %arg1: i32) -> (i32, i32, i32, i32) {
    %c8_i32 = arith.constant 8 : i32
    %0 = arith.muli %arg1, %c8_i32 : i32
    %c8_i32_0 = arith.constant 8 : i32
    %1 = arith.addi %0, %c8_i32_0 : i32
    %c15_i32 = arith.constant 15 : i32
    %2 = arith.minsi %1, %c15_i32 : i32
    %c0_i32 = arith.constant 0 : i32
    %c0_i32_1 = arith.constant 0 : i32
    %c0_i32_2 = arith.constant 0 : i32
    return %arg0, %2, %c0_i32, %c0_i32_1 : i32, i32, i32, i32
  }
  func.func @transform_3(%arg0: i32, %arg1: i32) -> (i32, i32) {
    %c0_i32 = arith.constant 0 : i32
    %c0_i32_0 = arith.constant 0 : i32
    %c0_i32_1 = arith.constant 0 : i32
    return %c0_i32, %c0_i32_0 : i32, i32
  }
  func.func @transform_4(%arg0: i32, %arg1: i32) -> (i32, i32) {
    %c0_i32 = arith.constant 0 : i32
    %c0_i32_0 = arith.constant 0 : i32
    %c0_i32_1 = arith.constant 0 : i32
    return %c0_i32, %c0_i32_0 : i32, i32
  }
  func.func @transform_5(%arg0: i32, %arg1: i32) -> (i32, i32, i32, i32) {
    %c0_i32 = arith.constant 0 : i32
    %c0_i32_0 = arith.constant 0 : i32
    %c0_i32_1 = arith.constant 0 : i32
    %c0_i32_2 = arith.constant 0 : i32
    %c0_i32_3 = arith.constant 0 : i32
    return %c0_i32, %c0_i32_0, %c0_i32_1, %c0_i32_2 : i32, i32, i32, i32
  }
  func.func @transform_6(%arg0: i32, %arg1: i32) -> (i32, i32) {
    %c0_i32 = arith.constant 0 : i32
    %c0_i32_0 = arith.constant 0 : i32
    %c0_i32_1 = arith.constant 0 : i32
    return %c0_i32, %c0_i32_0 : i32, i32
  }
  func.func @transform_7(%arg0: i32, %arg1: i32) -> (i32, i32) {
    %c0_i32 = arith.constant 0 : i32
    %c0_i32_0 = arith.constant 0 : i32
    %c0_i32_1 = arith.constant 0 : i32
    return %c0_i32, %c0_i32_0 : i32, i32
  }
  func.func @transform_8(%arg0: i32, %arg1: i32) -> (i32, i32) {
    %c0_i32 = arith.constant 0 : i32
    %c0_i32_0 = arith.constant 0 : i32
    %c0_i32_1 = arith.constant 0 : i32
    return %c0_i32, %c0_i32_0 : i32, i32
  }
  func.func @transform_9(%arg0: i32, %arg1: i32) -> (i32, i32) {
    %c0_i32 = arith.constant 0 : i32
    %c0_i32_0 = arith.constant 0 : i32
    %c0_i32_1 = arith.constant 0 : i32
    return %c0_i32, %c0_i32_0 : i32, i32
  }
  func.func @transform_10(%arg0: i32, %arg1: i32) -> (i32, i32) {
    %c0_i32 = arith.constant 0 : i32
    %c0_i32_0 = arith.constant 0 : i32
    %c0_i32_1 = arith.constant 0 : i32
    return %c0_i32, %c0_i32_0 : i32, i32
  }
  func.func @transform_11(%arg0: i32, %arg1: i32) -> (i32, i32, i32, i32) {
    %c0_i32 = arith.constant 0 : i32
    %c0_i32_0 = arith.constant 0 : i32
    %c0_i32_1 = arith.constant 0 : i32
    return %arg0, %arg1, %c0_i32, %c0_i32_0 : i32, i32, i32, i32
  }
}

</mosaic_0001>

<llo_original>
// kernel: bottleneck_forward.1
$region0: #{bottleneck_forward.1}
  #allocation0 [shape = 'u32[]', space=smem, size = 0x4, offset = 0x4, fixed_abs, tag = 'smem constant byte address 0x4 - core index']
  #allocation1 [shape = 'u32[144,128]{1,0:T(1,128)}', space=vmem, size = 0x12000, scoped, tag = 'internal scratch']
  #allocation2 [shape = 'f32[10,18,128]{2,1,0:T(8,128)}', space=vmem, size = 0x1e000, scoped, tag = 'scratch operand']
  %s0 = inlined_call_operand.vmem [shape: bf16[2,16,16,128], index: 0, kind: input, shape index: {}, may-alias: {0,1,2}]
  %s1 = inlined_call_operand.vmem [shape: bf16[2,16,16,128], index: 1, kind: input, shape index: {}, may-alias: {0,1,2}]
  %s2 = inlined_call_operand.vmem [shape: bf16[2,16,16,128], index: 2, kind: input, shape index: {}, may-alias: {0,1,2}]
  %s3 = inlined_call_operand.vmem [shape: bf16[128,128], index: 3, kind: input, shape index: {}]
  %s4 = inlined_call_operand.vmem [shape: f32[1,128], index: 4, kind: input, shape index: {}]
  %s5 = inlined_call_operand.vmem [shape: bf16[3,3,128,128], index: 5, kind: input, shape index: {}]
  %s6 = inlined_call_operand.vmem [shape: f32[1,128], index: 6, kind: input, shape index: {}]
  %s7 = inlined_call_operand.vmem [shape: bf16[128,128], index: 7, kind: input, shape index: {}]
  %s8 = inlined_call_operand.vmem [shape: f32[1,128], index: 8, kind: input, shape index: {}]
  %s9 = inlined_call_operand.vmem [shape: bf16[128,128], index: 9, kind: input, shape index: {}]
  %s10 = inlined_call_operand.vmem [shape: f32[1,128], index: 10, kind: input, shape index: {}]
  %s11 = inlined_call_operand.vmem [shape: f32[2,16,16,128], index: 11, kind: output, shape index: {}]
  %s12 = sld [smem:[#allocation0]]
  $region85: #{bottleneck_forward.1} parent=0
    _
  %s14 = ssub.s32 1, %s12
  %s15 = scalar_select 0, %s14, %s12
  loop: start=0, step=1, limit=6
  $region2: #{bottleneck_forward.1} parent=0 // loop_pre_header
    _
  $region3: #{bottleneck_forward.1} parent=0 // loop_header
    %s17 = sphi 0, %s21
    %p18 = scmp.ge.s32.totalorder %s17, 6
    %s24 = sphi 0, %s36
    %s25 = sphi 0, %s32
    %s26 = sphi 0, %s24
    %s27 = sphi 0, %s25
    %s28 = sphi 0, %s26
    %s29 = sphi 0, %s27
    %s41 = sphi 0, %s43
    %s44 = sphi 0, %s41
    %s45 = sphi 0, %s44
    %s61 = sphi 0, %s45
    %s77 = sphi 0, %s79
    %s80 = sphi 0, %s77
    %s81 = sphi 0, %s80
    %s97 = sphi 0, %s81
    %s113 = sphi 0, %s115
    %s116 = sphi 0, %s113
    %s117 = sphi 0, %s116
    %s133 = sphi 0, %s117
    %s137 = sphi 0, %s137
    %s139 = sphi 0, %s137
    %s140 = sphi 0, %s139
    %s154 = sphi 0, %s140
    %s158 = sphi 0, %s158
    %s160 = sphi 0, %s158
    %s161 = sphi 0, %s160
    %s175 = sphi 0, %s161
    %s179 = sphi 0, %s179
    %s181 = sphi 0, %s179
    %s182 = sphi 0, %s181
    %s196 = sphi 0, %s182
    %s200 = sphi 0, %s200
    %s202 = sphi 0, %s200
    %s203 = sphi 0, %s202
    %s217 = sphi 0, %s203
    %s221 = sphi 0, %s221
    %s223 = sphi 0, %s221
    %s224 = sphi 0, %s223
    %s238 = sphi 0, %s224
    %s242 = sphi 0, %s242
    %s244 = sphi 0, %s242
    %s245 = sphi 0, %s244
    %s259 = sphi 0, %s245
    %s263 = sphi 0, %s263
    %s265 = sphi 0, %s263
    %s266 = sphi 0, %s265
    %s280 = sphi 0, %s266
    %s284 = sphi 0, %s284
    %s286 = sphi 0, %s284
    %s287 = sphi 0, %s286
    %s301 = sphi 0, %s287
    %s309 = sphi 0, %s311
    %s312 = sphi 0, %s309
    %s313 = sphi 0, %s312
    %s329 = sphi 0, %s313
  $region4: #{bottleneck_forward.1} parent=0 // loop_header_branch
    %20 = sbr.rel (%p18) target = $region8
  $region5: #{bottleneck_forward.1} parent=0 // loop_body
    %s22 = ssub.s32 %s17, 1
    %s23 = ssub.s32 %s17, 2
    %s30 = sadd.s32 1, %s25
    %p31 = scmp.ge.s32.totalorder %s30, 2
    %s32 = scalar_select %p31, 0, %s30
    %s33 = sadd.s32 1, %s24
    %s34 = scalar_select %p31, %s33, %s24
    %p35 = scmp.ge.s32.totalorder %s34, 2
    %s36 = scalar_select %p35, 0, %s34
    %s37 = ssub.s32 %s24, %s36
    %s38 = ssub.s32 %s25, %s32
    %s39 = sor.u32 %s37, %s38
    %p40 = scmp.eq.s32.totalorder %s39, 0
    %s42 = sadd.s32 %s41, 1
    %s43 = scalar_select %p40, %s41, %s42
    %p46 = pneg %p40
    %p47 = scmp.eq.s32.totalorder %s17, 3
    %p48 = por %p46, %p47
    %p49 = scmp.ne.s32.totalorder %s41, %s44
    %p50 = scmp.eq.s32.totalorder %s17, 0
    %p51 = por %p49, %p50
    %p52 = scmp.ne.s32.totalorder %s41, %s44
    %p53 = scmp.eq.s32.totalorder %s22, 3
    %p54 = por %p52, %p53
    %p55 = scmp.ne.s32.totalorder %s44, %s45
    %p56 = scmp.eq.s32.totalorder %s22, 0
    %p57 = por %p55, %p56
    %p58 = scmp.ne.s32.totalorder %s44, %s45
    %p59 = scmp.eq.s32.totalorder %s23, 3
    %p60 = por %p58, %p59
    %p62 = scmp.ne.s32.totalorder %s45, %s61
    %p63 = scmp.eq.s32.totalorder %s23, 0
    %p64 = por %p62, %p63
    %s65 = smul.u32 %s25, 8
    %s66 = ssub.s32 %s65, 1
    %p67 = scmp.gt.s32.totalorder %s66, 0
    %s68 = scalar_select %p67, %s66, 0
    %s69 = smul.u32 %s32, 8
    %s70 = ssub.s32 %s69, 1
    %p71 = scmp.gt.s32.totalorder %s70, 0
    %s72 = scalar_select %p71, %s70, 0
    %s73 = ssub.s32 %s24, %s36
    %s74 = ssub.s32 %s68, %s72
    %s75 = sor.u32 %s73, %s74
    %p76 = scmp.eq.s32.totalorder %s75, 0
    %s78 = sadd.s32 %s77, 1
    %s79 = scalar_select %p76, %s77, %s78
    %p82 = pneg %p76
    %p83 = scmp.eq.s32.totalorder %s17, 3
    %p84 = por %p82, %p83
    %p85 = scmp.ne.s32.totalorder %s77, %s80
    %p86 = scmp.eq.s32.totalorder %s17, 0
    %p87 = por %p85, %p86
    %p88 = scmp.ne.s32.totalorder %s77, %s80
    %p89 = scmp.eq.s32.totalorder %s22, 3
    %p90 = por %p88, %p89
    %p91 = scmp.ne.s32.totalorder %s80, %s81
    %p92 = scmp.eq.s32.totalorder %s22, 0
    %p93 = por %p91, %p92
    %p94 = scmp.ne.s32.totalorder %s80, %s81
    %p95 = scmp.eq.s32.totalorder %s23, 3
    %p96 = por %p94, %p95
    %p98 = scmp.ne.s32.totalorder %s81, %s97
    %p99 = scmp.eq.s32.totalorder %s23, 0
    %p100 = por %p98, %p99
    %s101 = smul.u32 %s25, 8
    %s102 = sadd.s32 %s101, 8
    %p103 = scmp.lt.s32.totalorder %s102, 15
    %s104 = scalar_select %p103, %s102, 15
    %s105 = smul.u32 %s32, 8
    %s106 = sadd.s32 %s105, 8
    %p107 = scmp.lt.s32.totalorder %s106, 15
    %s108 = scalar_select %p107, %s106, 15
    %s109 = ssub.s32 %s24, %s36
    %s110 = ssub.s32 %s104, %s108
    %s111 = sor.u32 %s109, %s110
    %p112 = scmp.eq.s32.totalorder %s111, 0
    %s114 = sadd.s32 %s113, 1
    %s115 = scalar_select %p112, %s113, %s114
    %p118 = pneg %p112
    %p119 = scmp.eq.s32.totalorder %s17, 3
    %p120 = por %p118, %p119
    %p121 = scmp.ne.s32.totalorder %s113, %s116
    %p122 = scmp.eq.s32.totalorder %s17, 0
    %p123 = por %p121, %p122
    %p124 = scmp.ne.s32.totalorder %s113, %s116
    %p125 = scmp.eq.s32.totalorder %s22, 3
    %p126 = por %p124, %p125
    %p127 = scmp.ne.s32.totalorder %s116, %s117
    %p128 = scmp.eq.s32.totalorder %s22, 0
    %p129 = por %p127, %p128
    %p130 = scmp.ne.s32.totalorder %s116, %s117
    %p131 = scmp.eq.s32.totalorder %s23, 3
    %p132 = por %p130, %p131
    %p134 = scmp.ne.s32.totalorder %s117, %s133
    %p135 = scmp.eq.s32.totalorder %s23, 0
    %p136 = por %p134, %p135
    %s138 = sadd.s32 %s137, 1
    %p141 = scmp.eq.s32.totalorder %s17, 3
    %p142 = scmp.ne.s32.totalorder %s137, %s139
    %p143 = scmp.eq.s32.totalorder %s17, 0
    %p144 = por %p142, %p143
    %p145 = scmp.ne.s32.totalorder %s137, %s139
    %p146 = scmp.eq.s32.totalorder %s22, 3
    %p147 = por %p145, %p146
    %p148 = scmp.ne.s32.totalorder %s139, %s140
    %p149 = scmp.eq.s32.totalorder %s22, 0
    %p150 = por %p148, %p149
    %p151 = scmp.ne.s32.totalorder %s139, %s140
    %p152 = scmp.eq.s32.totalorder %s23, 3
    %p153 = por %p151, %p152
    %p155 = scmp.ne.s32.totalorder %s140, %s154
    %p156 = scmp.eq.s32.totalorder %s23, 0
    %p157 = por %p155, %p156
    %s159 = sadd.s32 %s158, 1
    %p162 = scmp.eq.s32.totalorder %s17, 3
    %p163 = scmp.ne.s32.totalorder %s158, %s160
    %p164 = scmp.eq.s32.totalorder %s17, 0
    %p165 = por %p163, %p164
    %p166 = scmp.ne.s32.totalorder %s158, %s160
    %p167 = scmp.eq.s32.totalorder %s22, 3
    %p168 = por %p166, %p167
    %p169 = scmp.ne.s32.totalorder %s160, %s161
    %p170 = scmp.eq.s32.totalorder %s22, 0
    %p171 = por %p169, %p170
    %p172 = scmp.ne.s32.totalorder %s160, %s161
    %p173 = scmp.eq.s32.totalorder %s23, 3
    %p174 = por %p172, %p173
    %p176 = scmp.ne.s32.totalorder %s161, %s175
    %p177 = scmp.eq.s32.totalorder %s23, 0
    %p178 = por %p176, %p177
    %s180 = sadd.s32 %s179, 1
    %p183 = scmp.eq.s32.totalorder %s17, 3
    %p184 = scmp.ne.s32.totalorder %s179, %s181
    %p185 = scmp.eq.s32.totalorder %s17, 0
    %p186 = por %p184, %p185
    %p187 = scmp.ne.s32.totalorder %s179, %s181
    %p188 = scmp.eq.s32.totalorder %s22, 3
    %p189 = por %p187, %p188
    %p190 = scmp.ne.s32.totalorder %s181, %s182
    %p191 = scmp.eq.s32.totalorder %s22, 0
    %p192 = por %p190, %p191
    %p193 = scmp.ne.s32.totalorder %s181, %s182
    %p194 = scmp.eq.s32.totalorder %s23, 3
    %p195 = por %p193, %p194
    %p197 = scmp.ne.s32.totalorder %s182, %s196
    %p198 = scmp.eq.s32.totalorder %s23, 0
    %p199 = por %p197, %p198
    %s201 = sadd.s32 %s200, 1
    %p204 = scmp.eq.s32.totalorder %s17, 3
    %p205 = scmp.ne.s32.totalorder %s200, %s202
    %p206 = scmp.eq.s32.totalorder %s17, 0
    %p207 = por %p205, %p206
    %p208 = scmp.ne.s32.totalorder %s200, %s202
    %p209 = scmp.eq.s32.totalorder %s22, 3
    %p210 = por %p208, %p209
    %p211 = scmp.ne.s32.totalorder %s202, %s203
    %p212 = scmp.eq.s32.totalorder %s22, 0
    %p213 = por %p211, %p212
    %p214 = scmp.ne.s32.totalorder %s202, %s203
    %p215 = scmp.eq.s32.totalorder %s23, 3
    %p216 = por %p214, %p215
    %p218 = scmp.ne.s32.totalorder %s203, %s217
    %p219 = scmp.eq.s32.totalorder %s23, 0
    %p220 = por %p218, %p219
    %s222 = sadd.s32 %s221, 1
    %p225 = scmp.eq.s32.totalorder %s17, 3
    %p226 = scmp.ne.s32.totalorder %s221, %s223
    %p227 = scmp.eq.s32.totalorder %s17, 0
    %p228 = por %p226, %p227
    %p229 = scmp.ne.s32.totalorder %s221, %s223
    %p230 = scmp.eq.s32.totalorder %s22, 3
    %p231 = por %p229, %p230
    %p232 = scmp.ne.s32.totalorder %s223, %s224
    %p233 = scmp.eq.s32.totalorder %s22, 0
    %p234 = por %p232, %p233
    %p235 = scmp.ne.s32.totalorder %s223, %s224
    %p236 = scmp.eq.s32.totalorder %s23, 3
    %p237 = por %p235, %p236
    %p239 = scmp.ne.s32.totalorder %s224, %s238
    %p240 = scmp.eq.s32.totalorder %s23, 0
    %p241 = por %p239, %p240
    %s243 = sadd.s32 %s242, 1
    %p246 = scmp.eq.s32.totalorder %s17, 3
    %p247 = scmp.ne.s32.totalorder %s242, %s244
    %p248 = scmp.eq.s32.totalorder %s17, 0
    %p249 = por %p247, %p248
    %p250 = scmp.ne.s32.totalorder %s242, %s244
    %p251 = scmp.eq.s32.totalorder %s22, 3
    %p252 = por %p250, %p251
    %p253 = scmp.ne.s32.totalorder %s244, %s245
    %p254 = scmp.eq.s32.totalorder %s22, 0
    %p255 = por %p253, %p254
    %p256 = scmp.ne.s32.totalorder %s244, %s245
    %p257 = scmp.eq.s32.totalorder %s23, 3
    %p258 = por %p256, %p257
    %p260 = scmp.ne.s32.totalorder %s245, %s259
    %p261 = scmp.eq.s32.totalorder %s23, 0
    %p262 = por %p260, %p261
    %s264 = sadd.s32 %s263, 1
    %p267 = scmp.eq.s32.totalorder %s17, 3
    %p268 = scmp.ne.s32.totalorder %s263, %s265
    %p269 = scmp.eq.s32.totalorder %s17, 0
    %p270 = por %p268, %p269
    %p271 = scmp.ne.s32.totalorder %s263, %s265
    %p272 = scmp.eq.s32.totalorder %s22, 3
    %p273 = por %p271, %p272
    %p274 = scmp.ne.s32.totalorder %s265, %s266
    %p275 = scmp.eq.s32.totalorder %s22, 0
    %p276 = por %p274, %p275
    %p277 = scmp.ne.s32.totalorder %s265, %s266
    %p278 = scmp.eq.s32.totalorder %s23, 3
    %p279 = por %p277, %p278
    %p281 = scmp.ne.s32.totalorder %s266, %s280
    %p282 = scmp.eq.s32.totalorder %s23, 0
    %p283 = por %p281, %p282
    %s285 = sadd.s32 %s284, 1
    %p288 = scmp.eq.s32.totalorder %s17, 3
    %p289 = scmp.ne.s32.totalorder %s284, %s286
    %p290 = scmp.eq.s32.totalorder %s17, 0
    %p291 = por %p289, %p290
    %p292 = scmp.ne.s32.totalorder %s284, %s286
    %p293 = scmp.eq.s32.totalorder %s22, 3
    %p294 = por %p292, %p293
    %p295 = scmp.ne.s32.totalorder %s286, %s287
    %p296 = scmp.eq.s32.totalorder %s22, 0
    %p297 = por %p295, %p296
    %p298 = scmp.ne.s32.totalorder %s286, %s287
    %p299 = scmp.eq.s32.totalorder %s23, 3
    %p300 = por %p298, %p299
    %p302 = scmp.ne.s32.totalorder %s287, %s301
    %p303 = scmp.eq.s32.totalorder %s23, 0
    %p304 = por %p302, %p303
    %s305 = ssub.s32 %s24, %s36
    %s306 = ssub.s32 %s25, %s32
    %s307 = sor.u32 %s305, %s306
    %p308 = scmp.eq.s32.totalorder %s307, 0
    %s310 = sadd.s32 %s309, 1
    %s311 = scalar_select %p308, %s309, %s310
    %p314 = pneg %p308
    %p315 = scmp.eq.s32.totalorder %s17, 3
    %p316 = por %p314, %p315
    %p317 = scmp.ne.s32.totalorder %s309, %s312
    %p318 = scmp.eq.s32.totalorder %s17, 0
    %p319 = por %p317, %p318
    %p320 = scmp.ne.s32.totalorder %s309, %s312
    %p321 = scmp.eq.s32.totalorder %s22, 3
    %p322 = por %p320, %p321
    %p323 = scmp.ne.s32.totalorder %s312, %s313
    %p324 = scmp.eq.s32.totalorder %s22, 0
    %p325 = por %p323, %p324
    %p326 = scmp.ne.s32.totalorder %s312, %s313
    %p327 = scmp.eq.s32.totalorder %s23, 3
    %p328 = por %p326, %p327
    %p330 = scmp.ne.s32.totalorder %s313, %s329
    %p331 = scmp.eq.s32.totalorder %s23, 0
    %p332 = por %p330, %p331
    %p333 = scmp.le.s32.totalorder 1, %s17
    %p334 = scmp.lt.s32.totalorder %s17, 5
    %p335 = pnand %p333, %p334
    %p336 = pneg %p335
    // Predicated region
    $region9: #{bottleneck_forward.1} parent=5 // pred_check
      _
    $region10: #{bottleneck_forward.1} parent=5 // pred_check_branch
      %338 = sbr.rel (%p335) target = $region12
    $region11: #{bottleneck_forward.1} parent=5 // pred_region
      %s339 = ssub.s32 %s17, 1
      // Predicated region
      $region13: #{bottleneck_forward.1} parent=11 // pred_check
        %p340 = pneg %p150
      $region14: #{bottleneck_forward.1} parent=11 // pred_check_branch
        %342 = sbr.rel (%p340) target = $region16
      $region15: #{bottleneck_forward.1} parent=11 // pred_region
        _
      $region16: #{bottleneck_forward.1} parent=11 // pred_fallthru
        _
      // Predicated region
      $region17: #{bottleneck_forward.1} parent=11 // pred_check
        %p343 = pneg %p171
      $region18: #{bottleneck_forward.1} parent=11 // pred_check_branch
        %345 = sbr.rel (%p343) target = $region20
      $region19: #{bottleneck_forward.1} parent=11 // pred_region
        _
      $region20: #{bottleneck_forward.1} parent=11 // pred_fallthru
        _
      // Predicated region
      $region21: #{bottleneck_forward.1} parent=11 // pred_check
        %p346 = pneg %p192
      $region22: #{bottleneck_forward.1} parent=11 // pred_check_branch
        %348 = sbr.rel (%p346) target = $region24
      $region23: #{bottleneck_forward.1} parent=11 // pred_region
        _
      $region24: #{bottleneck_forward.1} parent=11 // pred_fallthru
        _
      // Predicated region
      $region25: #{bottleneck_forward.1} parent=11 // pred_check
        %p349 = pneg %p213
      $region26: #{bottleneck_forward.1} parent=11 // pred_check_branch
        %351 = sbr.rel (%p349) target = $region28
      $region27: #{bottleneck_forward.1} parent=11 // pred_region
        _
      $region28: #{bottleneck_forward.1} parent=11 // pred_fallthru
        _
      // Predicated region
      $region29: #{bottleneck_forward.1} parent=11 // pred_check
        %p352 = pneg %p234
      $region30: #{bottleneck_forward.1} parent=11 // pred_check_branch
        %354 = sbr.rel (%p352) target = $region32
      $region31: #{bottleneck_forward.1} parent=11 // pred_region
        _
      $region32: #{bottleneck_forward.1} parent=11 // pred_fallthru
        _
      // Predicated region
      $region33: #{bottleneck_forward.1} parent=11 // pred_check
        %p355 = pneg %p255
      $region34: #{bottleneck_forward.1} parent=11 // pred_check_branch
        %357 = sbr.rel (%p355) target = $region36
      $region35: #{bottleneck_forward.1} parent=11 // pred_region
        _
      $region36: #{bottleneck_forward.1} parent=11 // pred_fallthru
        _
      // Predicated region
      $region37: #{bottleneck_forward.1} parent=11 // pred_check
        %p358 = pneg %p276
      $region38: #{bottleneck_forward.1} parent=11 // pred_check_branch
        %360 = sbr.rel (%p358) target = $region40
      $region39: #{bottleneck_forward.1} parent=11 // pred_region
        _
      $region40: #{bottleneck_forward.1} parent=11 // pred_fallthru
        _
      // Predicated region
      $region41: #{bottleneck_forward.1} parent=11 // pred_check
        %p361 = pneg %p297
      $region42: #{bottleneck_forward.1} parent=11 // pred_check_branch
        %363 = sbr.rel (%p361) target = $region44
      $region43: #{bottleneck_forward.1} parent=11 // pred_region
        _
      $region44: #{bottleneck_forward.1} parent=11 // pred_fallthru
        _
    $region12: #{bottleneck_forward.1} parent=5 // pred_fallthru
      _
    %p364 = scmp.lt.s32.totalorder %s17, 4
    // Predicated region
    $region45: #{bottleneck_forward.1} parent=5 // pred_check
      %p365 = pneg %p364
    $region46: #{bottleneck_forward.1} parent=5 // pred_check_branch
      %367 = sbr.rel (%p365) target = $region48
    $region47: #{bottleneck_forward.1} parent=5 // pred_region
      // Predicated region
      $region49: #{bottleneck_forward.1} parent=47 // pred_check
        %p368 = pneg %p51
      $region50: #{bottleneck_forward.1} parent=47 // pred_check_branch
        %370 = sbr.rel (%p368) target = $region52
      $region51: #{bottleneck_forward.1} parent=47 // pred_region
        %s371 = smul.u32 8, %s25
        %p372 = scmp.lt.s32.totalorder %s24, 1
        %s373 = scalar_select %p372, %s24, 1
        %p374 = scmp.lt.s32.totalorder %s371, 15
        %s375 = scalar_select %p374, %s371, 15
        %s376 = smul.addr %s375, 2
        %s377 = smul.addr %s373, 32
        %s378 = sadd.s32 %s376, %s377
        %s379 = smul.addr %s378, 4
        %s380 = scalar_lea.vmem %s0, %s379
        %s381 = smul.u32 8, %s25
      $region52: #{bottleneck_forward.1} parent=47 // pred_fallthru
        _
      // Predicated region
      $region53: #{bottleneck_forward.1} parent=47 // pred_check
        %p382 = pneg %p87
      $region54: #{bottleneck_forward.1} parent=47 // pred_check_branch
        %384 = sbr.rel (%p382) target = $region56
      $region55: #{bottleneck_forward.1} parent=47 // pred_region
        %s385 = smul.u32 %s25, 8
        %s386 = ssub.s32 %s385, 1
        %p387 = scmp.gt.s32.totalorder %s386, 0
        %s388 = scalar_select %p387, %s386, 0
        %p389 = scmp.lt.s32.totalorder %s24, 1
        %s390 = scalar_select %p389, %s24, 1
        %p391 = scmp.lt.s32.totalorder %s388, 15
        %s392 = scalar_select %p391, %s388, 15
        %s393 = smul.addr %s392, 2
        %s394 = smul.addr %s390, 32
        %s395 = sadd.s32 %s393, %s394
        %s396 = smul.addr %s395, 4
        %s397 = scalar_lea.vmem %s1, %s396
        %s398 = smul.u32 %s25, 8
        %s399 = ssub.s32 %s398, 1
        %p400 = scmp.gt.s32.totalorder %s399, 0
        %s401 = scalar_select %p400, %s399, 0
      $region56: #{bottleneck_forward.1} parent=47 // pred_fallthru
        _
      // Predicated region
      $region57: #{bottleneck_forward.1} parent=47 // pred_check
        %p402 = pneg %p123
      $region58: #{bottleneck_forward.1} parent=47 // pred_check_branch
        %404 = sbr.rel (%p402) target = $region60
      $region59: #{bottleneck_forward.1} parent=47 // pred_region
        %s405 = smul.u32 %s25, 8
        %s406 = sadd.s32 %s405, 8
        %p407 = scmp.lt.s32.totalorder %s406, 15
        %s408 = scalar_select %p407, %s406, 15
        %p409 = scmp.lt.s32.totalorder %s24, 1
        %s410 = scalar_select %p409, %s24, 1
        %p411 = scmp.lt.s32.totalorder %s408, 15
        %s412 = scalar_select %p411, %s408, 15
        %s413 = smul.addr %s412, 2
        %s414 = smul.addr %s410, 32
        %s415 = sadd.s32 %s413, %s414
        %s416 = smul.addr %s415, 4
        %s417 = scalar_lea.vmem %s2, %s416
        %s418 = smul.u32 %s25, 8
        %s419 = sadd.s32 %s418, 8
        %p420 = scmp.lt.s32.totalorder %s419, 15
        %s421 = scalar_select %p420, %s419, 15
      $region60: #{bottleneck_forward.1} parent=47 // pred_fallthru
        _
    $region48: #{bottleneck_forward.1} parent=5 // pred_fallthru
      _
    %p422 = scmp.le.s32.totalorder 1, %s17
    %p423 = scmp.lt.s32.totalorder %s17, 5
    %p424 = pnand %p422, %p423
    %p425 = pneg %p424
    // Predicated region
    $region61: #{bottleneck_forward.1} parent=5 // pred_check
      _
    $region62: #{bottleneck_forward.1} parent=5 // pred_check_branch
      %427 = sbr.rel (%p424) target = $region64
    $region63: #{bottleneck_forward.1} parent=5 // pred_region
      %s428 = ssub.s32 %s17, 1
      %s429 = smul.u32 8, %s27
      %p430 = scmp.lt.s32.totalorder %s26, 1
      %s431 = scalar_select %p430, %s26, 1
      %p432 = scmp.lt.s32.totalorder %s429, 15
      %s433 = scalar_select %p432, %s429, 15
      %s434 = smul.addr %s433, 2
      %s435 = smul.addr %s431, 32
      %s436 = sadd.s32 %s434, %s435
      %s437 = smul.addr %s436, 4
      %s438 = scalar_lea.vmem %s0, %s437
      %p439 = pneg %p57
      %p440 = pneg %p54
      %s441 = smul.u32 %s27, 8
      %s442 = ssub.s32 %s441, 1
      %p443 = scmp.gt.s32.totalorder %s442, 0
      %s444 = scalar_select %p443, %s442, 0
      %p445 = scmp.lt.s32.totalorder %s26, 1
      %s446 = scalar_select %p445, %s26, 1
      %p447 = scmp.lt.s32.totalorder %s444, 15
      %s448 = scalar_select %p447, %s444, 15
      %s449 = smul.addr %s448, 2
      %s450 = smul.addr %s446, 32
      %s451 = sadd.s32 %s449, %s450
      %s452 = smul.addr %s451, 4
      %s453 = scalar_lea.vmem %s1, %s452
      %p454 = pneg %p93
      %p455 = pneg %p90
      %s456 = smul.u32 %s27, 8
      %s457 = sadd.s32 %s456, 8
      %p458 = scmp.lt.s32.totalorder %s457, 15
      %s459 = scalar_select %p458, %s457, 15
      %p460 = scmp.lt.s32.totalorder %s26, 1
      %s461 = scalar_select %p460, %s26, 1
      %p462 = scmp.lt.s32.totalorder %s459, 15
      %s463 = scalar_select %p462, %s459, 15
      %s464 = smul.addr %s463, 2
      %s465 = smul.addr %s461, 32
      %s466 = sadd.s32 %s464, %s465
      %s467 = smul.addr %s466, 4
      %s468 = scalar_lea.vmem %s2, %s467
      %p469 = pneg %p129
      %p470 = pneg %p126
      %p471 = pneg %p150
      %p472 = pneg %p147
      %p473 = pneg %p171
      %p474 = pneg %p168
      %p475 = pneg %p192
      %p476 = pneg %p189
      %p477 = pneg %p213
      %p478 = pneg %p210
      %p479 = pneg %p234
      %p480 = pneg %p231
      %p481 = pneg %p255
      %p482 = pneg %p252
      %p483 = pneg %p276
      %p484 = pneg %p273
      %p485 = pneg %p297
      %p486 = pneg %p294
      %p487 = pneg %p325
      %p488 = pneg %p322
      %s489 = smul.u32 8, %s27
      %p490 = scmp.lt.s32.totalorder %s26, 1
      %s491 = scalar_select %p490, %s26, 1
      %p492 = scmp.lt.s32.totalorder %s489, 15
      %s493 = scalar_select %p492, %s489, 15
      %s494 = smul.addr %s493, 2
      %s495 = smul.addr %s491, 32
      %s496 = sadd.s32 %s494, %s495
      %s497 = smul.addr %s496, 8
      %s498 = scalar_lea.vmem %s11, %s497
      %s499 = smul.u32 8, %s27
      %p500 = scmp.lt.s32.totalorder %s26, 1
      %s501 = scalar_select %p500, %s26, 1
      %p502 = scmp.lt.s32.totalorder %s499, 15
      %s503 = scalar_select %p502, %s499, 15
      %s504 = smul.addr %s503, 2
      %s505 = smul.addr %s501, 32
      %s506 = sadd.s32 %s504, %s505
      %s507 = smul.addr %s506, 4
      %s508 = scalar_lea.vmem %s0, %s507
      %s509 = smul.u32 8, %s27
      %s510 = smul.u32 %s27, 8
      %s511 = ssub.s32 %s510, 1
      %p512 = scmp.gt.s32.totalorder %s511, 0
      %s513 = scalar_select %p512, %s511, 0
      %p514 = scmp.lt.s32.totalorder %s26, 1
      %s515 = scalar_select %p514, %s26, 1
      %p516 = scmp.lt.s32.totalorder %s513, 15
      %s517 = scalar_select %p516, %s513, 15
      %s518 = smul.addr %s517, 2
      %s519 = smul.addr %s515, 32
      %s520 = sadd.s32 %s518, %s519
      %s521 = smul.addr %s520, 4
      %s522 = scalar_lea.vmem %s1, %s521
      %s523 = smul.u32 %s27, 8
      %s524 = ssub.s32 %s523, 1
      %p525 = scmp.gt.s32.totalorder %s524, 0
      %s526 = scalar_select %p525, %s524, 0
      %s527 = smul.u32 %s27, 8
      %s528 = sadd.s32 %s527, 8
      %p529 = scmp.lt.s32.totalorder %s528, 15
      %s530 = scalar_select %p529, %s528, 15
      %p531 = scmp.lt.s32.totalorder %s26, 1
      %s532 = scalar_select %p531, %s26, 1
      %p533 = scmp.lt.s32.totalorder %s530, 15
      %s534 = scalar_select %p533, %s530, 15
      %s535 = smul.addr %s534, 2
      %s536 = smul.addr %s532, 32
      %s537 = sadd.s32 %s535, %s536
      %s538 = smul.addr %s537, 4
      %s539 = scalar_lea.vmem %s2, %s538
      %s540 = smul.u32 %s27, 8
      %s541 = sadd.s32 %s540, 8
      %p542 = scmp.lt.s32.totalorder %s541, 15
      %s543 = scalar_select %p542, %s541, 15
      %s544 = smul.u32 8, %s27
      %p545 = scmp.lt.s32.totalorder %s26, 1
      %s546 = scalar_select %p545, %s26, 1
      %p547 = scmp.lt.s32.totalorder %s544, 15
      %s548 = scalar_select %p547, %s544, 15
      %s549 = smul.addr %s548, 2
      %s550 = smul.addr %s546, 32
      %s551 = sadd.s32 %s549, %s550
      %s552 = smul.addr %s551, 8
      %s553 = scalar_lea.vmem %s11, %s552
      %s554 = smul.u32 8, %s27
      %v556 = vld [vmem:[%s508] sm:$0xf]
      %v557 = vld [vmem:[%s508 + $0x4] sm:$0xf]
      %v558 = vld [vmem:[%s508 + $0x8] sm:$0xf]
      %v559 = vld [vmem:[%s508 + $0xc] sm:$0xf]
      %v560 = vld [vmem:[%s508 + $0x10] sm:$0xf]
      %v561 = vld [vmem:[%s508 + $0x14] sm:$0xf]
      %v562 = vld [vmem:[%s508 + $0x18] sm:$0xf]
      %v563 = vld [vmem:[%s508 + $0x1c] sm:$0xf]
      %v564 = vld [vmem:[%s508 + $0x20] sm:$0xf]
      %v565 = vld [vmem:[%s508 + $0x24] sm:$0xf]
      %v566 = vld [vmem:[%s508 + $0x28] sm:$0xf]
      %v567 = vld [vmem:[%s508 + $0x2c] sm:$0xf]
      %v568 = vld [vmem:[%s508 + $0x30] sm:$0xf]
      %v569 = vld [vmem:[%s508 + $0x34] sm:$0xf]
      %v570 = vld [vmem:[%s508 + $0x38] sm:$0xf]
      %v571 = vld [vmem:[%s508 + $0x3c] sm:$0xf]
      %v572 = vld [vmem:[%s9] sm:$0xf]
      %v573 = vld [vmem:[%s9 + $0x4] sm:$0xf]
      %v574 = vld [vmem:[%s9 + $0x8] sm:$0xf]
      %v575 = vld [vmem:[%s9 + $0xc] sm:$0xf]
      %v576 = vld [vmem:[%s9 + $0x10] sm:$0xf]
      %v577 = vld [vmem:[%s9 + $0x14] sm:$0xf]
      %v578 = vld [vmem:[%s9 + $0x18] sm:$0xf]
      %v579 = vld [vmem:[%s9 + $0x1c] sm:$0xf]
      %v580 = vld [vmem:[%s9 + $0x20] sm:$0xf]
      %v581 = vld [vmem:[%s9 + $0x24] sm:$0xf]
      %v582 = vld [vmem:[%s9 + $0x28] sm:$0xf]
      %v583 = vld [vmem:[%s9 + $0x2c] sm:$0xf]
      %v584 = vld [vmem:[%s9 + $0x30] sm:$0xf]
      %v585 = vld [vmem:[%s9 + $0x34] sm:$0xf]
      %v586 = vld [vmem:[%s9 + $0x38] sm:$0xf]
      %v587 = vld [vmem:[%s9 + $0x3c] sm:$0xf]
      %v588 = vld [vmem:[%s10] sm:$0x1]
      %v590 = vlaneseq
      %v591 = vshrl.u32 %v590, 7
      %v592 = vsub.s32 0, %v591
      %v593 = vrot.slane %v588, %v592
      %v611 = vunpack.c.l.b16 %v556
      %v612 = vunpack.c.l.b16 %v557
      %v613 = vunpack.c.l.b16 %v558
      %v614 = vunpack.c.l.b16 %v559
      %v615 = vunpack.c.l.b16 %v560
      %v616 = vunpack.c.l.b16 %v561
      %v617 = vunpack.c.l.b16 %v562
      %v618 = vunpack.c.l.b16 %v563
      %v619 = vunpack.c.l.b16 %v564
      %v620 = vunpack.c.l.b16 %v565
      %v621 = vunpack.c.l.b16 %v566
      %v622 = vunpack.c.l.b16 %v567
      %v623 = vunpack.c.l.b16 %v568
      %v624 = vunpack.c.l.b16 %v569
      %v625 = vunpack.c.l.b16 %v570
      %v626 = vunpack.c.l.b16 %v571
      %v627 = vpack.c.b16 %v612, %v611
      %v628 = vpack.c.b16 %v614, %v613
      %v629 = vpack.c.b16 %v616, %v615
      %v630 = vpack.c.b16 %v618, %v617
      %v631 = vpack.c.b16 %v620, %v619
      %v632 = vpack.c.b16 %v622, %v621
      %v633 = vpack.c.b16 %v624, %v623
      %v634 = vpack.c.b16 %v626, %v625
      %v659 = vunpack.c.l.b16 %v572
      %v660 = vunpack.c.l.b16 %v573
      %v661 = vunpack.c.l.b16 %v574
      %v662 = vunpack.c.l.b16 %v575
      %v663 = vunpack.c.l.b16 %v576
      %v664 = vunpack.c.l.b16 %v577
      %v665 = vunpack.c.l.b16 %v578
      %v666 = vunpack.c.l.b16 %v579
      %v667 = vunpack.c.l.b16 %v580
      %v668 = vunpack.c.l.b16 %v581
      %v669 = vunpack.c.l.b16 %v582
      %v670 = vunpack.c.l.b16 %v583
      %v671 = vunpack.c.l.b16 %v584
      %v672 = vunpack.c.l.b16 %v585
      %v673 = vunpack.c.l.b16 %v586
      %v674 = vunpack.c.l.b16 %v587
      %v675 = vpack.c.b16 %v660, %v659
      %v676 = vpack.c.b16 %v662, %v661
      %v677 = vpack.c.b16 %v664, %v663
      %v678 = vpack.c.b16 %v666, %v665
      %v679 = vpack.c.b16 %v668, %v667
      %v680 = vpack.c.b16 %v670, %v669
      %v681 = vpack.c.b16 %v672, %v671
      %v682 = vpack.c.b16 %v674, %v673
      %691 = vmatprep.subr.bf16.mxu0 0
      %692 = vmatpush1.bf16.msra.mxu0 %v675
      %693 = vmatprep.subr.bf16.mxu0 0
      %694 = vmatpush1.bf16.msra.mxu0 %v676
      %695 = vmatprep.subr.bf16.mxu0 0
      %696 = vmatpush1.bf16.msra.mxu0 %v677
      %697 = vmatprep.subr.bf16.mxu0 0
      %698 = vmatpush1.bf16.msra.mxu0 %v678
      %699 = vmatprep.subr.bf16.mxu0 0
      %700 = vmatpush1.bf16.msra.mxu0 %v679
      %701 = vmatprep.subr.bf16.mxu0 0
      %702 = vmatpush1.bf16.msra.mxu0 %v680
      %703 = vmatprep.subr.bf16.mxu0 0
      %704 = vmatpush1.bf16.msra.mxu0 %v681
      %705 = vmatprep.subr.bf16.mxu0 0
      %706 = vmatpush1.bf16.msra.mxu0 %v682
      %707 = vmatprep.subr.bf16.mxu0 0
      %708 = vmatpush1.bf16.msra.mxu0 0
      %709 = vmatprep.subr.bf16.mxu0 0
      %710 = vmatpush1.bf16.msra.mxu0 0
      %711 = vmatprep.subr.bf16.mxu0 0
      %712 = vmatpush1.bf16.msra.mxu0 0
      %713 = vmatprep.subr.bf16.mxu0 0
      %714 = vmatpush1.bf16.msra.mxu0 0
      %715 = vmatprep.subr.bf16.mxu0 0
      %716 = vmatpush1.bf16.msra.mxu0 0
      %717 = vmatprep.subr.bf16.mxu0 0
      %718 = vmatpush1.bf16.msra.mxu0 0
      %719 = vmatprep.subr.bf16.mxu0 0
      %720 = vmatpush1.bf16.msra.mxu0 0
      %721 = vmatprep.subr.bf16.mxu0 0
      %722 = vmatpush1.bf16.msra.mxu0 0
      %723 = vmatprep.mubr.bf16.mxu0 0
      %724 = vmatmul.mubr.bf16.gmra.mrb[0].mxu0 %v627
      %v725 = vpop.f32.mrb[0].mxu0
      %v726 = vadd.f32 %v593, %v725
      %v727 = vpop.f32.mrb[0].mxu0
      %v728 = vpop.f32.mrb[0].mxu0
      %v729 = vadd.f32 %v593, %v728
      %v730 = vpop.f32.mrb[0].mxu0
      %731 = vmatprep.mubr.bf16.mxu0 0
      %732 = vmatmul.mubr.bf16.gmra.mrb[0].mxu0 %v628
      %v733 = vpop.f32.mrb[0].mxu0
      %v734 = vadd.f32 %v593, %v733
      %v735 = vpop.f32.mrb[0].mxu0
      %v736 = vpop.f32.mrb[0].mxu0
      %v737 = vadd.f32 %v593, %v736
      %v738 = vpop.f32.mrb[0].mxu0
      %739 = vmatprep.mubr.bf16.mxu0 0
      %740 = vmatmul.mubr.bf16.gmra.mrb[0].mxu0 %v629
      %v741 = vpop.f32.mrb[0].mxu0
      %v742 = vadd.f32 %v593, %v741
      %v743 = vpop.f32.mrb[0].mxu0
      %v744 = vpop.f32.mrb[0].mxu0
      %v745 = vadd.f32 %v593, %v744
      %v746 = vpop.f32.mrb[0].mxu0
      %747 = vmatprep.mubr.bf16.mxu0 0
      %748 = vmatmul.mubr.bf16.gmra.mrb[0].mxu0 %v630
      %v749 = vpop.f32.mrb[0].mxu0
      %v750 = vadd.f32 %v593, %v749
      %v751 = vpop.f32.mrb[0].mxu0
      %v752 = vpop.f32.mrb[0].mxu0
      %v753 = vadd.f32 %v593, %v752
      %v754 = vpop.f32.mrb[0].mxu0
      %755 = vmatprep.mubr.bf16.mxu0 0
      %756 = vmatmul.mubr.bf16.gmra.mrb[0].mxu0 %v631
      %v757 = vpop.f32.mrb[0].mxu0
      %v758 = vadd.f32 %v593, %v757
      %v759 = vpop.f32.mrb[0].mxu0
      %v760 = vpop.f32.mrb[0].mxu0
      %v761 = vadd.f32 %v593, %v760
      %v762 = vpop.f32.mrb[0].mxu0
      %763 = vmatprep.mubr.bf16.mxu0 0
      %764 = vmatmul.mubr.bf16.gmra.mrb[0].mxu0 %v632
      %v765 = vpop.f32.mrb[0].mxu0
      %v766 = vadd.f32 %v593, %v765
      %v767 = vpop.f32.mrb[0].mxu0
      %v768 = vpop.f32.mrb[0].mxu0
      %v769 = vadd.f32 %v593, %v768
      %v770 = vpop.f32.mrb[0].mxu0
      %771 = vmatprep.mubr.bf16.mxu0 0
      %772 = vmatmul.mubr.bf16.gmra.mrb[0].mxu0 %v633
      %v773 = vpop.f32.mrb[0].mxu0
      %v774 = vadd.f32 %v593, %v773
      %v775 = vpop.f32.mrb[0].mxu0
      %v776 = vpop.f32.mrb[0].mxu0
      %v777 = vadd.f32 %v593, %v776
      %v778 = vpop.f32.mrb[0].mxu0
      %779 = vmatprep.mubr.bf16.mxu0 0
      %780 = vmatmul.mubr.bf16.gmra.mrb[0].mxu0 %v634
      %v781 = vpop.f32.mrb[0].mxu0
      %v782 = vadd.f32 %v593, %v781
      %v783 = vpop.f32.mrb[0].mxu0
      %v784 = vpop.f32.mrb[0].mxu0
      %v785 = vadd.f32 %v593, %v784
      %v786 = vpop.f32.mrb[0].mxu0
      %787 = vdwg.mxu0
      %788 = vst [vmem:[%s553] sm:$0xff] %v726
      %789 = vst [vmem:[%s553 + $0x8] sm:$0xff] %v729
      %790 = vst [vmem:[%s553 + $0x10] sm:$0xff] %v734
      %791 = vst [vmem:[%s553 + $0x18] sm:$0xff] %v737
      %792 = vst [vmem:[%s553 + $0x20] sm:$0xff] %v742
      %793 = vst [vmem:[%s553 + $0x28] sm:$0xff] %v745
      %794 = vst [vmem:[%s553 + $0x30] sm:$0xff] %v750
      %795 = vst [vmem:[%s553 + $0x38] sm:$0xff] %v753
      %796 = vst [vmem:[%s553 + $0x40] sm:$0xff] %v758
      %797 = vst [vmem:[%s553 + $0x48] sm:$0xff] %v761
      %798 = vst [vmem:[%s553 + $0x50] sm:$0xff] %v766
      %799 = vst [vmem:[%s553 + $0x58] sm:$0xff] %v769
      %800 = vst [vmem:[%s553 + $0x60] sm:$0xff] %v774
      %801 = vst [vmem:[%s553 + $0x68] sm:$0xff] %v777
      %802 = vst [vmem:[%s553 + $0x70] sm:$0xff] %v782
      %803 = vst [vmem:[%s553 + $0x78] sm:$0xff] %v785
      %v804 = vld [vmem:[%s3] sm:$0xf]
      %v805 = vld [vmem:[%s3 + $0x4] sm:$0xf]
      %v806 = vld [vmem:[%s3 + $0x8] sm:$0xf]
      %v807 = vld [vmem:[%s3 + $0xc] sm:$0xf]
      %v808 = vld [vmem:[%s3 + $0x10] sm:$0xf]
      %v809 = vld [vmem:[%s3 + $0x14] sm:$0xf]
      %v810 = vld [vmem:[%s3 + $0x18] sm:$0xf]
      %v811 = vld [vmem:[%s3 + $0x1c] sm:$0xf]
      %v812 = vld [vmem:[%s3 + $0x20] sm:$0xf]
      %v813 = vld [vmem:[%s3 + $0x24] sm:$0xf]
      %v814 = vld [vmem:[%s3 + $0x28] sm:$0xf]
      %v815 = vld [vmem:[%s3 + $0x2c] sm:$0xf]
      %v816 = vld [vmem:[%s3 + $0x30] sm:$0xf]
      %v817 = vld [vmem:[%s3 + $0x34] sm:$0xf]
      %v818 = vld [vmem:[%s3 + $0x38] sm:$0xf]
      %v819 = vld [vmem:[%s3 + $0x3c] sm:$0xf]
      %v820 = vld [vmem:[%s4] sm:$0x1]
      %v822 = vlaneseq
      %v823 = vshrl.u32 %v822, 7
      %v824 = vsub.s32 0, %v823
      %v825 = vrot.slane %v820, %v824
      %v843 = vunpack.c.l.b16 %v804
      %v844 = vunpack.c.l.b16 %v805
      %v845 = vunpack.c.l.b16 %v806
      %v846 = vunpack.c.l.b16 %v807
      %v847 = vunpack.c.l.b16 %v808
      %v848 = vunpack.c.l.b16 %v809
      %v849 = vunpack.c.l.b16 %v810
      %v850 = vunpack.c.l.b16 %v811
      %v851 = vunpack.c.l.b16 %v812
      %v852 = vunpack.c.l.b16 %v813
      %v853 = vunpack.c.l.b16 %v814
      %v854 = vunpack.c.l.b16 %v815
      %v855 = vunpack.c.l.b16 %v816
      %v856 = vunpack.c.l.b16 %v817
      %v857 = vunpack.c.l.b16 %v818
      %v858 = vunpack.c.l.b16 %v819
      %v859 = vpack.c.b16 %v844, %v843
      %v860 = vpack.c.b16 %v846, %v845
      %v861 = vpack.c.b16 %v848, %v847
      %v862 = vpack.c.b16 %v850, %v849
      %v863 = vpack.c.b16 %v852, %v851
      %v864 = vpack.c.b16 %v854, %v853
      %v865 = vpack.c.b16 %v856, %v855
      %v866 = vpack.c.b16 %v858, %v857
      %875 = vmatprep.subr.bf16.mxu0 0
      %876 = vmatpush1.bf16.msra.mxu0 %v859
      %877 = vmatprep.subr.bf16.mxu0 0
      %878 = vmatpush1.bf16.msra.mxu0 %v860
      %879 = vmatprep.subr.bf16.mxu0 0
      %880 = vmatpush1.bf16.msra.mxu0 %v861
      %881 = vmatprep.subr.bf16.mxu0 0
      %882 = vmatpush1.bf16.msra.mxu0 %v862
      %883 = vmatprep.subr.bf16.mxu0 0
      %884 = vmatpush1.bf16.msra.mxu0 %v863
      %885 = vmatprep.subr.bf16.mxu0 0
      %886 = vmatpush1.bf16.msra.mxu0 %v864
      %887 = vmatprep.subr.bf16.mxu0 0
      %888 = vmatpush1.bf16.msra.mxu0 %v865
      %889 = vmatprep.subr.bf16.mxu0 0
      %890 = vmatpush1.bf16.msra.mxu0 %v866
      %891 = vmatprep.subr.bf16.mxu0 0
      %892 = vmatpush1.bf16.msra.mxu0 0
      %893 = vmatprep.subr.bf16.mxu0 0
      %894 = vmatpush1.bf16.msra.mxu0 0
      %895 = vmatprep.subr.bf16.mxu0 0
      %896 = vmatpush1.bf16.msra.mxu0 0
      %897 = vmatprep.subr.bf16.mxu0 0
      %898 = vmatpush1.bf16.msra.mxu0 0
      %899 = vmatprep.subr.bf16.mxu0 0
      %900 = vmatpush1.bf16.msra.mxu0 0
      %901 = vmatprep.subr.bf16.mxu0 0
      %902 = vmatpush1.bf16.msra.mxu0 0
      %903 = vmatprep.subr.bf16.mxu0 0
      %904 = vmatpush1.bf16.msra.mxu0 0
      %905 = vmatprep.subr.bf16.mxu0 0
      %906 = vmatpush1.bf16.msra.mxu0 0
      %907 = vmatprep.mubr.bf16.mxu0 0
      %908 = vmatmul.mubr.bf16.gmra.mrb[0].mxu0 %v627
      %v909 = vpop.f32.mrb[0].mxu0
      %v910 = vadd.f32 %v825, %v909
      %v911 = vpop.f32.mrb[0].mxu0
      %v912 = vpop.f32.mrb[0].mxu0
      %v913 = vadd.f32 %v825, %v912
      %v914 = vpop.f32.mrb[0].mxu0
      %915 = vmatprep.mubr.bf16.mxu0 0
      %916 = vmatmul.mubr.bf16.gmra.mrb[0].mxu0 %v628
      %v917 = vpop.f32.mrb[0].mxu0
      %v918 = vadd.f32 %v825, %v917
      %v919 = vpop.f32.mrb[0].mxu0
      %v920 = vpop.f32.mrb[0].mxu0
      %v921 = vadd.f32 %v825, %v920
      %v922 = vpop.f32.mrb[0].mxu0
      %923 = vmatprep.mubr.bf16.mxu0 0
      %924 = vmatmul.mubr.bf16.gmra.mrb[0].mxu0 %v629
      %v925 = vpop.f32.mrb[0].mxu0
      %v926 = vadd.f32 %v825, %v925
      %v927 = vpop.f32.mrb[0].mxu0
      %v928 = vpop.f32.mrb[0].mxu0
      %v929 = vadd.f32 %v825, %v928
      %v930 = vpop.f32.mrb[0].mxu0
      %931 = vmatprep.mubr.bf16.mxu0 0
      %932 = vmatmul.mubr.bf16.gmra.mrb[0].mxu0 %v630
      %v933 = vpop.f32.mrb[0].mxu0
      %v934 = vadd.f32 %v825, %v933
      %v935 = vpop.f32.mrb[0].mxu0
      %v936 = vpop.f32.mrb[0].mxu0
      %v937 = vadd.f32 %v825, %v936
      %v938 = vpop.f32.mrb[0].mxu0
      %939 = vmatprep.mubr.bf16.mxu0 0
      %940 = vmatmul.mubr.bf16.gmra.mrb[0].mxu0 %v631
      %v941 = vpop.f32.mrb[0].mxu0
      %v942 = vadd.f32 %v825, %v941
      %v943 = vpop.f32.mrb[0].mxu0
      %v944 = vpop.f32.mrb[0].mxu0
      %v945 = vadd.f32 %v825, %v944
      %v946 = vpop.f32.mrb[0].mxu0
      %947 = vmatprep.mubr.bf16.mxu0 0
      %948 = vmatmul.mubr.bf16.gmra.mrb[0].mxu0 %v632
      %v949 = vpop.f32.mrb[0].mxu0
      %v950 = vadd.f32 %v825, %v949
      %v951 = vpop.f32.mrb[0].mxu0
      %v952 = vpop.f32.mrb[0].mxu0
      %v953 = vadd.f32 %v825, %v952
      %v954 = vpop.f32.mrb[0].mxu0
      %955 = vmatprep.mubr.bf16.mxu0 0
      %956 = vmatmul.mubr.bf16.gmra.mrb[0].mxu0 %v633
      %v957 = vpop.f32.mrb[0].mxu0
      %v958 = vadd.f32 %v825, %v957
      %v959 = vpop.f32.mrb[0].mxu0
      %v960 = vpop.f32.mrb[0].mxu0
      %v961 = vadd.f32 %v825, %v960
      %v962 = vpop.f32.mrb[0].mxu0
      %963 = vmatprep.mubr.bf16.mxu0 0
      %964 = vmatmul.mubr.bf16.gmra.mrb[0].mxu0 %v634
      %v965 = vpop.f32.mrb[0].mxu0
      %v966 = vadd.f32 %v825, %v965
      %v967 = vpop.f32.mrb[0].mxu0
      %v968 = vpop.f32.mrb[0].mxu0
      %v969 = vadd.f32 %v825, %v968
      %v970 = vpop.f32.mrb[0].mxu0
      %971 = vdwg.mxu0
      %v972 = vmax.f32 %v910, 0.0
      %v973 = vmax.f32 %v913, 0.0
      %v974 = vmax.f32 %v918, 0.0
      %v975 = vmax.f32 %v921, 0.0
      %v976 = vmax.f32 %v926, 0.0
      %v977 = vmax.f32 %v929, 0.0
      %v978 = vmax.f32 %v934, 0.0
      %v979 = vmax.f32 %v937, 0.0
      %v980 = vmax.f32 %v942, 0.0
      %v981 = vmax.f32 %v945, 0.0
      %v982 = vmax.f32 %v950, 0.0
      %v983 = vmax.f32 %v953, 0.0
      %v984 = vmax.f32 %v958, 0.0
      %v985 = vmax.f32 %v961, 0.0
      %v986 = vmax.f32 %v966, 0.0
      %v987 = vmax.f32 %v969, 0.0
      %v988 = vld [vmem:[%s522] sm:$0xf]
      %v989 = vld [vmem:[%s522 + $0x4] sm:$0xf]
      %v992 = vunpack.c.l.b16 %v988
      %v993 = vunpack.c.l.b16 %v989
      %v994 = vpack.c.b16 %v993, %v992
      %996 = vmatprep.subr.bf16.mxu0 0
      %997 = vmatpush1.bf16.msra.mxu0 %v859
      %998 = vmatprep.subr.bf16.mxu0 0
      %999 = vmatpush1.bf16.msra.mxu0 %v860
      %1000 = vmatprep.subr.bf16.mxu0 0
      %1001 = vmatpush1.bf16.msra.mxu0 %v861
      %1002 = vmatprep.subr.bf16.mxu0 0
      %1003 = vmatpush1.bf16.msra.mxu0 %v862
      %1004 = vmatprep.subr.bf16.mxu0 0
      %1005 = vmatpush1.bf16.msra.mxu0 %v863
      %1006 = vmatprep.subr.bf16.mxu0 0
      %1007 = vmatpush1.bf16.msra.mxu0 %v864
      %1008 = vmatprep.subr.bf16.mxu0 0
      %1009 = vmatpush1.bf16.msra.mxu0 %v865
      %1010 = vmatprep.subr.bf16.mxu0 0
      %1011 = vmatpush1.bf16.msra.mxu0 %v866
      %1012 = vmatprep.subr.bf16.mxu0 0
      %1013 = vmatpush1.bf16.msra.mxu0 0
      %1014 = vmatprep.subr.bf16.mxu0 0
      %1015 = vmatpush1.bf16.msra.mxu0 0
      %1016 = vmatprep.subr.bf16.mxu0 0
      %1017 = vmatpush1.bf16.msra.mxu0 0
      %1018 = vmatprep.subr.bf16.mxu0 0
      %1019 = vmatpush1.bf16.msra.mxu0 0
      %1020 = vmatprep.subr.bf16.mxu0 0
      %1021 = vmatpush1.bf16.msra.mxu0 0
      %1022 = vmatprep.subr.bf16.mxu0 0
      %1023 = vmatpush1.bf16.msra.mxu0 0
      %1024 = vmatprep.subr.bf16.mxu0 0
      %1025 = vmatpush1.bf16.msra.mxu0 0
      %1026 = vmatprep.subr.bf16.mxu0 0
      %1027 = vmatpush1.bf16.msra.mxu0 0
      %1028 = vmatprep.mubr.bf16.mxu0 0
      %1029 = vmatmul.mubr.bf16.gmra.mrb[0].mxu0 %v994
      %v1030 = vpop.f32.mrb[0].mxu0
      %v1031 = vadd.f32 %v825, %v1030
      %v1032 = vpop.f32.mrb[0].mxu0
      %v1033 = vpop.f32.mrb[0].mxu0
      %v1034 = vadd.f32 %v825, %v1033
      %v1035 = vpop.f32.mrb[0].mxu0
      %1036 = vdwg.mxu0
      %v1037 = vmax.f32 %v1031, 0.0
      %v1038 = vmax.f32 %v1034, 0.0
      %v1039 = vld [vmem:[%s539] sm:$0xf]
      %v1040 = vld [vmem:[%s539 + $0x4] sm:$0xf]
      %v1043 = vunpack.c.l.b16 %v1039
      %v1044 = vunpack.c.l.b16 %v1040
      %v1045 = vpack.c.b16 %v1044, %v1043
      %1047 = vmatprep.subr.bf16.mxu0 0
      %1048 = vmatpush1.bf16.msra.mxu0 %v859
      %1049 = vmatprep.subr.bf16.mxu0 0
      %1050 = vmatpush1.bf16.msra.mxu0 %v860
      %1051 = vmatprep.subr.bf16.mxu0 0
      %1052 = vmatpush1.bf16.msra.mxu0 %v861
      %1053 = vmatprep.subr.bf16.mxu0 0
      %1054 = vmatpush1.bf16.msra.mxu0 %v862
      %1055 = vmatprep.subr.bf16.mxu0 0
      %1056 = vmatpush1.bf16.msra.mxu0 %v863
      %1057 = vmatprep.subr.bf16.mxu0 0
      %1058 = vmatpush1.bf16.msra.mxu0 %v864
      %1059 = vmatprep.subr.bf16.mxu0 0
      %1060 = vmatpush1.bf16.msra.mxu0 %v865
      %1061 = vmatprep.subr.bf16.mxu0 0
      %1062 = vmatpush1.bf16.msra.mxu0 %v866
      %1063 = vmatprep.subr.bf16.mxu0 0
      %1064 = vmatpush1.bf16.msra.mxu0 0
      %1065 = vmatprep.subr.bf16.mxu0 0
      %1066 = vmatpush1.bf16.msra.mxu0 0
      %1067 = vmatprep.subr.bf16.mxu0 0
      %1068 = vmatpush1.bf16.msra.mxu0 0
      %1069 = vmatprep.subr.bf16.mxu0 0
      %1070 = vmatpush1.bf16.msra.mxu0 0
      %1071 = vmatprep.subr.bf16.mxu0 0
      %1072 = vmatpush1.bf16.msra.mxu0 0
      %1073 = vmatprep.subr.bf16.mxu0 0
      %1074 = vmatpush1.bf16.msra.mxu0 0
      %1075 = vmatprep.subr.bf16.mxu0 0
      %1076 = vmatpush1.bf16.msra.mxu0 0
      %1077 = vmatprep.subr.bf16.mxu0 0
      %1078 = vmatpush1.bf16.msra.mxu0 0
      %1079 = vmatprep.mubr.bf16.mxu0 0
      %1080 = vmatmul.mubr.bf16.gmra.mrb[0].mxu0 %v1045
      %v1081 = vpop.f32.mrb[0].mxu0
      %v1082 = vadd.f32 %v825, %v1081
      %v1083 = vpop.f32.mrb[0].mxu0
      %v1084 = vpop.f32.mrb[0].mxu0
      %v1085 = vadd.f32 %v825, %v1084
      %v1086 = vpop.f32.mrb[0].mxu0
      %1087 = vdwg.mxu0
      %v1088 = vmax.f32 %v1082, 0.0
      %v1089 = vmax.f32 %v1085, 0.0
      %1090 = vst [vmem:[#allocation2] sm:$0x1] 0.0
      %1091 = vst [vmem:[#allocation2 + $0x18] sm:$0x1] 0.0
      %1092 = vst [vmem:[#allocation2 + $0x30] sm:$0x1] 0.0
      %1093 = vst [vmem:[#allocation2 + $0x48] sm:$0x1] 0.0
      %1094 = vst [vmem:[#allocation2 + $0x60] sm:$0x1] 0.0
      %1095 = vst [vmem:[#allocation2 + $0x78] sm:$0x1] 0.0
      %1096 = vst [vmem:[#allocation2 + $0x90] sm:$0x1] 0.0
      %1097 = vst [vmem:[#allocation2 + $0xa8] sm:$0x1] 0.0
      %1098 = vst [vmem:[#allocation2 + $0xc0] sm:$0x1] 0.0
      %1099 = vst [vmem:[#allocation2 + $0xd8] sm:$0x1] 0.0
      %1100 = vst [vmem:[#allocation2 + $0x11] sm:$0x1] 0.0
      %1101 = vst [vmem:[#allocation2 + $0x29] sm:$0x1] 0.0
      %1102 = vst [vmem:[#allocation2 + $0x41] sm:$0x1] 0.0
      %1103 = vst [vmem:[#allocation2 + $0x59] sm:$0x1] 0.0
      %1104 = vst [vmem:[#allocation2 + $0x71] sm:$0x1] 0.0
      %1105 = vst [vmem:[#allocation2 + $0x89] sm:$0x1] 0.0
      %1106 = vst [vmem:[#allocation2 + $0xa1] sm:$0x1] 0.0
      %1107 = vst [vmem:[#allocation2 + $0xb9] sm:$0x1] 0.0
      %1108 = vst [vmem:[#allocation2 + $0xd1] sm:$0x1] 0.0
      %1109 = vst [vmem:[#allocation2 + $0xe9] sm:$0x1] 0.0
      %s1110 = scalar_lea.vmem [#allocation2], 24
      %1111 = vst [vmem:[%s1110 + $0x1] sm:$0xff] %v972
      %1112 = vst [vmem:[%s1110 + $0x9] sm:$0xff] %v973
      %1113 = vst [vmem:[%s1110 + $0x19] sm:$0xff] %v974
      %1114 = vst [vmem:[%s1110 + $0x21] sm:$0xff] %v975
      %1115 = vst [vmem:[%s1110 + $0x31] sm:$0xff] %v976
      %1116 = vst [vmem:[%s1110 + $0x39] sm:$0xff] %v977
      %1117 = vst [vmem:[%s1110 + $0x49] sm:$0xff] %v978
      %1118 = vst [vmem:[%s1110 + $0x51] sm:$0xff] %v979
      %1119 = vst [vmem:[%s1110 + $0x61] sm:$0xff] %v980
      %1120 = vst [vmem:[%s1110 + $0x69] sm:$0xff] %v981
      %1121 = vst [vmem:[%s1110 + $0x79] sm:$0xff] %v982
      %1122 = vst [vmem:[%s1110 + $0x81] sm:$0xff] %v983
      %1123 = vst [vmem:[%s1110 + $0x91] sm:$0xff] %v984
      %1124 = vst [vmem:[%s1110 + $0x99] sm:$0xff] %v985
      %1125 = vst [vmem:[%s1110 + $0xa9] sm:$0xff] %v986
      %1126 = vst [vmem:[%s1110 + $0xb1] sm:$0xff] %v987
      %1127 = vst [vmem:[#allocation2 + $0x1] sm:$0xff] %v1037
      %1128 = vst [vmem:[#allocation2 + $0x9] sm:$0xff] %v1038
      %s1129 = scalar_lea.vmem [#allocation2], 216
      %1130 = vst [vmem:[%s1129 + $0x1] sm:$0xff] %v1088
      %1131 = vst [vmem:[%s1129 + $0x9] sm:$0xff] %v1089
      %p1132 = scmp.eq.s32.totalorder %s27, 0
      // Predicated region
      $region65: #{bottleneck_forward.1} parent=63 // pred_check
        %p1133 = pneg %p1132
      $region66: #{bottleneck_forward.1} parent=63 // pred_check_branch
        %1135 = sbr.rel (%p1133) target = $region68
      $region67: #{bottleneck_forward.1} parent=63 // pred_region
        %1136 = vst [vmem:[#allocation2 + $0x1] sm:$0xff] 0.0
        %1137 = vst [vmem:[#allocation2 + $0x9] sm:$0xff] 0.0
      $region68: #{bottleneck_forward.1} parent=63 // pred_fallthru
        _
      %p1138 = scmp.eq.s32.totalorder %s27, 1
      // Predicated region
      $region69: #{bottleneck_forward.1} parent=63 // pred_check
        %p1139 = pneg %p1138
      $region70: #{bottleneck_forward.1} parent=63 // pred_check_branch
        %1141 = sbr.rel (%p1139) target = $region72
      $region71: #{bottleneck_forward.1} parent=63 // pred_region
        %1142 = vst [vmem:[%s1129 + $0x1] sm:$0xff] 0.0
        %1143 = vst [vmem:[%s1129 + $0x9] sm:$0xff] 0.0
      $region72: #{bottleneck_forward.1} parent=63 // pred_fallthru
        _
      %v1144 = vld [vmem:[#allocation2] sm:$0xff]
      %v1145 = vld [vmem:[#allocation2 + $0x8] sm:$0xff]
      %v1146 = vld [vmem:[#allocation2 + $0x18] sm:$0xff]
      %v1147 = vld [vmem:[#allocation2 + $0x20] sm:$0xff]
      %v1148 = vld [vmem:[#allocation2 + $0x30] sm:$0xff]
      %v1149 = vld [vmem:[#allocation2 + $0x38] sm:$0xff]
      %v1150 = vld [vmem:[#allocation2 + $0x48] sm:$0xff]
      %v1151 = vld [vmem:[#allocation2 + $0x50] sm:$0xff]
      %v1152 = vld [vmem:[#allocation2 + $0x60] sm:$0xff]
      %v1153 = vld [vmem:[#allocation2 + $0x68] sm:$0xff]
      %v1154 = vld [vmem:[#allocation2 + $0x78] sm:$0xff]
      %v1155 = vld [vmem:[#allocation2 + $0x80] sm:$0xff]
      %v1156 = vld [vmem:[#allocation2 + $0x90] sm:$0xff]
      %v1157 = vld [vmem:[#allocation2 + $0x98] sm:$0xff]
      %v1158 = vld [vmem:[#allocation2 + $0xa8] sm:$0xff]
      %v1159 = vld [vmem:[#allocation2 + $0xb0] sm:$0xff]
      %v1160 = vpack.c.bf16 %v1145, %v1144
      %v1161 = vpack.c.bf16 %v1147, %v1146
      %v1162 = vpack.c.bf16 %v1149, %v1148
      %v1163 = vpack.c.bf16 %v1151, %v1150
      %v1164 = vpack.c.bf16 %v1153, %v1152
      %v1165 = vpack.c.bf16 %v1155, %v1154
      %v1166 = vpack.c.bf16 %v1157, %v1156
      %v1167 = vpack.c.bf16 %v1159, %v1158
      %v1168 = vld [vmem:[%s5] sm:$0xf]
      %v1169 = vld [vmem:[%s5 + $0x4] sm:$0xf]
      %v1170 = vld [vmem:[%s5 + $0x8] sm:$0xf]
      %v1171 = vld [vmem:[%s5 + $0xc] sm:$0xf]
      %v1172 = vld [vmem:[%s5 + $0x10] sm:$0xf]
      %v1173 = vld [vmem:[%s5 + $0x14] sm:$0xf]
      %v1174 = vld [vmem:[%s5 + $0x18] sm:$0xf]
      %v1175 = vld [vmem:[%s5 + $0x1c] sm:$0xf]
      %v1176 = vld [vmem:[%s5 + $0x20] sm:$0xf]
      %v1177 = vld [vmem:[%s5 + $0x24] sm:$0xf]
      %v1178 = vld [vmem:[%s5 + $0x28] sm:$0xf]
      %v1179 = vld [vmem:[%s5 + $0x2c] sm:$0xf]
      %v1180 = vld [vmem:[%s5 + $0x30] sm:$0xf]
      %v1181 = vld [vmem:[%s5 + $0x34] sm:$0xf]
      %v1182 = vld [vmem:[%s5 + $0x38] sm:$0xf]
      %v1183 = vld [vmem:[%s5 + $0x3c] sm:$0xf]
      %v1184 = vld [vmem:[#allocation2 + $0x1] sm:$0xff]
      %v1185 = vld [vmem:[#allocation2 + $0x9] sm:$0xff]
      %v1186 = vld [vmem:[#allocation2 + $0x19] sm:$0xff]
      %v1187 = vld [vmem:[#allocation2 + $0x21] sm:$0xff]
      %v1188 = vld [vmem:[#allocation2 + $0x31] sm:$0xff]
      %v1189 = vld [vmem:[#allocation2 + $0x39] sm:$0xff]
      %v1190 = vld [vmem:[#allocation2 + $0x49] sm:$0xff]
      %v1191 = vld [vmem:[#allocation2 + $0x51] sm:$0xff]
      %v1192 = vld [vmem:[#allocation2 + $0x61] sm:$0xff]
      %v1193 = vld [vmem:[#allocation2 + $0x69] sm:$0xff]
      %v1194 = vld [vmem:[#allocation2 + $0x79] sm:$0xff]
      %v1195 = vld [vmem:[#allocation2 + $0x81] sm:$0xff]
      %v1196 = vld [vmem:[#allocation2 + $0x91] sm:$0xff]
      %v1197 = vld [vmem:[#allocation2 + $0x99] sm:$0xff]
      %v1198 = vld [vmem:[#allocation2 + $0xa9] sm:$0xff]
      %v1199 = vld [vmem:[#allocation2 + $0xb1] sm:$0xff]
      %v1200 = vpack.c.bf16 %v1185, %v1184
      %v1201 = vpack.c.bf16 %v1187, %v1186
      %v1202 = vpack.c.bf16 %v1189, %v1188
      %v1203 = vpack.c.bf16 %v1191, %v1190
      %v1204 = vpack.c.bf16 %v1193, %v1192
      %v1205 = vpack.c.bf16 %v1195, %v1194
      %v1206 = vpack.c.bf16 %v1197, %v1196
      %v1207 = vpack.c.bf16 %v1199, %v1198
      %s1208 = scalar_lea.vmem %s5, 64
      %v1209 = vld [vmem:[%s1208] sm:$0xf]
      %v1210 = vld [vmem:[%s1208 + $0x4] sm:$0xf]
      %v1211 = vld [vmem:[%s1208 + $0x8] sm:$0xf]
      %v1212 = vld [vmem:[%s1208 + $0xc] sm:$0xf]
      %v1213 = vld [vmem:[%s1208 + $0x10] sm:$0xf]
      %v1214 = vld [vmem:[%s1208 + $0x14] sm:$0xf]
      %v1215 = vld [vmem:[%s1208 + $0x18] sm:$0xf]
      %v1216 = vld [vmem:[%s1208 + $0x1c] sm:$0xf]
      %v1217 = vld [vmem:[%s1208 + $0x20] sm:$0xf]
      %v1218 = vld [vmem:[%s1208 + $0x24] sm:$0xf]
      %v1219 = vld [vmem:[%s1208 + $0x28] sm:$0xf]
      %v1220 = vld [vmem:[%s1208 + $0x2c] sm:$0xf]
      %v1221 = vld [vmem:[%s1208 + $0x30] sm:$0xf]
      %v1222 = vld [vmem:[%s1208 + $0x34] sm:$0xf]
      %v1223 = vld [vmem:[%s1208 + $0x38] sm:$0xf]
      %v1224 = vld [vmem:[%s1208 + $0x3c] sm:$0xf]
      %v1241 = vunpack.c.l.b16 %v1209
      %v1242 = vunpack.c.l.b16 %v1210
      %v1243 = vunpack.c.l.b16 %v1211
      %v1244 = vunpack.c.l.b16 %v1212
      %v1245 = vunpack.c.l.b16 %v1213
      %v1246 = vunpack.c.l.b16 %v1214
      %v1247 = vunpack.c.l.b16 %v1215
      %v1248 = vunpack.c.l.b16 %v1216
      %v1249 = vunpack.c.l.b16 %v1217
      %v1250 = vunpack.c.l.b16 %v1218
      %v1251 = vunpack.c.l.b16 %v1219
      %v1252 = vunpack.c.l.b16 %v1220
      %v1253 = vunpack.c.l.b16 %v1221
      %v1254 = vunpack.c.l.b16 %v1222
      %v1255 = vunpack.c.l.b16 %v1223
      %v1256 = vunpack.c.l.b16 %v1224
      %v1257 = vpack.c.b16 %v1242, %v1241
      %v1258 = vpack.c.b16 %v1244, %v1243
      %v1259 = vpack.c.b16 %v1246, %v1245
      %v1260 = vpack.c.b16 %v1248, %v1247
      %v1261 = vpack.c.b16 %v1250, %v1249
      %v1262 = vpack.c.b16 %v1252, %v1251
      %v1263 = vpack.c.b16 %v1254, %v1253
      %v1264 = vpack.c.b16 %v1256, %v1255
      %1273 = vmatprep.subr.bf16.mxu0 0
      %1274 = vmatpush1.bf16.msra.mxu0 %v1257
      %1275 = vmatprep.subr.bf16.mxu0 0
      %1276 = vmatpush1.bf16.msra.mxu0 %v1258
      %1277 = vmatprep.subr.bf16.mxu0 0
      %1278 = vmatpush1.bf16.msra.mxu0 %v1259
      %1279 = vmatprep.subr.bf16.mxu0 0
      %1280 = vmatpush1.bf16.msra.mxu0 %v1260
      %1281 = vmatprep.subr.bf16.mxu0 0
      %1282 = vmatpush1.bf16.msra.mxu0 %v1261
      %1283 = vmatprep.subr.bf16.mxu0 0
      %1284 = vmatpush1.bf16.msra.mxu0 %v1262
      %1285 = vmatprep.subr.bf16.mxu0 0
      %1286 = vmatpush1.bf16.msra.mxu0 %v1263
      %1287 = vmatprep.subr.bf16.mxu0 0
      %1288 = vmatpush1.bf16.msra.mxu0 %v1264
      %1289 = vmatprep.subr.bf16.mxu0 0
      %1290 = vmatpush1.bf16.msra.mxu0 0
      %1291 = vmatprep.subr.bf16.mxu0 0
      %1292 = vmatpush1.bf16.msra.mxu0 0
      %1293 = vmatprep.subr.bf16.mxu0 0
      %1294 = vmatpush1.bf16.msra.mxu0 0
      %1295 = vmatprep.subr.bf16.mxu0 0
      %1296 = vmatpush1.bf16.msra.mxu0 0
      %1297 = vmatprep.subr.bf16.mxu0 0
      %1298 = vmatpush1.bf16.msra.mxu0 0
      %1299 = vmatprep.subr.bf16.mxu0 0
      %1300 = vmatpush1.bf16.msra.mxu0 0
      %1301 = vmatprep.subr.bf16.mxu0 0
      %1302 = vmatpush1.bf16.msra.mxu0 0
      %1303 = vmatprep.subr.bf16.mxu0 0
      %1304 = vmatpush1.bf16.msra.mxu0 0
      %1305 = vmatprep.mubr.bf16.mxu0 0
      %1306 = vmatmul.mubr.bf16.gmra.mrb[0].mxu0 %v1200
      %v1307 = vpop.f32.mrb[0].mxu0
      %v1308 = vadd.f32 0.0, %v1307
      %v1309 = vpop.f32.mrb[0].mxu0
      %v1310 = vpop.f32.mrb[0].mxu0
      %v1311 = vadd.f32 0.0, %v1310
      %v1312 = vpop.f32.mrb[0].mxu0
      %1313 = vmatprep.mubr.bf16.mxu0 0
      %1314 = vmatmul.mubr.bf16.gmra.mrb[0].mxu0 %v1201
      %v1315 = vpop.f32.mrb[0].mxu0
      %v1316 = vadd.f32 0.0, %v1315
      %v1317 = vpop.f32.mrb[0].mxu0
      %v1318 = vpop.f32.mrb[0].mxu0
      %v1319 = vadd.f32 0.0, %v1318
      %v1320 = vpop.f32.mrb[0].mxu0
      %1321 = vmatprep.mubr.bf16.mxu0 0
      %1322 = vmatmul.mubr.bf16.gmra.mrb[0].mxu0 %v1202
      %v1323 = vpop.f32.mrb[0].mxu0
      %v1324 = vadd.f32 0.0, %v1323
      %v1325 = vpop.f32.mrb[0].mxu0
      %v1326 = vpop.f32.mrb[0].mxu0
      %v1327 = vadd.f32 0.0, %v1326
      %v1328 = vpop.f32.mrb[0].mxu0
      %1329 = vmatprep.mubr.bf16.mxu0 0
      %1330 = vmatmul.mubr.bf16.gmra.mrb[0].mxu0 %v1203
      %v1331 = vpop.f32.mrb[0].mxu0
      %v1332 = vadd.f32 0.0, %v1331
      %v1333 = vpop.f32.mrb[0].mxu0
      %v1334 = vpop.f32.mrb[0].mxu0
      %v1335 = vadd.f32 0.0, %v1334
      %v1336 = vpop.f32.mrb[0].mxu0
      %1337 = vmatprep.mubr.bf16.mxu0 0
      %1338 = vmatmul.mubr.bf16.gmra.mrb[0].mxu0 %v1204
      %v1339 = vpop.f32.mrb[0].mxu0
      %v1340 = vadd.f32 0.0, %v1339
      %v1341 = vpop.f32.mrb[0].mxu0
      %v1342 = vpop.f32.mrb[0].mxu0
      %v1343 = vadd.f32 0.0, %v1342
      %v1344 = vpop.f32.mrb[0].mxu0
      %1345 = vmatprep.mubr.bf16.mxu0 0
      %1346 = vmatmul.mubr.bf16.gmra.mrb[0].mxu0 %v1205
      %v1347 = vpop.f32.mrb[0].mxu0
      %v1348 = vadd.f32 0.0, %v1347
      %v1349 = vpop.f32.mrb[0].mxu0
      %v1350 = vpop.f32.mrb[0].mxu0
      %v1351 = vadd.f32 0.0, %v1350
      %v1352 = vpop.f32.mrb[0].mxu0
      %1353 = vmatprep.mubr.bf16.mxu0 0
      %1354 = vmatmul.mubr.bf16.gmra.mrb[0].mxu0 %v1206
      %v1355 = vpop.f32.mrb[0].mxu0
      %v1356 = vadd.f32 0.0, %v1355
      %v1357 = vpop.f32.mrb[0].mxu0
      %v1358 = vpop.f32.mrb[0].mxu0
      %v1359 = vadd.f32 0.0, %v1358
      %v1360 = vpop.f32.mrb[0].mxu0
      %1361 = vmatprep.mubr.bf16.mxu0 0
      %1362 = vmatmul.mubr.bf16.gmra.mrb[0].mxu0 %v1207
      %v1363 = vpop.f32.mrb[0].mxu0
      %v1364 = vadd.f32 0.0, %v1363
      %v1365 = vpop.f32.mrb[0].mxu0
      %v1366 = vpop.f32.mrb[0].mxu0
      %v1367 = vadd.f32 0.0, %v1366
      %v1368 = vpop.f32.mrb[0].mxu0
      %1369 = vdwg.mxu0
      %v1386 = vunpack.c.l.b16 %v1168
      %v1387 = vunpack.c.l.b16 %v1169
      %v1388 = vunpack.c.l.b16 %v1170
      %v1389 = vunpack.c.l.b16 %v1171
      %v1390 = vunpack.c.l.b16 %v1172
      %v1391 = vunpack.c.l.b16 %v1173
      %v1392 = vunpack.c.l.b16 %v1174
      %v1393 = vunpack.c.l.b16 %v1175
      %v1394 = vunpack.c.l.b16 %v1176
      %v1395 = vunpack.c.l.b16 %v1177
      %v1396 = vunpack.c.l.b16 %v1178
      %v1397 = vunpack.c.l.b16 %v1179
      %v1398 = vunpack.c.l.b16 %v1180
      %v1399 = vunpack.c.l.b16 %v1181
      %v1400 = vunpack.c.l.b16 %v1182
      %v1401 = vunpack.c.l.b16 %v1183
      %v1402 = vpack.c.b16 %v1387, %v1386
      %v1403 = vpack.c.b16 %v1389, %v1388
      %v1404 = vpack.c.b16 %v1391, %v1390
      %v1405 = vpack.c.b16 %v1393, %v1392
      %v1406 = vpack.c.b16 %v1395, %v1394
      %v1407 = vpack.c.b16 %v1397, %v1396
      %v1408 = vpack.c.b16 %v1399, %v1398
      %v1409 = vpack.c.b16 %v1401, %v1400
      %1418 = vmatprep.subr.bf16.mxu0 0
      %1419 = vmatpush1.bf16.msra.mxu0 %v1402
      %1420 = vmatprep.subr.bf16.mxu0 0
      %1421 = vmatpush1.bf16.msra.mxu0 %v1403
      %1422 = vmatprep.subr.bf16.mxu0 0
      %1423 = vmatpush1.bf16.msra.mxu0 %v1404
      %1424 = vmatprep.subr.bf16.mxu0 0
      %1425 = vmatpush1.bf16.msra.mxu0 %v1405
      %1426 = vmatprep.subr.bf16.mxu0 0
      %1427 = vmatpush1.bf16.msra.mxu0 %v1406
      %1428 = vmatprep.subr.bf16.mxu0 0
      %1429 = vmatpush1.bf16.msra.mxu0 %v1407
      %1430 = vmatprep.subr.bf16.mxu0 0
      %1431 = vmatpush1.bf16.msra.mxu0 %v1408
      %1432 = vmatprep.subr.bf16.mxu0 0
      %1433 = vmatpush1.bf16.msra.mxu0 %v1409
      %1434 = vmatprep.subr.bf16.mxu0 0
      %1435 = vmatpush1.bf16.msra.mxu0 0
      %1436 = vmatprep.subr.bf16.mxu0 0
      %1437 = vmatpush1.bf16.msra.mxu0 0
      %1438 = vmatprep.subr.bf16.mxu0 0
      %1439 = vmatpush1.bf16.msra.mxu0 0
      %1440 = vmatprep.subr.bf16.mxu0 0
      %1441 = vmatpush1.bf16.msra.mxu0 0
      %1442 = vmatprep.subr.bf16.mxu0 0
      %1443 = vmatpush1.bf16.msra.mxu0 0
      %1444 = vmatprep.subr.bf16.mxu0 0
      %1445 = vmatpush1.bf16.msra.mxu0 0
      %1446 = vmatprep.subr.bf16.mxu0 0
      %1447 = vmatpush1.bf16.msra.mxu0 0
      %1448 = vmatprep.subr.bf16.mxu0 0
      %1449 = vmatpush1.bf16.msra.mxu0 0
      %1450 = vmatprep.mubr.bf16.mxu0 0
      %1451 = vmatmul.mubr.bf16.gmra.mrb[0].mxu0 %v1160
      %v1452 = vpop.f32.mrb[0].mxu0
      %v1453 = vadd.f32 %v1308, %v1452
      %v1454 = vpop.f32.mrb[0].mxu0
      %v1455 = vpop.f32.mrb[0].mxu0
      %v1456 = vadd.f32 %v1311, %v1455
      %v1457 = vpop.f32.mrb[0].mxu0
      %1458 = vmatprep.mubr.bf16.mxu0 0
      %1459 = vmatmul.mubr.bf16.gmra.mrb[0].mxu0 %v1161
      %v1460 = vpop.f32.mrb[0].mxu0
      %v1461 = vadd.f32 %v1316, %v1460
      %v1462 = vpop.f32.mrb[0].mxu0
      %v1463 = vpop.f32.mrb[0].mxu0
      %v1464 = vadd.f32 %v1319, %v1463
      %v1465 = vpop.f32.mrb[0].mxu0
      %1466 = vmatprep.mubr.bf16.mxu0 0
      %1467 = vmatmul.mubr.bf16.gmra.mrb[0].mxu0 %v1162
      %v1468 = vpop.f32.mrb[0].mxu0
      %v1469 = vadd.f32 %v1324, %v1468
      %v1470 = vpop.f32.mrb[0].mxu0
      %v1471 = vpop.f32.mrb[0].mxu0
      %v1472 = vadd.f32 %v1327, %v1471
      %v1473 = vpop.f32.mrb[0].mxu0
      %1474 = vmatprep.mubr.bf16.mxu0 0
      %1475 = vmatmul.mubr.bf16.gmra.mrb[0].mxu0 %v1163
      %v1476 = vpop.f32.mrb[0].mxu0
      %v1477 = vadd.f32 %v1332, %v1476
      %v1478 = vpop.f32.mrb[0].mxu0
      %v1479 = vpop.f32.mrb[0].mxu0
      %v1480 = vadd.f32 %v1335, %v1479
      %v1481 = vpop.f32.mrb[0].mxu0
      %1482 = vmatprep.mubr.bf16.mxu0 0
      %1483 = vmatmul.mubr.bf16.gmra.mrb[0].mxu0 %v1164
      %v1484 = vpop.f32.mrb[0].mxu0
      %v1485 = vadd.f32 %v1340, %v1484
      %v1486 = vpop.f32.mrb[0].mxu0
      %v1487 = vpop.f32.mrb[0].mxu0
      %v1488 = vadd.f32 %v1343, %v1487
      %v1489 = vpop.f32.mrb[0].mxu0
      %1490 = vmatprep.mubr.bf16.mxu0 0
      %1491 = vmatmul.mubr.bf16.gmra.mrb[0].mxu0 %v1165
      %v1492 = vpop.f32.mrb[0].mxu0
      %v1493 = vadd.f32 %v1348, %v1492
      %v1494 = vpop.f32.mrb[0].mxu0
      %v1495 = vpop.f32.mrb[0].mxu0
      %v1496 = vadd.f32 %v1351, %v1495
      %v1497 = vpop.f32.mrb[0].mxu0
      %1498 = vmatprep.mubr.bf16.mxu0 0
      %1499 = vmatmul.mubr.bf16.gmra.mrb[0].mxu0 %v1166
      %v1500 = vpop.f32.mrb[0].mxu0
      %v1501 = vadd.f32 %v1356, %v1500
      %v1502 = vpop.f32.mrb[0].mxu0
      %v1503 = vpop.f32.mrb[0].mxu0
      %v1504 = vadd.f32 %v1359, %v1503
      %v1505 = vpop.f32.mrb[0].mxu0
      %1506 = vmatprep.mubr.bf16.mxu0 0
      %1507 = vmatmul.mubr.bf16.gmra.mrb[0].mxu0 %v1167
      %v1508 = vpop.f32.mrb[0].mxu0
      %v1509 = vadd.f32 %v1364, %v1508
      %v1510 = vpop.f32.mrb[0].mxu0
      %v1511 = vpop.f32.mrb[0].mxu0
      %v1512 = vadd.f32 %v1367, %v1511
      %v1513 = vpop.f32.mrb[0].mxu0
      %1514 = vdwg.mxu0
      %v1515 = vld [vmem:[#allocation2 + $0x2] sm:$0xff]
      %v1516 = vld [vmem:[#allocation2 + $0xa] sm:$0xff]
      %v1517 = vld [vmem:[#allocation2 + $0x1a] sm:$0xff]
      %v1518 = vld [vmem:[#allocation2 + $0x22] sm:$0xff]
      %v1519 = vld [vmem:[#allocation2 + $0x32] sm:$0xff]
      %v1520 = vld [vmem:[#allocation2 + $0x3a] sm:$0xff]
      %v1521 = vld [vmem:[#allocation2 + $0x4a] sm:$0xff]
      %v1522 = vld [vmem:[#allocation2 + $0x52] sm:$0xff]
      %v1523 = vld [vmem:[#allocation2 + $0x62] sm:$0xff]
      %v1524 = vld [vmem:[#allocation2 + $0x6a] sm:$0xff]
      %v1525 = vld [vmem:[#allocation2 + $0x7a] sm:$0xff]
      %v1526 = vld [vmem:[#allocation2 + $0x82] sm:$0xff]
      %v1527 = vld [vmem:[#allocation2 + $0x92] sm:$0xff]
      %v1528 = vld [vmem:[#allocation2 + $0x9a] sm:$0xff]
      %v1529 = vld [vmem:[#allocation2 + $0xaa] sm:$0xff]
      %v1530 = vld [vmem:[#allocation2 + $0xb2] sm:$0xff]
      %v1531 = vpack.c.bf16 %v1516, %v1515
      %v1532 = vpack.c.bf16 %v1518, %v1517
      %v1533 = vpack.c.bf16 %v1520, %v1519
      %v1534 = vpack.c.bf16 %v1522, %v1521
      %v1535 = vpack.c.bf16 %v1524, %v1523
      %v1536 = vpack.c.bf16 %v1526, %v1525
      %v1537 = vpack.c.bf16 %v1528, %v1527
      %v1538 = vpack.c.bf16 %v1530, %v1529
      %s1539 = scalar_lea.vmem %s5, 128
      %v1540 = vld [vmem:[%s1539] sm:$0xf]
      %v1541 = vld [vmem:[%s1539 + $0x4] sm:$0xf]
      %v1542 = vld [vmem:[%s1539 + $0x8] sm:$0xf]
      %v1543 = vld [vmem:[%s1539 + $0xc] sm:$0xf]
      %v1544 = vld [vmem:[%s1539 + $0x10] sm:$0xf]
      %v1545 = vld [vmem:[%s1539 + $0x14] sm:$0xf]
      %v1546 = vld [vmem:[%s1539 + $0x18] sm:$0xf]
      %v1547 = vld [vmem:[%s1539 + $0x1c] sm:$0xf]
      %v1548 = vld [vmem:[%s1539 + $0x20] sm:$0xf]
      %v1549 = vld [vmem:[%s1539 + $0x24] sm:$0xf]
      %v1550 = vld [vmem:[%s1539 + $0x28] sm:$0xf]
      %v1551 = vld [vmem:[%s1539 + $0x2c] sm:$0xf]
      %v1552 = vld [vmem:[%s1539 + $0x30] sm:$0xf]
      %v1553 = vld [vmem:[%s1539 + $0x34] sm:$0xf]
      %v1554 = vld [vmem:[%s1539 + $0x38] sm:$0xf]
      %v1555 = vld [vmem:[%s1539 + $0x3c] sm:$0xf]
      %v1572 = vunpack.c.l.b16 %v1540
      %v1573 = vunpack.c.l.b16 %v1541
      %v1574 = vunpack.c.l.b16 %v1542
      %v1575 = vunpack.c.l.b16 %v1543
      %v1576 = vunpack.c.l.b16 %v1544
      %v1577 = vunpack.c.l.b16 %v1545
      %v1578 = vunpack.c.l.b16 %v1546
      %v1579 = vunpack.c.l.b16 %v1547
      %v1580 = vunpack.c.l.b16 %v1548
      %v1581 = vunpack.c.l.b16 %v1549
      %v1582 = vunpack.c.l.b16 %v1550
      %v1583 = vunpack.c.l.b16 %v1551
      %v1584 = vunpack.c.l.b16 %v1552
      %v1585 = vunpack.c.l.b16 %v1553
      %v1586 = vunpack.c.l.b16 %v1554
      %v1587 = vunpack.c.l.b16 %v1555
      %v1588 = vpack.c.b16 %v1573, %v1572
      %v1589 = vpack.c.b16 %v1575, %v1574
      %v1590 = vpack.c.b16 %v1577, %v1576
      %v1591 = vpack.c.b16 %v1579, %v1578
      %v1592 = vpack.c.b16 %v1581, %v1580
      %v1593 = vpack.c.b16 %v1583, %v1582
      %v1594 = vpack.c.b16 %v1585, %v1584
      %v1595 = vpack.c.b16 %v1587, %v1586
      %1604 = vmatprep.subr.bf16.mxu0 0
      %1605 = vmatpush1.bf16.msra.mxu0 %v1588
      %1606 = vmatprep.subr.bf16.mxu0 0
      %1607 = vmatpush1.bf16.msra.mxu0 %v1589
      %1608 = vmatprep.subr.bf16.mxu0 0
      %1609 = vmatpush1.bf16.msra.mxu0 %v1590
      %1610 = vmatprep.subr.bf16.mxu0 0
      %1611 = vmatpush1.bf16.msra.mxu0 %v1591
      %1612 = vmatprep.subr.bf16.mxu0 0
      %1613 = vmatpush1.bf16.msra.mxu0 %v1592
      %1614 = vmatprep.subr.bf16.mxu0 0
      %1615 = vmatpush1.bf16.msra.mxu0 %v1593
      %1616 = vmatprep.subr.bf16.mxu0 0
      %1617 = vmatpush1.bf16.msra.mxu0 %v1594
      %1618 = vmatprep.subr.bf16.mxu0 0
      %1619 = vmatpush1.bf16.msra.mxu0 %v1595
      %1620 = vmatprep.subr.bf16.mxu0 0
      %1621 = vmatpush1.bf16.msra.mxu0 0
      %1622 = vmatprep.subr.bf16.mxu0 0
      %1623 = vmatpush1.bf16.msra.mxu0 0
      %1624 = vmatprep.subr.bf16.mxu0 0
      %1625 = vmatpush1.bf16.msra.mxu0 0
      %1626 = vmatprep.subr.bf16.mxu0 0
      %1627 = vmatpush1.bf16.msra.mxu0 0
      %1628 = vmatprep.subr.bf16.mxu0 0
      %1629 = vmatpush1.bf16.msra.mxu0 0
      %1630 = vmatprep.subr.bf16.mxu0 0
      %1631 = vmatpush1.bf16.msra.mxu0 0
      %1632 = vmatprep.subr.bf16.mxu0 0
      %1633 = vmatpush1.bf16.msra.mxu0 0
      %1634 = vmatprep.subr.bf16.mxu0 0
      %1635 = vmatpush1.bf16.msra.mxu0 0
      %1636 = vmatprep.mubr.bf16.mxu0 0
      %1637 = vmatmul.mubr.bf16.gmra.mrb[0].mxu0 %v1531
      %v1638 = vpop.f32.mrb[0].mxu0
      %v1639 = vadd.f32 0.0, %v1638
      %v1640 = vpop.f32.mrb[0].mxu0
      %v1641 = vpop.f32.mrb[0].mxu0
      %v1642 = vadd.f32 0.0, %v1641
      %v1643 = vpop.f32.mrb[0].mxu0
      %1644 = vmatprep.mubr.bf16.mxu0 0
      %1645 = vmatmul.mubr.bf16.gmra.mrb[0].mxu0 %v1532
      %v1646 = vpop.f32.mrb[0].mxu0
      %v1647 = vadd.f32 0.0, %v1646
      %v1648 = vpop.f32.mrb[0].mxu0
      %v1649 = vpop.f32.mrb[0].mxu0
      %v1650 = vadd.f32 0.0, %v1649
      %v1651 = vpop.f32.mrb[0].mxu0
      %1652 = vmatprep.mubr.bf16.mxu0 0
      %1653 = vmatmul.mubr.bf16.gmra.mrb[0].mxu0 %v1533
      %v1654 = vpop.f32.mrb[0].mxu0
      %v1655 = vadd.f32 0.0, %v1654
      %v1656 = vpop.f32.mrb[0].mxu0
      %v1657 = vpop.f32.mrb[0].mxu0
      %v1658 = vadd.f32 0.0, %v1657
      %v1659 = vpop.f32.mrb[0].mxu0
      %1660 = vmatprep.mubr.bf16.mxu0 0
      %1661 = vmatmul.mubr.bf16.gmra.mrb[0].mxu0 %v1534
      %v1662 = vpop.f32.mrb[0].mxu0
      %v1663 = vadd.f32 0.0, %v1662
      %v1664 = vpop.f32.mrb[0].mxu0
      %v1665 = vpop.f32.mrb[0].mxu0
      %v1666 = vadd.f32 0.0, %v1665
      %v1667 = vpop.f32.mrb[0].mxu0
      %1668 = vmatprep.mubr.bf16.mxu0 0
      %1669 = vmatmul.mubr.bf16.gmra.mrb[0].mxu0 %v1535
      %v1670 = vpop.f32.mrb[0].mxu0
      %v1671 = vadd.f32 0.0, %v1670
      %v1672 = vpop.f32.mrb[0].mxu0
      %v1673 = vpop.f32.mrb[0].mxu0
      %v1674 = vadd.f32 0.0, %v1673
      %v1675 = vpop.f32.mrb[0].mxu0
      %1676 = vmatprep.mubr.bf16.mxu0 0
      %1677 = vmatmul.mubr.bf16.gmra.mrb[0].mxu0 %v1536
      %v1678 = vpop.f32.mrb[0].mxu0
      %v1679 = vadd.f32 0.0, %v1678
      %v1680 = vpop.f32.mrb[0].mxu0
      %v1681 = vpop.f32.mrb[0].mxu0
      %v1682 = vadd.f32 0.0, %v1681
      %v1683 = vpop.f32.mrb[0].mxu0
      %1684 = vmatprep.mubr.bf16.mxu0 0
      %1685 = vmatmul.mubr.bf16.gmra.mrb[0].mxu0 %v1537
      %v1686 = vpop.f32.mrb[0].mxu0
      %v1687 = vadd.f32 0.0, %v1686
      %v1688 = vpop.f32.mrb[0].mxu0
      %v1689 = vpop.f32.mrb[0].mxu0
      %v1690 = vadd.f32 0.0, %v1689
      %v1691 = vpop.f32.mrb[0].mxu0
      %1692 = vmatprep.mubr.bf16.mxu0 0
      %1693 = vmatmul.mubr.bf16.gmra.mrb[0].mxu0 %v1538
      %v1694 = vpop.f32.mrb[0].mxu0
      %v1695 = vadd.f32 0.0, %v1694
      %v1696 = vpop.f32.mrb[0].mxu0
      %v1697 = vpop.f32.mrb[0].mxu0
      %v1698 = vadd.f32 0.0, %v1697
      %v1699 = vpop.f32.mrb[0].mxu0
      %1700 = vdwg.mxu0
      %v1701 = vadd.f32 %v1453, %v1639
      %v1702 = vadd.f32 %v1456, %v1642
      %v1703 = vadd.f32 %v1461, %v1647
      %v1704 = vadd.f32 %v1464, %v1650
      %v1705 = vadd.f32 %v1469, %v1655
      %v1706 = vadd.f32 %v1472, %v1658
      %v1707 = vadd.f32 %v1477, %v1663
      %v1708 = vadd.f32 %v1480, %v1666
      %v1709 = vadd.f32 %v1485, %v1671
      %v1710 = vadd.f32 %v1488, %v1674
      %v1711 = vadd.f32 %v1493, %v1679
      %v1712 = vadd.f32 %v1496, %v1682
      %v1713 = vadd.f32 %v1501, %v1687
      %v1714 = vadd.f32 %v1504, %v1690
      %v1715 = vadd.f32 %v1509, %v1695
      %v1716 = vadd.f32 %v1512, %v1698
      %v1717 = vld [vmem:[%s1110] sm:$0xff]
      %v1718 = vld [vmem:[%s1110 + $0x8] sm:$0xff]
      %v1719 = vld [vmem:[%s1110 + $0x18] sm:$0xff]
      %v1720 = vld [vmem:[%s1110 + $0x20] sm:$0xff]
      %v1721 = vld [vmem:[%s1110 + $0x30] sm:$0xff]
      %v1722 = vld [vmem:[%s1110 + $0x38] sm:$0xff]
      %v1723 = vld [vmem:[%s1110 + $0x48] sm:$0xff]
      %v1724 = vld [vmem:[%s1110 + $0x50] sm:$0xff]
      %v1725 = vld [vmem:[%s1110 + $0x60] sm:$0xff]
      %v1726 = vld [vmem:[%s1110 + $0x68] sm:$0xff]
      %v1727 = vld [vmem:[%s1110 + $0x78] sm:$0xff]
      %v1728 = vld [vmem:[%s1110 + $0x80] sm:$0xff]
      %v1729 = vld [vmem:[%s1110 + $0x90] sm:$0xff]
      %v1730 = vld [vmem:[%s1110 + $0x98] sm:$0xff]
      %v1731 = vld [vmem:[%s1110 + $0xa8] sm:$0xff]
      %v1732 = vld [vmem:[%s1110 + $0xb0] sm:$0xff]
      %v1733 = vpack.c.bf16 %v1718, %v1717
      %v1734 = vpack.c.bf16 %v1720, %v1719
      %v1735 = vpack.c.bf16 %v1722, %v1721
      %v1736 = vpack.c.bf16 %v1724, %v1723
      %v1737 = vpack.c.bf16 %v1726, %v1725
      %v1738 = vpack.c.bf16 %v1728, %v1727
      %v1739 = vpack.c.bf16 %v1730, %v1729
      %v1740 = vpack.c.bf16 %v1732, %v1731
      %s1741 = scalar_lea.vmem %s5, 192
      %v1742 = vld [vmem:[%s1741] sm:$0xf]
      %v1743 = vld [vmem:[%s1741 + $0x4] sm:$0xf]
      %v1744 = vld [vmem:[%s1741 + $0x8] sm:$0xf]
      %v1745 = vld [vmem:[%s1741 + $0xc] sm:$0xf]
      %v1746 = vld [vmem:[%s1741 + $0x10] sm:$0xf]
      %v1747 = vld [vmem:[%s1741 + $0x14] sm:$0xf]
      %v1748 = vld [vmem:[%s1741 + $0x18] sm:$0xf]
      %v1749 = vld [vmem:[%s1741 + $0x1c] sm:$0xf]
      %v1750 = vld [vmem:[%s1741 + $0x20] sm:$0xf]
      %v1751 = vld [vmem:[%s1741 + $0x24] sm:$0xf]
      %v1752 = vld [vmem:[%s1741 + $0x28] sm:$0xf]
      %v1753 = vld [vmem:[%s1741 + $0x2c] sm:$0xf]
      %v1754 = vld [vmem:[%s1741 + $0x30] sm:$0xf]
      %v1755 = vld [vmem:[%s1741 + $0x34] sm:$0xf]
      %v1756 = vld [vmem:[%s1741 + $0x38] sm:$0xf]
      %v1757 = vld [vmem:[%s1741 + $0x3c] sm:$0xf]
      %v1774 = vunpack.c.l.b16 %v1742
      %v1775 = vunpack.c.l.b16 %v1743
      %v1776 = vunpack.c.l.b16 %v1744
      %v1777 = vunpack.c.l.b16 %v1745
      %v1778 = vunpack.c.l.b16 %v1746
      %v1779 = vunpack.c.l.b16 %v1747
      %v1780 = vunpack.c.l.b16 %v1748
      %v1781 = vunpack.c.l.b16 %v1749
      %v1782 = vunpack.c.l.b16 %v1750
      %v1783 = vunpack.c.l.b16 %v1751
      %v1784 = vunpack.c.l.b16 %v1752
      %v1785 = vunpack.c.l.b16 %v1753
      %v1786 = vunpack.c.l.b16 %v1754
      %v1787 = vunpack.c.l.b16 %v1755
      %v1788 = vunpack.c.l.b16 %v1756
      %v1789 = vunpack.c.l.b16 %v1757
      %v1790 = vpack.c.b16 %v1775, %v1774
      %v1791 = vpack.c.b16 %v1777, %v1776
      %v1792 = vpack.c.b16 %v1779, %v1778
      %v1793 = vpack.c.b16 %v1781, %v1780
      %v1794 = vpack.c.b16 %v1783, %v1782
      %v1795 = vpack.c.b16 %v1785, %v1784
      %v1796 = vpack.c.b16 %v1787, %v1786
      %v1797 = vpack.c.b16 %v1789, %v1788
      %1806 = vmatprep.subr.bf16.mxu0 0
      %1807 = vmatpush1.bf16.msra.mxu0 %v1790
      %1808 = vmatprep.subr.bf16.mxu0 0
      %1809 = vmatpush1.bf16.msra.mxu0 %v1791
      %1810 = vmatprep.subr.bf16.mxu0 0
      %1811 = vmatpush1.bf16.msra.mxu0 %v1792
      %1812 = vmatprep.subr.bf16.mxu0 0
      %1813 = vmatpush1.bf16.msra.mxu0 %v1793
      %1814 = vmatprep.subr.bf16.mxu0 0
      %1815 = vmatpush1.bf16.msra.mxu0 %v1794
      %1816 = vmatprep.subr.bf16.mxu0 0
      %1817 = vmatpush1.bf16.msra.mxu0 %v1795
      %1818 = vmatprep.subr.bf16.mxu0 0
      %1819 = vmatpush1.bf16.msra.mxu0 %v1796
      %1820 = vmatprep.subr.bf16.mxu0 0
      %1821 = vmatpush1.bf16.msra.mxu0 %v1797
      %1822 = vmatprep.subr.bf16.mxu0 0
      %1823 = vmatpush1.bf16.msra.mxu0 0
      %1824 = vmatprep.subr.bf16.mxu0 0
      %1825 = vmatpush1.bf16.msra.mxu0 0
      %1826 = vmatprep.subr.bf16.mxu0 0
      %1827 = vmatpush1.bf16.msra.mxu0 0
      %1828 = vmatprep.subr.bf16.mxu0 0
      %1829 = vmatpush1.bf16.msra.mxu0 0
      %1830 = vmatprep.subr.bf16.mxu0 0
      %1831 = vmatpush1.bf16.msra.mxu0 0
      %1832 = vmatprep.subr.bf16.mxu0 0
      %1833 = vmatpush1.bf16.msra.mxu0 0
      %1834 = vmatprep.subr.bf16.mxu0 0
      %1835 = vmatpush1.bf16.msra.mxu0 0
      %1836 = vmatprep.subr.bf16.mxu0 0
      %1837 = vmatpush1.bf16.msra.mxu0 0
      %1838 = vmatprep.mubr.bf16.mxu0 0
      %1839 = vmatmul.mubr.bf16.gmra.mrb[0].mxu0 %v1733
      %v1840 = vpop.f32.mrb[0].mxu0
      %v1841 = vadd.f32 0.0, %v1840
      %v1842 = vpop.f32.mrb[0].mxu0
      %v1843 = vpop.f32.mrb[0].mxu0
      %v1844 = vadd.f32 0.0, %v1843
      %v1845 = vpop.f32.mrb[0].mxu0
      %1846 = vmatprep.mubr.bf16.mxu0 0
      %1847 = vmatmul.mubr.bf16.gmra.mrb[0].mxu0 %v1734
      %v1848 = vpop.f32.mrb[0].mxu0
      %v1849 = vadd.f32 0.0, %v1848
      %v1850 = vpop.f32.mrb[0].mxu0
      %v1851 = vpop.f32.mrb[0].mxu0
      %v1852 = vadd.f32 0.0, %v1851
      %v1853 = vpop.f32.mrb[0].mxu0
      %1854 = vmatprep.mubr.bf16.mxu0 0
      %1855 = vmatmul.mubr.bf16.gmra.mrb[0].mxu0 %v1735
      %v1856 = vpop.f32.mrb[0].mxu0
      %v1857 = vadd.f32 0.0, %v1856
      %v1858 = vpop.f32.mrb[0].mxu0
      %v1859 = vpop.f32.mrb[0].mxu0
      %v1860 = vadd.f32 0.0, %v1859
      %v1861 = vpop.f32.mrb[0].mxu0
      %1862 = vmatprep.mubr.bf16.mxu0 0
      %1863 = vmatmul.mubr.bf16.gmra.mrb[0].mxu0 %v1736
      %v1864 = vpop.f32.mrb[0].mxu0
      %v1865 = vadd.f32 0.0, %v1864
      %v1866 = vpop.f32.mrb[0].mxu0
      %v1867 = vpop.f32.mrb[0].mxu0
      %v1868 = vadd.f32 0.0, %v1867
      %v1869 = vpop.f32.mrb[0].mxu0
      %1870 = vmatprep.mubr.bf16.mxu0 0
      %1871 = vmatmul.mubr.bf16.gmra.mrb[0].mxu0 %v1737
      %v1872 = vpop.f32.mrb[0].mxu0
      %v1873 = vadd.f32 0.0, %v1872
      %v1874 = vpop.f32.mrb[0].mxu0
      %v1875 = vpop.f32.mrb[0].mxu0
      %v1876 = vadd.f32 0.0, %v1875
      %v1877 = vpop.f32.mrb[0].mxu0
      %1878 = vmatprep.mubr.bf16.mxu0 0
      %1879 = vmatmul.mubr.bf16.gmra.mrb[0].mxu0 %v1738
      %v1880 = vpop.f32.mrb[0].mxu0
      %v1881 = vadd.f32 0.0, %v1880
      %v1882 = vpop.f32.mrb[0].mxu0
      %v1883 = vpop.f32.mrb[0].mxu0
      %v1884 = vadd.f32 0.0, %v1883
      %v1885 = vpop.f32.mrb[0].mxu0
      %1886 = vmatprep.mubr.bf16.mxu0 0
      %1887 = vmatmul.mubr.bf16.gmra.mrb[0].mxu0 %v1739
      %v1888 = vpop.f32.mrb[0].mxu0
      %v1889 = vadd.f32 0.0, %v1888
      %v1890 = vpop.f32.mrb[0].mxu0
      %v1891 = vpop.f32.mrb[0].mxu0
      %v1892 = vadd.f32 0.0, %v1891
      %v1893 = vpop.f32.mrb[0].mxu0
      %1894 = vmatprep.mubr.bf16.mxu0 0
      %1895 = vmatmul.mubr.bf16.gmra.mrb[0].mxu0 %v1740
      %v1896 = vpop.f32.mrb[0].mxu0
      %v1897 = vadd.f32 0.0, %v1896
      %v1898 = vpop.f32.mrb[0].mxu0
      %v1899 = vpop.f32.mrb[0].mxu0
      %v1900 = vadd.f32 0.0, %v1899
      %v1901 = vpop.f32.mrb[0].mxu0
      %1902 = vdwg.mxu0
      %v1903 = vadd.f32 %v1701, %v1841
      %v1904 = vadd.f32 %v1702, %v1844
      %v1905 = vadd.f32 %v1703, %v1849
      %v1906 = vadd.f32 %v1704, %v1852
      %v1907 = vadd.f32 %v1705, %v1857
      %v1908 = vadd.f32 %v1706, %v1860
      %v1909 = vadd.f32 %v1707, %v1865
      %v1910 = vadd.f32 %v1708, %v1868
      %v1911 = vadd.f32 %v1709, %v1873
      %v1912 = vadd.f32 %v1710, %v1876
      %v1913 = vadd.f32 %v1711, %v1881
      %v1914 = vadd.f32 %v1712, %v1884
      %v1915 = vadd.f32 %v1713, %v1889
      %v1916 = vadd.f32 %v1714, %v1892
      %v1917 = vadd.f32 %v1715, %v1897
      %v1918 = vadd.f32 %v1716, %v1900
      %v1919 = vld [vmem:[%s1110 + $0x1] sm:$0xff]
      %v1920 = vld [vmem:[%s1110 + $0x9] sm:$0xff]
      %v1921 = vld [vmem:[%s1110 + $0x19] sm:$0xff]
      %v1922 = vld [vmem:[%s1110 + $0x21] sm:$0xff]
      %v1923 = vld [vmem:[%s1110 + $0x31] sm:$0xff]
      %v1924 = vld [vmem:[%s1110 + $0x39] sm:$0xff]
      %v1925 = vld [vmem:[%s1110 + $0x49] sm:$0xff]
      %v1926 = vld [vmem:[%s1110 + $0x51] sm:$0xff]
      %v1927 = vld [vmem:[%s1110 + $0x61] sm:$0xff]
      %v1928 = vld [vmem:[%s1110 + $0x69] sm:$0xff]
      %v1929 = vld [vmem:[%s1110 + $0x79] sm:$0xff]
      %v1930 = vld [vmem:[%s1110 + $0x81] sm:$0xff]
      %v1931 = vld [vmem:[%s1110 + $0x91] sm:$0xff]
      %v1932 = vld [vmem:[%s1110 + $0x99] sm:$0xff]
      %v1933 = vld [vmem:[%s1110 + $0xa9] sm:$0xff]
      %v1934 = vld [vmem:[%s1110 + $0xb1] sm:$0xff]
      %v1935 = vpack.c.bf16 %v1920, %v1919
      %v1936 = vpack.c.bf16 %v1922, %v1921
      %v1937 = vpack.c.bf16 %v1924, %v1923
      %v1938 = vpack.c.bf16 %v1926, %v1925
      %v1939 = vpack.c.bf16 %v1928, %v1927
      %v1940 = vpack.c.bf16 %v1930, %v1929
      %v1941 = vpack.c.bf16 %v1932, %v1931
      %v1942 = vpack.c.bf16 %v1934, %v1933
      %s1943 = scalar_lea.vmem %s5, 256
      %v1944 = vld [vmem:[%s1943] sm:$0xf]
      %v1945 = vld [vmem:[%s1943 + $0x4] sm:$0xf]
      %v1946 = vld [vmem:[%s1943 + $0x8] sm:$0xf]
      %v1947 = vld [vmem:[%s1943 + $0xc] sm:$0xf]
      %v1948 = vld [vmem:[%s1943 + $0x10] sm:$0xf]
      %v1949 = vld [vmem:[%s1943 + $0x14] sm:$0xf]
      %v1950 = vld [vmem:[%s1943 + $0x18] sm:$0xf]
      %v1951 = vld [vmem:[%s1943 + $0x1c] sm:$0xf]
      %v1952 = vld [vmem:[%s1943 + $0x20] sm:$0xf]
      %v1953 = vld [vmem:[%s1943 + $0x24] sm:$0xf]
      %v1954 = vld [vmem:[%s1943 + $0x28] sm:$0xf]
      %v1955 = vld [vmem:[%s1943 + $0x2c] sm:$0xf]
      %v1956 = vld [vmem:[%s1943 + $0x30] sm:$0xf]
      %v1957 = vld [vmem:[%s1943 + $0x34] sm:$0xf]
      %v1958 = vld [vmem:[%s1943 + $0x38] sm:$0xf]
      %v1959 = vld [vmem:[%s1943 + $0x3c] sm:$0xf]
      %v1976 = vunpack.c.l.b16 %v1944
      %v1977 = vunpack.c.l.b16 %v1945
      %v1978 = vunpack.c.l.b16 %v1946
      %v1979 = vunpack.c.l.b16 %v1947
      %v1980 = vunpack.c.l.b16 %v1948
      %v1981 = vunpack.c.l.b16 %v1949
      %v1982 = vunpack.c.l.b16 %v1950
      %v1983 = vunpack.c.l.b16 %v1951
      %v1984 = vunpack.c.l.b16 %v1952
      %v1985 = vunpack.c.l.b16 %v1953
      %v1986 = vunpack.c.l.b16 %v1954
      %v1987 = vunpack.c.l.b16 %v1955
      %v1988 = vunpack.c.l.b16 %v1956
      %v1989 = vunpack.c.l.b16 %v1957
      %v1990 = vunpack.c.l.b16 %v1958
      %v1991 = vunpack.c.l.b16 %v1959
      %v1992 = vpack.c.b16 %v1977, %v1976
      %v1993 = vpack.c.b16 %v1979, %v1978
      %v1994 = vpack.c.b16 %v1981, %v1980
      %v1995 = vpack.c.b16 %v1983, %v1982
      %v1996 = vpack.c.b16 %v1985, %v1984
      %v1997 = vpack.c.b16 %v1987, %v1986
      %v1998 = vpack.c.b16 %v1989, %v1988
      %v1999 = vpack.c.b16 %v1991, %v1990
      %2008 = vmatprep.subr.bf16.mxu0 0
      %2009 = vmatpush1.bf16.msra.mxu0 %v1992
      %2010 = vmatprep.subr.bf16.mxu0 0
      %2011 = vmatpush1.bf16.msra.mxu0 %v1993
      %2012 = vmatprep.subr.bf16.mxu0 0
      %2013 = vmatpush1.bf16.msra.mxu0 %v1994
      %2014 = vmatprep.subr.bf16.mxu0 0
      %2015 = vmatpush1.bf16.msra.mxu0 %v1995
      %2016 = vmatprep.subr.bf16.mxu0 0
      %2017 = vmatpush1.bf16.msra.mxu0 %v1996
      %2018 = vmatprep.subr.bf16.mxu0 0
      %2019 = vmatpush1.bf16.msra.mxu0 %v1997
      %2020 = vmatprep.subr.bf16.mxu0 0
      %2021 = vmatpush1.bf16.msra.mxu0 %v1998
      %2022 = vmatprep.subr.bf16.mxu0 0
      %2023 = vmatpush1.bf16.msra.mxu0 %v1999
      %2024 = vmatprep.subr.bf16.mxu0 0
      %2025 = vmatpush1.bf16.msra.mxu0 0
      %2026 = vmatprep.subr.bf16.mxu0 0
      %2027 = vmatpush1.bf16.msra.mxu0 0
      %2028 = vmatprep.subr.bf16.mxu0 0
      %2029 = vmatpush1.bf16.msra.mxu0 0
      %2030 = vmatprep.subr.bf16.mxu0 0
      %2031 = vmatpush1.bf16.msra.mxu0 0
      %2032 = vmatprep.subr.bf16.mxu0 0
      %2033 = vmatpush1.bf16.msra.mxu0 0
      %2034 = vmatprep.subr.bf16.mxu0 0
      %2035 = vmatpush1.bf16.msra.mxu0 0
      %2036 = vmatprep.subr.bf16.mxu0 0
      %2037 = vmatpush1.bf16.msra.mxu0 0
      %2038 = vmatprep.subr.bf16.mxu0 0
      %2039 = vmatpush1.bf16.msra.mxu0 0
      %2040 = vmatprep.mubr.bf16.mxu0 0
      %2041 = vmatmul.mubr.bf16.gmra.mrb[0].mxu0 %v1935
      %v2042 = vpop.f32.mrb[0].mxu0
      %v2043 = vadd.f32 0.0, %v2042
      %v2044 = vpop.f32.mrb[0].mxu0
      %v2045 = vpop.f32.mrb[0].mxu0
      %v2046 = vadd.f32 0.0, %v2045
      %v2047 = vpop.f32.mrb[0].mxu0
      %2048 = vmatprep.mubr.bf16.mxu0 0
      %2049 = vmatmul.mubr.bf16.gmra.mrb[0].mxu0 %v1936
      %v2050 = vpop.f32.mrb[0].mxu0
      %v2051 = vadd.f32 0.0, %v2050
      %v2052 = vpop.f32.mrb[0].mxu0
      %v2053 = vpop.f32.mrb[0].mxu0
      %v2054 = vadd.f32 0.0, %v2053
      %v2055 = vpop.f32.mrb[0].mxu0
      %2056 = vmatprep.mubr.bf16.mxu0 0
      %2057 = vmatmul.mubr.bf16.gmra.mrb[0].mxu0 %v1937
      %v2058 = vpop.f32.mrb[0].mxu0
      %v2059 = vadd.f32 0.0, %v2058
      %v2060 = vpop.f32.mrb[0].mxu0
      %v2061 = vpop.f32.mrb[0].mxu0
      %v2062 = vadd.f32 0.0, %v2061
      %v2063 = vpop.f32.mrb[0].mxu0
      %2064 = vmatprep.mubr.bf16.mxu0 0
      %2065 = vmatmul.mubr.bf16.gmra.mrb[0].mxu0 %v1938
      %v2066 = vpop.f32.mrb[0].mxu0
      %v2067 = vadd.f32 0.0, %v2066
      %v2068 = vpop.f32.mrb[0].mxu0
      %v2069 = vpop.f32.mrb[0].mxu0
      %v2070 = vadd.f32 0.0, %v2069
      %v2071 = vpop.f32.mrb[0].mxu0
      %2072 = vmatprep.mubr.bf16.mxu0 0
      %2073 = vmatmul.mubr.bf16.gmra.mrb[0].mxu0 %v1939
      %v2074 = vpop.f32.mrb[0].mxu0
      %v2075 = vadd.f32 0.0, %v2074
      %v2076 = vpop.f32.mrb[0].mxu0
      %v2077 = vpop.f32.mrb[0].mxu0
      %v2078 = vadd.f32 0.0, %v2077
      %v2079 = vpop.f32.mrb[0].mxu0
      %2080 = vmatprep.mubr.bf16.mxu0 0
      %2081 = vmatmul.mubr.bf16.gmra.mrb[0].mxu0 %v1940
      %v2082 = vpop.f32.mrb[0].mxu0
      %v2083 = vadd.f32 0.0, %v2082
      %v2084 = vpop.f32.mrb[0].mxu0
      %v2085 = vpop.f32.mrb[0].mxu0
      %v2086 = vadd.f32 0.0, %v2085
      %v2087 = vpop.f32.mrb[0].mxu0
      %2088 = vmatprep.mubr.bf16.mxu0 0
      %2089 = vmatmul.mubr.bf16.gmra.mrb[0].mxu0 %v1941
      %v2090 = vpop.f32.mrb[0].mxu0
      %v2091 = vadd.f32 0.0, %v2090
      %v2092 = vpop.f32.mrb[0].mxu0
      %v2093 = vpop.f32.mrb[0].mxu0
      %v2094 = vadd.f32 0.0, %v2093
      %v2095 = vpop.f32.mrb[0].mxu0
      %2096 = vmatprep.mubr.bf16.mxu0 0
      %2097 = vmatmul.mubr.bf16.gmra.mrb[0].mxu0 %v1942
      %v2098 = vpop.f32.mrb[0].mxu0
      %v2099 = vadd.f32 0.0, %v2098
      %v2100 = vpop.f32.mrb[0].mxu0
      %v2101 = vpop.f32.mrb[0].mxu0
      %v2102 = vadd.f32 0.0, %v2101
      %v2103 = vpop.f32.mrb[0].mxu0
      %2104 = vdwg.mxu0
      %v2105 = vadd.f32 %v1903, %v2043
      %v2106 = vadd.f32 %v1904, %v2046
      %v2107 = vadd.f32 %v1905, %v2051
      %v2108 = vadd.f32 %v1906, %v2054
      %v2109 = vadd.f32 %v1907, %v2059
      %v2110 = vadd.f32 %v1908, %v2062
      %v2111 = vadd.f32 %v1909, %v2067
      %v2112 = vadd.f32 %v1910, %v2070
      %v2113 = vadd.f32 %v1911, %v2075
      %v2114 = vadd.f32 %v1912, %v2078
      %v2115 = vadd.f32 %v1913, %v2083
      %v2116 = vadd.f32 %v1914, %v2086
      %v2117 = vadd.f32 %v1915, %v2091
      %v2118 = vadd.f32 %v1916, %v2094
      %v2119 = vadd.f32 %v1917, %v2099
      %v2120 = vadd.f32 %v1918, %v2102
      %v2121 = vld [vmem:[%s1110 + $0x2] sm:$0xff]
      %v2122 = vld [vmem:[%s1110 + $0xa] sm:$0xff]
      %v2123 = vld [vmem:[%s1110 + $0x1a] sm:$0xff]
      %v2124 = vld [vmem:[%s1110 + $0x22] sm:$0xff]
      %v2125 = vld [vmem:[%s1110 + $0x32] sm:$0xff]
      %v2126 = vld [vmem:[%s1110 + $0x3a] sm:$0xff]
      %v2127 = vld [vmem:[%s1110 + $0x4a] sm:$0xff]
      %v2128 = vld [vmem:[%s1110 + $0x52] sm:$0xff]
      %v2129 = vld [vmem:[%s1110 + $0x62] sm:$0xff]
      %v2130 = vld [vmem:[%s1110 + $0x6a] sm:$0xff]
      %v2131 = vld [vmem:[%s1110 + $0x7a] sm:$0xff]
      %v2132 = vld [vmem:[%s1110 + $0x82] sm:$0xff]
      %v2133 = vld [vmem:[%s1110 + $0x92] sm:$0xff]
      %v2134 = vld [vmem:[%s1110 + $0x9a] sm:$0xff]
      %v2135 = vld [vmem:[%s1110 + $0xaa] sm:$0xff]
      %v2136 = vld [vmem:[%s1110 + $0xb2] sm:$0xff]
      %v2137 = vpack.c.bf16 %v2122, %v2121
      %v2138 = vpack.c.bf16 %v2124, %v2123
      %v2139 = vpack.c.bf16 %v2126, %v2125
      %v2140 = vpack.c.bf16 %v2128, %v2127
      %v2141 = vpack.c.bf16 %v2130, %v2129
      %v2142 = vpack.c.bf16 %v2132, %v2131
      %v2143 = vpack.c.bf16 %v2134, %v2133
      %v2144 = vpack.c.bf16 %v2136, %v2135
      %s2145 = scalar_lea.vmem %s5, 320
      %v2146 = vld [vmem:[%s2145] sm:$0xf]
      %v2147 = vld [vmem:[%s2145 + $0x4] sm:$0xf]
      %v2148 = vld [vmem:[%s2145 + $0x8] sm:$0xf]
      %v2149 = vld [vmem:[%s2145 + $0xc] sm:$0xf]
      %v2150 = vld [vmem:[%s2145 + $0x10] sm:$0xf]
      %v2151 = vld [vmem:[%s2145 + $0x14] sm:$0xf]
      %v2152 = vld [vmem:[%s2145 + $0x18] sm:$0xf]
      %v2153 = vld [vmem:[%s2145 + $0x1c] sm:$0xf]
      %v2154 = vld [vmem:[%s2145 + $0x20] sm:$0xf]
      %v2155 = vld [vmem:[%s2145 + $0x24] sm:$0xf]
      %v2156 = vld [vmem:[%s2145 + $0x28] sm:$0xf]
      %v2157 = vld [vmem:[%s2145 + $0x2c] sm:$0xf]
      %v2158 = vld [vmem:[%s2145 + $0x30] sm:$0xf]
      %v2159 = vld [vmem:[%s2145 + $0x34] sm:$0xf]
      %v2160 = vld [vmem:[%s2145 + $0x38] sm:$0xf]
      %v2161 = vld [vmem:[%s2145 + $0x3c] sm:$0xf]
      %v2178 = vunpack.c.l.b16 %v2146
      %v2179 = vunpack.c.l.b16 %v2147
      %v2180 = vunpack.c.l.b16 %v2148
      %v2181 = vunpack.c.l.b16 %v2149
      %v2182 = vunpack.c.l.b16 %v2150
      %v2183 = vunpack.c.l.b16 %v2151
      %v2184 = vunpack.c.l.b16 %v2152
      %v2185 = vunpack.c.l.b16 %v2153
      %v2186 = vunpack.c.l.b16 %v2154
      %v2187 = vunpack.c.l.b16 %v2155
      %v2188 = vunpack.c.l.b16 %v2156
      %v2189 = vunpack.c.l.b16 %v2157
      %v2190 = vunpack.c.l.b16 %v2158
      %v2191 = vunpack.c.l.b16 %v2159
      %v2192 = vunpack.c.l.b16 %v2160
      %v2193 = vunpack.c.l.b16 %v2161
      %v2194 = vpack.c.b16 %v2179, %v2178
      %v2195 = vpack.c.b16 %v2181, %v2180
      %v2196 = vpack.c.b16 %v2183, %v2182
      %v2197 = vpack.c.b16 %v2185, %v2184
      %v2198 = vpack.c.b16 %v2187, %v2186
      %v2199 = vpack.c.b16 %v2189, %v2188
      %v2200 = vpack.c.b16 %v2191, %v2190
      %v2201 = vpack.c.b16 %v2193, %v2192
      %2210 = vmatprep.subr.bf16.mxu0 0
      %2211 = vmatpush1.bf16.msra.mxu0 %v2194
      %2212 = vmatprep.subr.bf16.mxu0 0
      %2213 = vmatpush1.bf16.msra.mxu0 %v2195
      %2214 = vmatprep.subr.bf16.mxu0 0
      %2215 = vmatpush1.bf16.msra.mxu0 %v2196
      %2216 = vmatprep.subr.bf16.mxu0 0
      %2217 = vmatpush1.bf16.msra.mxu0 %v2197
      %2218 = vmatprep.subr.bf16.mxu0 0
      %2219 = vmatpush1.bf16.msra.mxu0 %v2198
      %2220 = vmatprep.subr.bf16.mxu0 0
      %2221 = vmatpush1.bf16.msra.mxu0 %v2199
      %2222 = vmatprep.subr.bf16.mxu0 0
      %2223 = vmatpush1.bf16.msra.mxu0 %v2200
      %2224 = vmatprep.subr.bf16.mxu0 0
      %2225 = vmatpush1.bf16.msra.mxu0 %v2201
      %2226 = vmatprep.subr.bf16.mxu0 0
      %2227 = vmatpush1.bf16.msra.mxu0 0
      %2228 = vmatprep.subr.bf16.mxu0 0
      %2229 = vmatpush1.bf16.msra.mxu0 0
      %2230 = vmatprep.subr.bf16.mxu0 0
      %2231 = vmatpush1.bf16.msra.mxu0 0
      %2232 = vmatprep.subr.bf16.mxu0 0
      %2233 = vmatpush1.bf16.msra.mxu0 0
      %2234 = vmatprep.subr.bf16.mxu0 0
      %2235 = vmatpush1.bf16.msra.mxu0 0
      %2236 = vmatprep.subr.bf16.mxu0 0
      %2237 = vmatpush1.bf16.msra.mxu0 0
      %2238 = vmatprep.subr.bf16.mxu0 0
      %2239 = vmatpush1.bf16.msra.mxu0 0
      %2240 = vmatprep.subr.bf16.mxu0 0
      %2241 = vmatpush1.bf16.msra.mxu0 0
      %2242 = vmatprep.mubr.bf16.mxu0 0
      %2243 = vmatmul.mubr.bf16.gmra.mrb[0].mxu0 %v2137
      %v2244 = vpop.f32.mrb[0].mxu0
      %v2245 = vadd.f32 0.0, %v2244
      %v2246 = vpop.f32.mrb[0].mxu0
      %v2247 = vpop.f32.mrb[0].mxu0
      %v2248 = vadd.f32 0.0, %v2247
      %v2249 = vpop.f32.mrb[0].mxu0
      %2250 = vmatprep.mubr.bf16.mxu0 0
      %2251 = vmatmul.mubr.bf16.gmra.mrb[0].mxu0 %v2138
      %v2252 = vpop.f32.mrb[0].mxu0
      %v2253 = vadd.f32 0.0, %v2252
      %v2254 = vpop.f32.mrb[0].mxu0
      %v2255 = vpop.f32.mrb[0].mxu0
      %v2256 = vadd.f32 0.0, %v2255
      %v2257 = vpop.f32.mrb[0].mxu0
      %2258 = vmatprep.mubr.bf16.mxu0 0
      %2259 = vmatmul.mubr.bf16.gmra.mrb[0].mxu0 %v2139
      %v2260 = vpop.f32.mrb[0].mxu0
      %v2261 = vadd.f32 0.0, %v2260
      %v2262 = vpop.f32.mrb[0].mxu0
      %v2263 = vpop.f32.mrb[0].mxu0
      %v2264 = vadd.f32 0.0, %v2263
      %v2265 = vpop.f32.mrb[0].mxu0
      %2266 = vmatprep.mubr.bf16.mxu0 0
      %2267 = vmatmul.mubr.bf16.gmra.mrb[0].mxu0 %v2140
      %v2268 = vpop.f32.mrb[0].mxu0
      %v2269 = vadd.f32 0.0, %v2268
      %v2270 = vpop.f32.mrb[0].mxu0
      %v2271 = vpop.f32.mrb[0].mxu0
      %v2272 = vadd.f32 0.0, %v2271
      %v2273 = vpop.f32.mrb[0].mxu0
      %2274 = vmatprep.mubr.bf16.mxu0 0
      %2275 = vmatmul.mubr.bf16.gmra.mrb[0].mxu0 %v2141
      %v2276 = vpop.f32.mrb[0].mxu0
      %v2277 = vadd.f32 0.0, %v2276
      %v2278 = vpop.f32.mrb[0].mxu0
      %v2279 = vpop.f32.mrb[0].mxu0
      %v2280 = vadd.f32 0.0, %v2279
      %v2281 = vpop.f32.mrb[0].mxu0
      %2282 = vmatprep.mubr.bf16.mxu0 0
      %2283 = vmatmul.mubr.bf16.gmra.mrb[0].mxu0 %v2142
      %v2284 = vpop.f32.mrb[0].mxu0
      %v2285 = vadd.f32 0.0, %v2284
      %v2286 = vpop.f32.mrb[0].mxu0
      %v2287 = vpop.f32.mrb[0].mxu0
      %v2288 = vadd.f32 0.0, %v2287
      %v2289 = vpop.f32.mrb[0].mxu0
      %2290 = vmatprep.mubr.bf16.mxu0 0
      %2291 = vmatmul.mubr.bf16.gmra.mrb[0].mxu0 %v2143
      %v2292 = vpop.f32.mrb[0].mxu0
      %v2293 = vadd.f32 0.0, %v2292
      %v2294 = vpop.f32.mrb[0].mxu0
      %v2295 = vpop.f32.mrb[0].mxu0
      %v2296 = vadd.f32 0.0, %v2295
      %v2297 = vpop.f32.mrb[0].mxu0
      %2298 = vmatprep.mubr.bf16.mxu0 0
      %2299 = vmatmul.mubr.bf16.gmra.mrb[0].mxu0 %v2144
      %v2300 = vpop.f32.mrb[0].mxu0
      %v2301 = vadd.f32 0.0, %v2300
      %v2302 = vpop.f32.mrb[0].mxu0
      %v2303 = vpop.f32.mrb[0].mxu0
      %v2304 = vadd.f32 0.0, %v2303
      %v2305 = vpop.f32.mrb[0].mxu0
      %2306 = vdwg.mxu0
      %v2307 = vadd.f32 %v2105, %v2245
      %v2308 = vadd.f32 %v2106, %v2248
      %v2309 = vadd.f32 %v2107, %v2253
      %v2310 = vadd.f32 %v2108, %v2256
      %v2311 = vadd.f32 %v2109, %v2261
      %v2312 = vadd.f32 %v2110, %v2264
      %v2313 = vadd.f32 %v2111, %v2269
      %v2314 = vadd.f32 %v2112, %v2272
      %v2315 = vadd.f32 %v2113, %v2277
      %v2316 = vadd.f32 %v2114, %v2280
      %v2317 = vadd.f32 %v2115, %v2285
      %v2318 = vadd.f32 %v2116, %v2288
      %v2319 = vadd.f32 %v2117, %v2293
      %v2320 = vadd.f32 %v2118, %v2296
      %v2321 = vadd.f32 %v2119, %v2301
      %v2322 = vadd.f32 %v2120, %v2304
      %s2323 = scalar_lea.vmem [#allocation2], 48
      %v2324 = vld [vmem:[%s2323] sm:$0xff]
      %v2325 = vld [vmem:[%s2323 + $0x8] sm:$0xff]
      %v2326 = vld [vmem:[%s2323 + $0x18] sm:$0xff]
      %v2327 = vld [vmem:[%s2323 + $0x20] sm:$0xff]
      %v2328 = vld [vmem:[%s2323 + $0x30] sm:$0xff]
      %v2329 = vld [vmem:[%s2323 + $0x38] sm:$0xff]
      %v2330 = vld [vmem:[%s2323 + $0x48] sm:$0xff]
      %v2331 = vld [vmem:[%s2323 + $0x50] sm:$0xff]
      %v2332 = vld [vmem:[%s2323 + $0x60] sm:$0xff]
      %v2333 = vld [vmem:[%s2323 + $0x68] sm:$0xff]
      %v2334 = vld [vmem:[%s2323 + $0x78] sm:$0xff]
      %v2335 = vld [vmem:[%s2323 + $0x80] sm:$0xff]
      %v2336 = vld [vmem:[%s2323 + $0x90] sm:$0xff]
      %v2337 = vld [vmem:[%s2323 + $0x98] sm:$0xff]
      %v2338 = vld [vmem:[%s2323 + $0xa8] sm:$0xff]
      %v2339 = vld [vmem:[%s2323 + $0xb0] sm:$0xff]
      %v2340 = vpack.c.bf16 %v2325, %v2324
      %v2341 = vpack.c.bf16 %v2327, %v2326
      %v2342 = vpack.c.bf16 %v2329, %v2328
      %v2343 = vpack.c.bf16 %v2331, %v2330
      %v2344 = vpack.c.bf16 %v2333, %v2332
      %v2345 = vpack.c.bf16 %v2335, %v2334
      %v2346 = vpack.c.bf16 %v2337, %v2336
      %v2347 = vpack.c.bf16 %v2339, %v2338
      %s2348 = scalar_lea.vmem %s5, 384
      %v2349 = vld [vmem:[%s2348] sm:$0xf]
      %v2350 = vld [vmem:[%s2348 + $0x4] sm:$0xf]
      %v2351 = vld [vmem:[%s2348 + $0x8] sm:$0xf]
      %v2352 = vld [vmem:[%s2348 + $0xc] sm:$0xf]
      %v2353 = vld [vmem:[%s2348 + $0x10] sm:$0xf]
      %v2354 = vld [vmem:[%s2348 + $0x14] sm:$0xf]
      %v2355 = vld [vmem:[%s2348 + $0x18] sm:$0xf]
      %v2356 = vld [vmem:[%s2348 + $0x1c] sm:$0xf]
      %v2357 = vld [vmem:[%s2348 + $0x20] sm:$0xf]
      %v2358 = vld [vmem:[%s2348 + $0x24] sm:$0xf]
      %v2359 = vld [vmem:[%s2348 + $0x28] sm:$0xf]
      %v2360 = vld [vmem:[%s2348 + $0x2c] sm:$0xf]
      %v2361 = vld [vmem:[%s2348 + $0x30] sm:$0xf]
      %v2362 = vld [vmem:[%s2348 + $0x34] sm:$0xf]
      %v2363 = vld [vmem:[%s2348 + $0x38] sm:$0xf]
      %v2364 = vld [vmem:[%s2348 + $0x3c] sm:$0xf]
      %v2381 = vunpack.c.l.b16 %v2349
      %v2382 = vunpack.c.l.b16 %v2350
      %v2383 = vunpack.c.l.b16 %v2351
      %v2384 = vunpack.c.l.b16 %v2352
      %v2385 = vunpack.c.l.b16 %v2353
      %v2386 = vunpack.c.l.b16 %v2354
      %v2387 = vunpack.c.l.b16 %v2355
      %v2388 = vunpack.c.l.b16 %v2356
      %v2389 = vunpack.c.l.b16 %v2357
      %v2390 = vunpack.c.l.b16 %v2358
      %v2391 = vunpack.c.l.b16 %v2359
      %v2392 = vunpack.c.l.b16 %v2360
      %v2393 = vunpack.c.l.b16 %v2361
      %v2394 = vunpack.c.l.b16 %v2362
      %v2395 = vunpack.c.l.b16 %v2363
      %v2396 = vunpack.c.l.b16 %v2364
      %v2397 = vpack.c.b16 %v2382, %v2381
      %v2398 = vpack.c.b16 %v2384, %v2383
      %v2399 = vpack.c.b16 %v2386, %v2385
      %v2400 = vpack.c.b16 %v2388, %v2387
      %v2401 = vpack.c.b16 %v2390, %v2389
      %v2402 = vpack.c.b16 %v2392, %v2391
      %v2403 = vpack.c.b16 %v2394, %v2393
      %v2404 = vpack.c.b16 %v2396, %v2395
      %2413 = vmatprep.subr.bf16.mxu0 0
      %2414 = vmatpush1.bf16.msra.mxu0 %v2397
      %2415 = vmatprep.subr.bf16.mxu0 0
      %2416 = vmatpush1.bf16.msra.mxu0 %v2398
      %2417 = vmatprep.subr.bf16.mxu0 0
      %2418 = vmatpush1.bf16.msra.mxu0 %v2399
      %2419 = vmatprep.subr.bf16.mxu0 0
      %2420 = vmatpush1.bf16.msra.mxu0 %v2400
      %2421 = vmatprep.subr.bf16.mxu0 0
      %2422 = vmatpush1.bf16.msra.mxu0 %v2401
      %2423 = vmatprep.subr.bf16.mxu0 0
      %2424 = vmatpush1.bf16.msra.mxu0 %v2402
      %2425 = vmatprep.subr.bf16.mxu0 0
      %2426 = vmatpush1.bf16.msra.mxu0 %v2403
      %2427 = vmatprep.subr.bf16.mxu0 0
      %2428 = vmatpush1.bf16.msra.mxu0 %v2404
      %2429 = vmatprep.subr.bf16.mxu0 0
      %2430 = vmatpush1.bf16.msra.mxu0 0
      %2431 = vmatprep.subr.bf16.mxu0 0
      %2432 = vmatpush1.bf16.msra.mxu0 0
      %2433 = vmatprep.subr.bf16.mxu0 0
      %2434 = vmatpush1.bf16.msra.mxu0 0
      %2435 = vmatprep.subr.bf16.mxu0 0
      %2436 = vmatpush1.bf16.msra.mxu0 0
      %2437 = vmatprep.subr.bf16.mxu0 0
      %2438 = vmatpush1.bf16.msra.mxu0 0
      %2439 = vmatprep.subr.bf16.mxu0 0
      %2440 = vmatpush1.bf16.msra.mxu0 0
      %2441 = vmatprep.subr.bf16.mxu0 0
      %2442 = vmatpush1.bf16.msra.mxu0 0
      %2443 = vmatprep.subr.bf16.mxu0 0
      %2444 = vmatpush1.bf16.msra.mxu0 0
      %2445 = vmatprep.mubr.bf16.mxu0 0
      %2446 = vmatmul.mubr.bf16.gmra.mrb[0].mxu0 %v2340
      %v2447 = vpop.f32.mrb[0].mxu0
      %v2448 = vadd.f32 0.0, %v2447
      %v2449 = vpop.f32.mrb[0].mxu0
      %v2450 = vpop.f32.mrb[0].mxu0
      %v2451 = vadd.f32 0.0, %v2450
      %v2452 = vpop.f32.mrb[0].mxu0
      %2453 = vmatprep.mubr.bf16.mxu0 0
      %2454 = vmatmul.mubr.bf16.gmra.mrb[0].mxu0 %v2341
      %v2455 = vpop.f32.mrb[0].mxu0
      %v2456 = vadd.f32 0.0, %v2455
      %v2457 = vpop.f32.mrb[0].mxu0
      %v2458 = vpop.f32.mrb[0].mxu0
      %v2459 = vadd.f32 0.0, %v2458
      %v2460 = vpop.f32.mrb[0].mxu0
      %2461 = vmatprep.mubr.bf16.mxu0 0
      %2462 = vmatmul.mubr.bf16.gmra.mrb[0].mxu0 %v2342
      %v2463 = vpop.f32.mrb[0].mxu0
      %v2464 = vadd.f32 0.0, %v2463
      %v2465 = vpop.f32.mrb[0].mxu0
      %v2466 = vpop.f32.mrb[0].mxu0
      %v2467 = vadd.f32 0.0, %v2466
      %v2468 = vpop.f32.mrb[0].mxu0
      %2469 = vmatprep.mubr.bf16.mxu0 0
      %2470 = vmatmul.mubr.bf16.gmra.mrb[0].mxu0 %v2343
      %v2471 = vpop.f32.mrb[0].mxu0
      %v2472 = vadd.f32 0.0, %v2471
      %v2473 = vpop.f32.mrb[0].mxu0
      %v2474 = vpop.f32.mrb[0].mxu0
      %v2475 = vadd.f32 0.0, %v2474
      %v2476 = vpop.f32.mrb[0].mxu0
      %2477 = vmatprep.mubr.bf16.mxu0 0
      %2478 = vmatmul.mubr.bf16.gmra.mrb[0].mxu0 %v2344
      %v2479 = vpop.f32.mrb[0].mxu0
      %v2480 = vadd.f32 0.0, %v2479
      %v2481 = vpop.f32.mrb[0].mxu0
      %v2482 = vpop.f32.mrb[0].mxu0
      %v2483 = vadd.f32 0.0, %v2482
      %v2484 = vpop.f32.mrb[0].mxu0
      %2485 = vmatprep.mubr.bf16.mxu0 0
      %2486 = vmatmul.mubr.bf16.gmra.mrb[0].mxu0 %v2345
      %v2487 = vpop.f32.mrb[0].mxu0
      %v2488 = vadd.f32 0.0, %v2487
      %v2489 = vpop.f32.mrb[0].mxu0
      %v2490 = vpop.f32.mrb[0].mxu0
      %v2491 = vadd.f32 0.0, %v2490
      %v2492 = vpop.f32.mrb[0].mxu0
      %2493 = vmatprep.mubr.bf16.mxu0 0
      %2494 = vmatmul.mubr.bf16.gmra.mrb[0].mxu0 %v2346
      %v2495 = vpop.f32.mrb[0].mxu0
      %v2496 = vadd.f32 0.0, %v2495
      %v2497 = vpop.f32.mrb[0].mxu0
      %v2498 = vpop.f32.mrb[0].mxu0
      %v2499 = vadd.f32 0.0, %v2498
      %v2500 = vpop.f32.mrb[0].mxu0
      %2501 = vmatprep.mubr.bf16.mxu0 0
      %2502 = vmatmul.mubr.bf16.gmra.mrb[0].mxu0 %v2347
      %v2503 = vpop.f32.mrb[0].mxu0
      %v2504 = vadd.f32 0.0, %v2503
      %v2505 = vpop.f32.mrb[0].mxu0
      %v2506 = vpop.f32.mrb[0].mxu0
      %v2507 = vadd.f32 0.0, %v2506
      %v2508 = vpop.f32.mrb[0].mxu0
      %2509 = vdwg.mxu0
      %v2510 = vadd.f32 %v2307, %v2448
      %v2511 = vadd.f32 %v2308, %v2451
      %v2512 = vadd.f32 %v2309, %v2456
      %v2513 = vadd.f32 %v2310, %v2459
      %v2514 = vadd.f32 %v2311, %v2464
      %v2515 = vadd.f32 %v2312, %v2467
      %v2516 = vadd.f32 %v2313, %v2472
      %v2517 = vadd.f32 %v2314, %v2475
      %v2518 = vadd.f32 %v2315, %v2480
      %v2519 = vadd.f32 %v2316, %v2483
      %v2520 = vadd.f32 %v2317, %v2488
      %v2521 = vadd.f32 %v2318, %v2491
      %v2522 = vadd.f32 %v2319, %v2496
      %v2523 = vadd.f32 %v2320, %v2499
      %v2524 = vadd.f32 %v2321, %v2504
      %v2525 = vadd.f32 %v2322, %v2507
      %v2526 = vld [vmem:[%s2323 + $0x1] sm:$0xff]
      %v2527 = vld [vmem:[%s2323 + $0x9] sm:$0xff]
      %v2528 = vld [vmem:[%s2323 + $0x19] sm:$0xff]
      %v2529 = vld [vmem:[%s2323 + $0x21] sm:$0xff]
      %v2530 = vld [vmem:[%s2323 + $0x31] sm:$0xff]
      %v2531 = vld [vmem:[%s2323 + $0x39] sm:$0xff]
      %v2532 = vld [vmem:[%s2323 + $0x49] sm:$0xff]
      %v2533 = vld [vmem:[%s2323 + $0x51] sm:$0xff]
      %v2534 = vld [vmem:[%s2323 + $0x61] sm:$0xff]
      %v2535 = vld [vmem:[%s2323 + $0x69] sm:$0xff]
      %v2536 = vld [vmem:[%s2323 + $0x79] sm:$0xff]
      %v2537 = vld [vmem:[%s2323 + $0x81] sm:$0xff]
      %v2538 = vld [vmem:[%s2323 + $0x91] sm:$0xff]
      %v2539 = vld [vmem:[%s2323 + $0x99] sm:$0xff]
      %v2540 = vld [vmem:[%s2323 + $0xa9] sm:$0xff]
      %v2541 = vld [vmem:[%s2323 + $0xb1] sm:$0xff]
      %v2542 = vpack.c.bf16 %v2527, %v2526
      %v2543 = vpack.c.bf16 %v2529, %v2528
      %v2544 = vpack.c.bf16 %v2531, %v2530
      %v2545 = vpack.c.bf16 %v2533, %v2532
      %v2546 = vpack.c.bf16 %v2535, %v2534
      %v2547 = vpack.c.bf16 %v2537, %v2536
      %v2548 = vpack.c.bf16 %v2539, %v2538
      %v2549 = vpack.c.bf16 %v2541, %v2540
      %s2550 = scalar_lea.vmem %s5, 448
      %v2551 = vld [vmem:[%s2550] sm:$0xf]
      %v2552 = vld [vmem:[%s2550 + $0x4] sm:$0xf]
      %v2553 = vld [vmem:[%s2550 + $0x8] sm:$0xf]
      %v2554 = vld [vmem:[%s2550 + $0xc] sm:$0xf]
      %v2555 = vld [vmem:[%s2550 + $0x10] sm:$0xf]
      %v2556 = vld [vmem:[%s2550 + $0x14] sm:$0xf]
      %v2557 = vld [vmem:[%s2550 + $0x18] sm:$0xf]
      %v2558 = vld [vmem:[%s2550 + $0x1c] sm:$0xf]
      %v2559 = vld [vmem:[%s2550 + $0x20] sm:$0xf]
      %v2560 = vld [vmem:[%s2550 + $0x24] sm:$0xf]
      %v2561 = vld [vmem:[%s2550 + $0x28] sm:$0xf]
      %v2562 = vld [vmem:[%s2550 + $0x2c] sm:$0xf]
      %v2563 = vld [vmem:[%s2550 + $0x30] sm:$0xf]
      %v2564 = vld [vmem:[%s2550 + $0x34] sm:$0xf]
      %v2565 = vld [vmem:[%s2550 + $0x38] sm:$0xf]
      %v2566 = vld [vmem:[%s2550 + $0x3c] sm:$0xf]
      %v2583 = vunpack.c.l.b16 %v2551
      %v2584 = vunpack.c.l.b16 %v2552
      %v2585 = vunpack.c.l.b16 %v2553
      %v2586 = vunpack.c.l.b16 %v2554
      %v2587 = vunpack.c.l.b16 %v2555
      %v2588 = vunpack.c.l.b16 %v2556
      %v2589 = vunpack.c.l.b16 %v2557
      %v2590 = vunpack.c.l.b16 %v2558
      %v2591 = vunpack.c.l.b16 %v2559
      %v2592 = vunpack.c.l.b16 %v2560
      %v2593 = vunpack.c.l.b16 %v2561
      %v2594 = vunpack.c.l.b16 %v2562
      %v2595 = vunpack.c.l.b16 %v2563
      %v2596 = vunpack.c.l.b16 %v2564
      %v2597 = vunpack.c.l.b16 %v2565
      %v2598 = vunpack.c.l.b16 %v2566
      %v2599 = vpack.c.b16 %v2584, %v2583
      %v2600 = vpack.c.b16 %v2586, %v2585
      %v2601 = vpack.c.b16 %v2588, %v2587
      %v2602 = vpack.c.b16 %v2590, %v2589
      %v2603 = vpack.c.b16 %v2592, %v2591
      %v2604 = vpack.c.b16 %v2594, %v2593
      %v2605 = vpack.c.b16 %v2596, %v2595
      %v2606 = vpack.c.b16 %v2598, %v2597
      %2615 = vmatprep.subr.bf16.mxu0 0
      %2616 = vmatpush1.bf16.msra.mxu0 %v2599
      %2617 = vmatprep.subr.bf16.mxu0 0
      %2618 = vmatpush1.bf16.msra.mxu0 %v2600
      %2619 = vmatprep.subr.bf16.mxu0 0
      %2620 = vmatpush1.bf16.msra.mxu0 %v2601
      %2621 = vmatprep.subr.bf16.mxu0 0
      %2622 = vmatpush1.bf16.msra.mxu0 %v2602
      %2623 = vmatprep.subr.bf16.mxu0 0
      %2624 = vmatpush1.bf16.msra.mxu0 %v2603
      %2625 = vmatprep.subr.bf16.mxu0 0
      %2626 = vmatpush1.bf16.msra.mxu0 %v2604
      %2627 = vmatprep.subr.bf16.mxu0 0
      %2628 = vmatpush1.bf16.msra.mxu0 %v2605
      %2629 = vmatprep.subr.bf16.mxu0 0
      %2630 = vmatpush1.bf16.msra.mxu0 %v2606
      %2631 = vmatprep.subr.bf16.mxu0 0
      %2632 = vmatpush1.bf16.msra.mxu0 0
      %2633 = vmatprep.subr.bf16.mxu0 0
      %2634 = vmatpush1.bf16.msra.mxu0 0
      %2635 = vmatprep.subr.bf16.mxu0 0
      %2636 = vmatpush1.bf16.msra.mxu0 0
      %2637 = vmatprep.subr.bf16.mxu0 0
      %2638 = vmatpush1.bf16.msra.mxu0 0
      %2639 = vmatprep.subr.bf16.mxu0 0
      %2640 = vmatpush1.bf16.msra.mxu0 0
      %2641 = vmatprep.subr.bf16.mxu0 0
      %2642 = vmatpush1.bf16.msra.mxu0 0
      %2643 = vmatprep.subr.bf16.mxu0 0
      %2644 = vmatpush1.bf16.msra.mxu0 0
      %2645 = vmatprep.subr.bf16.mxu0 0
      %2646 = vmatpush1.bf16.msra.mxu0 0
      %2647 = vmatprep.mubr.bf16.mxu0 0
      %2648 = vmatmul.mubr.bf16.gmra.mrb[0].mxu0 %v2542
      %v2649 = vpop.f32.mrb[0].mxu0
      %v2650 = vadd.f32 0.0, %v2649
      %v2651 = vpop.f32.mrb[0].mxu0
      %v2652 = vpop.f32.mrb[0].mxu0
      %v2653 = vadd.f32 0.0, %v2652
      %v2654 = vpop.f32.mrb[0].mxu0
      %2655 = vmatprep.mubr.bf16.mxu0 0
      %2656 = vmatmul.mubr.bf16.gmra.mrb[0].mxu0 %v2543
      %v2657 = vpop.f32.mrb[0].mxu0
      %v2658 = vadd.f32 0.0, %v2657
      %v2659 = vpop.f32.mrb[0].mxu0
      %v2660 = vpop.f32.mrb[0].mxu0
      %v2661 = vadd.f32 0.0, %v2660
      %v2662 = vpop.f32.mrb[0].mxu0
      %2663 = vmatprep.mubr.bf16.mxu0 0
      %2664 = vmatmul.mubr.bf16.gmra.mrb[0].mxu0 %v2544
      %v2665 = vpop.f32.mrb[0].mxu0
      %v2666 = vadd.f32 0.0, %v2665
      %v2667 = vpop.f32.mrb[0].mxu0
      %v2668 = vpop.f32.mrb[0].mxu0
      %v2669 = vadd.f32 0.0, %v2668
      %v2670 = vpop.f32.mrb[0].mxu0
      %2671 = vmatprep.mubr.bf16.mxu0 0
      %2672 = vmatmul.mubr.bf16.gmra.mrb[0].mxu0 %v2545
      %v2673 = vpop.f32.mrb[0].mxu0
      %v2674 = vadd.f32 0.0, %v2673
      %v2675 = vpop.f32.mrb[0].mxu0
      %v2676 = vpop.f32.mrb[0].mxu0
      %v2677 = vadd.f32 0.0, %v2676
      %v2678 = vpop.f32.mrb[0].mxu0
      %2679 = vmatprep.mubr.bf16.mxu0 0
      %2680 = vmatmul.mubr.bf16.gmra.mrb[0].mxu0 %v2546
      %v2681 = vpop.f32.mrb[0].mxu0
      %v2682 = vadd.f32 0.0, %v2681
      %v2683 = vpop.f32.mrb[0].mxu0
      %v2684 = vpop.f32.mrb[0].mxu0
      %v2685 = vadd.f32 0.0, %v2684
      %v2686 = vpop.f32.mrb[0].mxu0
      %2687 = vmatprep.mubr.bf16.mxu0 0
      %2688 = vmatmul.mubr.bf16.gmra.mrb[0].mxu0 %v2547
      %v2689 = vpop.f32.mrb[0].mxu0
      %v2690 = vadd.f32 0.0, %v2689
      %v2691 = vpop.f32.mrb[0].mxu0
      %v2692 = vpop.f32.mrb[0].mxu0
      %v2693 = vadd.f32 0.0, %v2692
      %v2694 = vpop.f32.mrb[0].mxu0
      %2695 = vmatprep.mubr.bf16.mxu0 0
      %2696 = vmatmul.mubr.bf16.gmra.mrb[0].mxu0 %v2548
      %v2697 = vpop.f32.mrb[0].mxu0
      %v2698 = vadd.f32 0.0, %v2697
      %v2699 = vpop.f32.mrb[0].mxu0
      %v2700 = vpop.f32.mrb[0].mxu0
      %v2701 = vadd.f32 0.0, %v2700
      %v2702 = vpop.f32.mrb[0].mxu0
      %2703 = vmatprep.mubr.bf16.mxu0 0
      %2704 = vmatmul.mubr.bf16.gmra.mrb[0].mxu0 %v2549
      %v2705 = vpop.f32.mrb[0].mxu0
      %v2706 = vadd.f32 0.0, %v2705
      %v2707 = vpop.f32.mrb[0].mxu0
      %v2708 = vpop.f32.mrb[0].mxu0
      %v2709 = vadd.f32 0.0, %v2708
      %v2710 = vpop.f32.mrb[0].mxu0
      %2711 = vdwg.mxu0
      %v2712 = vadd.f32 %v2510, %v2650
      %v2713 = vadd.f32 %v2511, %v2653
      %v2714 = vadd.f32 %v2512, %v2658
      %v2715 = vadd.f32 %v2513, %v2661
      %v2716 = vadd.f32 %v2514, %v2666
      %v2717 = vadd.f32 %v2515, %v2669
      %v2718 = vadd.f32 %v2516, %v2674
      %v2719 = vadd.f32 %v2517, %v2677
      %v2720 = vadd.f32 %v2518, %v2682
      %v2721 = vadd.f32 %v2519, %v2685
      %v2722 = vadd.f32 %v2520, %v2690
      %v2723 = vadd.f32 %v2521, %v2693
      %v2724 = vadd.f32 %v2522, %v2698
      %v2725 = vadd.f32 %v2523, %v2701
      %v2726 = vadd.f32 %v2524, %v2706
      %v2727 = vadd.f32 %v2525, %v2709
      %v2728 = vld [vmem:[%s2323 + $0x2] sm:$0xff]
      %v2729 = vld [vmem:[%s2323 + $0xa] sm:$0xff]
      %v2730 = vld [vmem:[%s2323 + $0x1a] sm:$0xff]
      %v2731 = vld [vmem:[%s2323 + $0x22] sm:$0xff]
      %v2732 = vld [vmem:[%s2323 + $0x32] sm:$0xff]
      %v2733 = vld [vmem:[%s2323 + $0x3a] sm:$0xff]
      %v2734 = vld [vmem:[%s2323 + $0x4a] sm:$0xff]
      %v2735 = vld [vmem:[%s2323 + $0x52] sm:$0xff]
      %v2736 = vld [vmem:[%s2323 + $0x62] sm:$0xff]
      %v2737 = vld [vmem:[%s2323 + $0x6a] sm:$0xff]
      %v2738 = vld [vmem:[%s2323 + $0x7a] sm:$0xff]
      %v2739 = vld [vmem:[%s2323 + $0x82] sm:$0xff]
      %v2740 = vld [vmem:[%s2323 + $0x92] sm:$0xff]
      %v2741 = vld [vmem:[%s2323 + $0x9a] sm:$0xff]
      %v2742 = vld [vmem:[%s2323 + $0xaa] sm:$0xff]
      %v2743 = vld [vmem:[%s2323 + $0xb2] sm:$0xff]
      %v2744 = vpack.c.bf16 %v2729, %v2728
      %v2745 = vpack.c.bf16 %v2731, %v2730
      %v2746 = vpack.c.bf16 %v2733, %v2732
      %v2747 = vpack.c.bf16 %v2735, %v2734
      %v2748 = vpack.c.bf16 %v2737, %v2736
      %v2749 = vpack.c.bf16 %v2739, %v2738
      %v2750 = vpack.c.bf16 %v2741, %v2740
      %v2751 = vpack.c.bf16 %v2743, %v2742
      %s2752 = scalar_lea.vmem %s5, 512
      %v2753 = vld [vmem:[%s2752] sm:$0xf]
      %v2754 = vld [vmem:[%s2752 + $0x4] sm:$0xf]
      %v2755 = vld [vmem:[%s2752 + $0x8] sm:$0xf]
      %v2756 = vld [vmem:[%s2752 + $0xc] sm:$0xf]
      %v2757 = vld [vmem:[%s2752 + $0x10] sm:$0xf]
      %v2758 = vld [vmem:[%s2752 + $0x14] sm:$0xf]
      %v2759 = vld [vmem:[%s2752 + $0x18] sm:$0xf]
      %v2760 = vld [vmem:[%s2752 + $0x1c] sm:$0xf]
      %v2761 = vld [vmem:[%s2752 + $0x20] sm:$0xf]
      %v2762 = vld [vmem:[%s2752 + $0x24] sm:$0xf]
      %v2763 = vld [vmem:[%s2752 + $0x28] sm:$0xf]
      %v2764 = vld [vmem:[%s2752 + $0x2c] sm:$0xf]
      %v2765 = vld [vmem:[%s2752 + $0x30] sm:$0xf]
      %v2766 = vld [vmem:[%s2752 + $0x34] sm:$0xf]
      %v2767 = vld [vmem:[%s2752 + $0x38] sm:$0xf]
      %v2768 = vld [vmem:[%s2752 + $0x3c] sm:$0xf]
      %v2785 = vunpack.c.l.b16 %v2753
      %v2786 = vunpack.c.l.b16 %v2754
      %v2787 = vunpack.c.l.b16 %v2755
      %v2788 = vunpack.c.l.b16 %v2756
      %v2789 = vunpack.c.l.b16 %v2757
      %v2790 = vunpack.c.l.b16 %v2758
      %v2791 = vunpack.c.l.b16 %v2759
      %v2792 = vunpack.c.l.b16 %v2760
      %v2793 = vunpack.c.l.b16 %v2761
      %v2794 = vunpack.c.l.b16 %v2762
      %v2795 = vunpack.c.l.b16 %v2763
      %v2796 = vunpack.c.l.b16 %v2764
      %v2797 = vunpack.c.l.b16 %v2765
      %v2798 = vunpack.c.l.b16 %v2766
      %v2799 = vunpack.c.l.b16 %v2767
      %v2800 = vunpack.c.l.b16 %v2768
      %v2801 = vpack.c.b16 %v2786, %v2785
      %v2802 = vpack.c.b16 %v2788, %v2787
      %v2803 = vpack.c.b16 %v2790, %v2789
      %v2804 = vpack.c.b16 %v2792, %v2791
      %v2805 = vpack.c.b16 %v2794, %v2793
      %v2806 = vpack.c.b16 %v2796, %v2795
      %v2807 = vpack.c.b16 %v2798, %v2797
      %v2808 = vpack.c.b16 %v2800, %v2799
      %2817 = vmatprep.subr.bf16.mxu0 0
      %2818 = vmatpush1.bf16.msra.mxu0 %v2801
      %2819 = vmatprep.subr.bf16.mxu0 0
      %2820 = vmatpush1.bf16.msra.mxu0 %v2802
      %2821 = vmatprep.subr.bf16.mxu0 0
      %2822 = vmatpush1.bf16.msra.mxu0 %v2803
      %2823 = vmatprep.subr.bf16.mxu0 0
      %2824 = vmatpush1.bf16.msra.mxu0 %v2804
      %2825 = vmatprep.subr.bf16.mxu0 0
      %2826 = vmatpush1.bf16.msra.mxu0 %v2805
      %2827 = vmatprep.subr.bf16.mxu0 0
      %2828 = vmatpush1.bf16.msra.mxu0 %v2806
      %2829 = vmatprep.subr.bf16.mxu0 0
      %2830 = vmatpush1.bf16.msra.mxu0 %v2807
      %2831 = vmatprep.subr.bf16.mxu0 0
      %2832 = vmatpush1.bf16.msra.mxu0 %v2808
      %2833 = vmatprep.subr.bf16.mxu0 0
      %2834 = vmatpush1.bf16.msra.mxu0 0
      %2835 = vmatprep.subr.bf16.mxu0 0
      %2836 = vmatpush1.bf16.msra.mxu0 0
      %2837 = vmatprep.subr.bf16.mxu0 0
      %2838 = vmatpush1.bf16.msra.mxu0 0
      %2839 = vmatprep.subr.bf16.mxu0 0
      %2840 = vmatpush1.bf16.msra.mxu0 0
      %2841 = vmatprep.subr.bf16.mxu0 0
      %2842 = vmatpush1.bf16.msra.mxu0 0
      %2843 = vmatprep.subr.bf16.mxu0 0
      %2844 = vmatpush1.bf16.msra.mxu0 0
      %2845 = vmatprep.subr.bf16.mxu0 0
      %2846 = vmatpush1.bf16.msra.mxu0 0
      %2847 = vmatprep.subr.bf16.mxu0 0
      %2848 = vmatpush1.bf16.msra.mxu0 0
      %2849 = vmatprep.mubr.bf16.mxu0 0
      %2850 = vmatmul.mubr.bf16.gmra.mrb[0].mxu0 %v2744
      %v2851 = vpop.f32.mrb[0].mxu0
      %v2852 = vadd.f32 0.0, %v2851
      %v2853 = vpop.f32.mrb[0].mxu0
      %v2854 = vpop.f32.mrb[0].mxu0
      %v2855 = vadd.f32 0.0, %v2854
      %v2856 = vpop.f32.mrb[0].mxu0
      %2857 = vmatprep.mubr.bf16.mxu0 0
      %2858 = vmatmul.mubr.bf16.gmra.mrb[0].mxu0 %v2745
      %v2859 = vpop.f32.mrb[0].mxu0
      %v2860 = vadd.f32 0.0, %v2859
      %v2861 = vpop.f32.mrb[0].mxu0
      %v2862 = vpop.f32.mrb[0].mxu0
      %v2863 = vadd.f32 0.0, %v2862
      %v2864 = vpop.f32.mrb[0].mxu0
      %2865 = vmatprep.mubr.bf16.mxu0 0
      %2866 = vmatmul.mubr.bf16.gmra.mrb[0].mxu0 %v2746
      %v2867 = vpop.f32.mrb[0].mxu0
      %v2868 = vadd.f32 0.0, %v2867
      %v2869 = vpop.f32.mrb[0].mxu0
      %v2870 = vpop.f32.mrb[0].mxu0
      %v2871 = vadd.f32 0.0, %v2870
      %v2872 = vpop.f32.mrb[0].mxu0
      %2873 = vmatprep.mubr.bf16.mxu0 0
      %2874 = vmatmul.mubr.bf16.gmra.mrb[0].mxu0 %v2747
      %v2875 = vpop.f32.mrb[0].mxu0
      %v2876 = vadd.f32 0.0, %v2875
      %v2877 = vpop.f32.mrb[0].mxu0
      %v2878 = vpop.f32.mrb[0].mxu0
      %v2879 = vadd.f32 0.0, %v2878
      %v2880 = vpop.f32.mrb[0].mxu0
      %2881 = vmatprep.mubr.bf16.mxu0 0
      %2882 = vmatmul.mubr.bf16.gmra.mrb[0].mxu0 %v2748
      %v2883 = vpop.f32.mrb[0].mxu0
      %v2884 = vadd.f32 0.0, %v2883
      %v2885 = vpop.f32.mrb[0].mxu0
      %v2886 = vpop.f32.mrb[0].mxu0
      %v2887 = vadd.f32 0.0, %v2886
      %v2888 = vpop.f32.mrb[0].mxu0
      %2889 = vmatprep.mubr.bf16.mxu0 0
      %2890 = vmatmul.mubr.bf16.gmra.mrb[0].mxu0 %v2749
      %v2891 = vpop.f32.mrb[0].mxu0
      %v2892 = vadd.f32 0.0, %v2891
      %v2893 = vpop.f32.mrb[0].mxu0
      %v2894 = vpop.f32.mrb[0].mxu0
      %v2895 = vadd.f32 0.0, %v2894
      %v2896 = vpop.f32.mrb[0].mxu0
      %2897 = vmatprep.mubr.bf16.mxu0 0
      %2898 = vmatmul.mubr.bf16.gmra.mrb[0].mxu0 %v2750
      %v2899 = vpop.f32.mrb[0].mxu0
      %v2900 = vadd.f32 0.0, %v2899
      %v2901 = vpop.f32.mrb[0].mxu0
      %v2902 = vpop.f32.mrb[0].mxu0
      %v2903 = vadd.f32 0.0, %v2902
      %v2904 = vpop.f32.mrb[0].mxu0
      %2905 = vmatprep.mubr.bf16.mxu0 0
      %2906 = vmatmul.mubr.bf16.gmra.mrb[0].mxu0 %v2751
      %v2907 = vpop.f32.mrb[0].mxu0
      %v2908 = vadd.f32 0.0, %v2907
      %v2909 = vpop.f32.mrb[0].mxu0
      %v2910 = vpop.f32.mrb[0].mxu0
      %v2911 = vadd.f32 0.0, %v2910
      %v2912 = vpop.f32.mrb[0].mxu0
      %2913 = vdwg.mxu0
      %v2914 = vadd.f32 %v2712, %v2852
      %v2915 = vadd.f32 %v2713, %v2855
      %v2916 = vadd.f32 %v2714, %v2860
      %v2917 = vadd.f32 %v2715, %v2863
      %v2918 = vadd.f32 %v2716, %v2868
      %v2919 = vadd.f32 %v2717, %v2871
      %v2920 = vadd.f32 %v2718, %v2876
      %v2921 = vadd.f32 %v2719, %v2879
      %v2922 = vadd.f32 %v2720, %v2884
      %v2923 = vadd.f32 %v2721, %v2887
      %v2924 = vadd.f32 %v2722, %v2892
      %v2925 = vadd.f32 %v2723, %v2895
      %v2926 = vadd.f32 %v2724, %v2900
      %v2927 = vadd.f32 %v2725, %v2903
      %v2928 = vadd.f32 %v2726, %v2908
      %v2929 = vadd.f32 %v2727, %v2911
      %v2930 = vld [vmem:[%s6] sm:$0x1]
      %v2932 = vlaneseq
      %v2933 = vshrl.u32 %v2932, 7
      %v2934 = vsub.s32 0, %v2933
      %v2935 = vrot.slane %v2930, %v2934
      %v2937 = vadd.f32 %v2914, %v2935
      %v2938 = vadd.f32 %v2915, %v2935
      %v2939 = vadd.f32 %v2916, %v2935
      %v2940 = vadd.f32 %v2917, %v2935
      %v2941 = vadd.f32 %v2918, %v2935
      %v2942 = vadd.f32 %v2919, %v2935
      %v2943 = vadd.f32 %v2920, %v2935
      %v2944 = vadd.f32 %v2921, %v2935
      %v2945 = vadd.f32 %v2922, %v2935
      %v2946 = vadd.f32 %v2923, %v2935
      %v2947 = vadd.f32 %v2924, %v2935
      %v2948 = vadd.f32 %v2925, %v2935
      %v2949 = vadd.f32 %v2926, %v2935
      %v2950 = vadd.f32 %v2927, %v2935
      %v2951 = vadd.f32 %v2928, %v2935
      %v2952 = vadd.f32 %v2929, %v2935
      %v2953 = vmax.f32 %v2937, 0.0
      %v2954 = vmax.f32 %v2938, 0.0
      %v2955 = vmax.f32 %v2939, 0.0
      %v2956 = vmax.f32 %v2940, 0.0
      %v2957 = vmax.f32 %v2941, 0.0
      %v2958 = vmax.f32 %v2942, 0.0
      %v2959 = vmax.f32 %v2943, 0.0
      %v2960 = vmax.f32 %v2944, 0.0
      %v2961 = vmax.f32 %v2945, 0.0
      %v2962 = vmax.f32 %v2946, 0.0
      %v2963 = vmax.f32 %v2947, 0.0
      %v2964 = vmax.f32 %v2948, 0.0
      %v2965 = vmax.f32 %v2949, 0.0
      %v2966 = vmax.f32 %v2950, 0.0
      %v2967 = vmax.f32 %v2951, 0.0
      %v2968 = vmax.f32 %v2952, 0.0
      %v2969 = vpack.c.bf16 %v2954, %v2953
      %v2970 = vpack.c.bf16 %v2956, %v2955
      %v2971 = vpack.c.bf16 %v2958, %v2957
      %v2972 = vpack.c.bf16 %v2960, %v2959
      %v2973 = vpack.c.bf16 %v2962, %v2961
      %v2974 = vpack.c.bf16 %v2964, %v2963
      %v2975 = vpack.c.bf16 %v2966, %v2965
      %v2976 = vpack.c.bf16 %v2968, %v2967
      %v2977 = vld [vmem:[%s7] sm:$0xf]
      %v2978 = vld [vmem:[%s7 + $0x4] sm:$0xf]
      %v2979 = vld [vmem:[%s7 + $0x8] sm:$0xf]
      %v2980 = vld [vmem:[%s7 + $0xc] sm:$0xf]
      %v2981 = vld [vmem:[%s7 + $0x10] sm:$0xf]
      %v2982 = vld [vmem:[%s7 + $0x14] sm:$0xf]
      %v2983 = vld [vmem:[%s7 + $0x18] sm:$0xf]
      %v2984 = vld [vmem:[%s7 + $0x1c] sm:$0xf]
      %v2985 = vld [vmem:[%s7 + $0x20] sm:$0xf]
      %v2986 = vld [vmem:[%s7 + $0x24] sm:$0xf]
      %v2987 = vld [vmem:[%s7 + $0x28] sm:$0xf]
      %v2988 = vld [vmem:[%s7 + $0x2c] sm:$0xf]
      %v2989 = vld [vmem:[%s7 + $0x30] sm:$0xf]
      %v2990 = vld [vmem:[%s7 + $0x34] sm:$0xf]
      %v2991 = vld [vmem:[%s7 + $0x38] sm:$0xf]
      %v2992 = vld [vmem:[%s7 + $0x3c] sm:$0xf]
      %v2993 = vld [vmem:[%s8] sm:$0x1]
      %v2995 = vlaneseq
      %v2996 = vshrl.u32 %v2995, 7
      %v2997 = vsub.s32 0, %v2996
      %v2998 = vrot.slane %v2993, %v2997
      %v3016 = vunpack.c.l.b16 %v2977
      %v3017 = vunpack.c.l.b16 %v2978
      %v3018 = vunpack.c.l.b16 %v2979
      %v3019 = vunpack.c.l.b16 %v2980
      %v3020 = vunpack.c.l.b16 %v2981
      %v3021 = vunpack.c.l.b16 %v2982
      %v3022 = vunpack.c.l.b16 %v2983
      %v3023 = vunpack.c.l.b16 %v2984
      %v3024 = vunpack.c.l.b16 %v2985
      %v3025 = vunpack.c.l.b16 %v2986
      %v3026 = vunpack.c.l.b16 %v2987
      %v3027 = vunpack.c.l.b16 %v2988
      %v3028 = vunpack.c.l.b16 %v2989
      %v3029 = vunpack.c.l.b16 %v2990
      %v3030 = vunpack.c.l.b16 %v2991
      %v3031 = vunpack.c.l.b16 %v2992
      %v3032 = vpack.c.b16 %v3017, %v3016
      %v3033 = vpack.c.b16 %v3019, %v3018
      %v3034 = vpack.c.b16 %v3021, %v3020
      %v3035 = vpack.c.b16 %v3023, %v3022
      %v3036 = vpack.c.b16 %v3025, %v3024
      %v3037 = vpack.c.b16 %v3027, %v3026
      %v3038 = vpack.c.b16 %v3029, %v3028
      %v3039 = vpack.c.b16 %v3031, %v3030
      %3048 = vmatprep.subr.bf16.mxu0 0
      %3049 = vmatpush1.bf16.msra.mxu0 %v3032
      %3050 = vmatprep.subr.bf16.mxu0 0
      %3051 = vmatpush1.bf16.msra.mxu0 %v3033
      %3052 = vmatprep.subr.bf16.mxu0 0
      %3053 = vmatpush1.bf16.msra.mxu0 %v3034
      %3054 = vmatprep.subr.bf16.mxu0 0
      %3055 = vmatpush1.bf16.msra.mxu0 %v3035
      %3056 = vmatprep.subr.bf16.mxu0 0
      %3057 = vmatpush1.bf16.msra.mxu0 %v3036
      %3058 = vmatprep.subr.bf16.mxu0 0
      %3059 = vmatpush1.bf16.msra.mxu0 %v3037
      %3060 = vmatprep.subr.bf16.mxu0 0
      %3061 = vmatpush1.bf16.msra.mxu0 %v3038
      %3062 = vmatprep.subr.bf16.mxu0 0
      %3063 = vmatpush1.bf16.msra.mxu0 %v3039
      %3064 = vmatprep.subr.bf16.mxu0 0
      %3065 = vmatpush1.bf16.msra.mxu0 0
      %3066 = vmatprep.subr.bf16.mxu0 0
      %3067 = vmatpush1.bf16.msra.mxu0 0
      %3068 = vmatprep.subr.bf16.mxu0 0
      %3069 = vmatpush1.bf16.msra.mxu0 0
      %3070 = vmatprep.subr.bf16.mxu0 0
      %3071 = vmatpush1.bf16.msra.mxu0 0
      %3072 = vmatprep.subr.bf16.mxu0 0
      %3073 = vmatpush1.bf16.msra.mxu0 0
      %3074 = vmatprep.subr.bf16.mxu0 0
      %3075 = vmatpush1.bf16.msra.mxu0 0
      %3076 = vmatprep.subr.bf16.mxu0 0
      %3077 = vmatpush1.bf16.msra.mxu0 0
      %3078 = vmatprep.subr.bf16.mxu0 0
      %3079 = vmatpush1.bf16.msra.mxu0 0
      %3080 = vmatprep.mubr.bf16.mxu0 0
      %3081 = vmatmul.mubr.bf16.gmra.mrb[0].mxu0 %v2969
      %v3082 = vpop.f32.mrb[0].mxu0
      %v3083 = vadd.f32 %v2998, %v3082
      %v3084 = vpop.f32.mrb[0].mxu0
      %v3085 = vpop.f32.mrb[0].mxu0
      %v3086 = vadd.f32 %v2998, %v3085
      %v3087 = vpop.f32.mrb[0].mxu0
      %3088 = vmatprep.mubr.bf16.mxu0 0
      %3089 = vmatmul.mubr.bf16.gmra.mrb[0].mxu0 %v2970
      %v3090 = vpop.f32.mrb[0].mxu0
      %v3091 = vadd.f32 %v2998, %v3090
      %v3092 = vpop.f32.mrb[0].mxu0
      %v3093 = vpop.f32.mrb[0].mxu0
      %v3094 = vadd.f32 %v2998, %v3093
      %v3095 = vpop.f32.mrb[0].mxu0
      %3096 = vmatprep.mubr.bf16.mxu0 0
      %3097 = vmatmul.mubr.bf16.gmra.mrb[0].mxu0 %v2971
      %v3098 = vpop.f32.mrb[0].mxu0
      %v3099 = vadd.f32 %v2998, %v3098
      %v3100 = vpop.f32.mrb[0].mxu0
      %v3101 = vpop.f32.mrb[0].mxu0
      %v3102 = vadd.f32 %v2998, %v3101
      %v3103 = vpop.f32.mrb[0].mxu0
      %3104 = vmatprep.mubr.bf16.mxu0 0
      %3105 = vmatmul.mubr.bf16.gmra.mrb[0].mxu0 %v2972
      %v3106 = vpop.f32.mrb[0].mxu0
      %v3107 = vadd.f32 %v2998, %v3106
      %v3108 = vpop.f32.mrb[0].mxu0
      %v3109 = vpop.f32.mrb[0].mxu0
      %v3110 = vadd.f32 %v2998, %v3109
      %v3111 = vpop.f32.mrb[0].mxu0
      %3112 = vmatprep.mubr.bf16.mxu0 0
      %3113 = vmatmul.mubr.bf16.gmra.mrb[0].mxu0 %v2973
      %v3114 = vpop.f32.mrb[0].mxu0
      %v3115 = vadd.f32 %v2998, %v3114
      %v3116 = vpop.f32.mrb[0].mxu0
      %v3117 = vpop.f32.mrb[0].mxu0
      %v3118 = vadd.f32 %v2998, %v3117
      %v3119 = vpop.f32.mrb[0].mxu0
      %3120 = vmatprep.mubr.bf16.mxu0 0
      %3121 = vmatmul.mubr.bf16.gmra.mrb[0].mxu0 %v2974
      %v3122 = vpop.f32.mrb[0].mxu0
      %v3123 = vadd.f32 %v2998, %v3122
      %v3124 = vpop.f32.mrb[0].mxu0
      %v3125 = vpop.f32.mrb[0].mxu0
      %v3126 = vadd.f32 %v2998, %v3125
      %v3127 = vpop.f32.mrb[0].mxu0
      %3128 = vmatprep.mubr.bf16.mxu0 0
      %3129 = vmatmul.mubr.bf16.gmra.mrb[0].mxu0 %v2975
      %v3130 = vpop.f32.mrb[0].mxu0
      %v3131 = vadd.f32 %v2998, %v3130
      %v3132 = vpop.f32.mrb[0].mxu0
      %v3133 = vpop.f32.mrb[0].mxu0
      %v3134 = vadd.f32 %v2998, %v3133
      %v3135 = vpop.f32.mrb[0].mxu0
      %3136 = vmatprep.mubr.bf16.mxu0 0
      %3137 = vmatmul.mubr.bf16.gmra.mrb[0].mxu0 %v2976
      %v3138 = vpop.f32.mrb[0].mxu0
      %v3139 = vadd.f32 %v2998, %v3138
      %v3140 = vpop.f32.mrb[0].mxu0
      %v3141 = vpop.f32.mrb[0].mxu0
      %v3142 = vadd.f32 %v2998, %v3141
      %v3143 = vpop.f32.mrb[0].mxu0
      %3144 = vdwg.mxu0
      %v3145 = vld [vmem:[%s553] sm:$0xff]
      %v3146 = vld [vmem:[%s553 + $0x8] sm:$0xff]
      %v3147 = vld [vmem:[%s553 + $0x10] sm:$0xff]
      %v3148 = vld [vmem:[%s553 + $0x18] sm:$0xff]
      %v3149 = vld [vmem:[%s553 + $0x20] sm:$0xff]
      %v3150 = vld [vmem:[%s553 + $0x28] sm:$0xff]
      %v3151 = vld [vmem:[%s553 + $0x30] sm:$0xff]
      %v3152 = vld [vmem:[%s553 + $0x38] sm:$0xff]
      %v3153 = vld [vmem:[%s553 + $0x40] sm:$0xff]
      %v3154 = vld [vmem:[%s553 + $0x48] sm:$0xff]
      %v3155 = vld [vmem:[%s553 + $0x50] sm:$0xff]
      %v3156 = vld [vmem:[%s553 + $0x58] sm:$0xff]
      %v3157 = vld [vmem:[%s553 + $0x60] sm:$0xff]
      %v3158 = vld [vmem:[%s553 + $0x68] sm:$0xff]
      %v3159 = vld [vmem:[%s553 + $0x70] sm:$0xff]
      %v3160 = vld [vmem:[%s553 + $0x78] sm:$0xff]
      %v3161 = vadd.f32 %v3145, %v3083
      %v3162 = vadd.f32 %v3146, %v3086
      %v3163 = vadd.f32 %v3147, %v3091
      %v3164 = vadd.f32 %v3148, %v3094
      %v3165 = vadd.f32 %v3149, %v3099
      %v3166 = vadd.f32 %v3150, %v3102
      %v3167 = vadd.f32 %v3151, %v3107
      %v3168 = vadd.f32 %v3152, %v3110
      %v3169 = vadd.f32 %v3153, %v3115
      %v3170 = vadd.f32 %v3154, %v3118
      %v3171 = vadd.f32 %v3155, %v3123
      %v3172 = vadd.f32 %v3156, %v3126
      %v3173 = vadd.f32 %v3157, %v3131
      %v3174 = vadd.f32 %v3158, %v3134
      %v3175 = vadd.f32 %v3159, %v3139
      %v3176 = vadd.f32 %v3160, %v3142
      %v3177 = vmax.f32 %v3161, 0.0
      %v3178 = vmax.f32 %v3162, 0.0
      %v3179 = vmax.f32 %v3163, 0.0
      %v3180 = vmax.f32 %v3164, 0.0
      %v3181 = vmax.f32 %v3165, 0.0
      %v3182 = vmax.f32 %v3166, 0.0
      %v3183 = vmax.f32 %v3167, 0.0
      %v3184 = vmax.f32 %v3168, 0.0
      %v3185 = vmax.f32 %v3169, 0.0
      %v3186 = vmax.f32 %v3170, 0.0
      %v3187 = vmax.f32 %v3171, 0.0
      %v3188 = vmax.f32 %v3172, 0.0
      %v3189 = vmax.f32 %v3173, 0.0
      %v3190 = vmax.f32 %v3174, 0.0
      %v3191 = vmax.f32 %v3175, 0.0
      %v3192 = vmax.f32 %v3176, 0.0
      %3193 = vst [vmem:[%s553] sm:$0xff] %v3177
      %3194 = vst [vmem:[%s553 + $0x8] sm:$0xff] %v3178
      %3195 = vst [vmem:[%s553 + $0x10] sm:$0xff] %v3179
      %3196 = vst [vmem:[%s553 + $0x18] sm:$0xff] %v3180
      %3197 = vst [vmem:[%s553 + $0x20] sm:$0xff] %v3181
      %3198 = vst [vmem:[%s553 + $0x28] sm:$0xff] %v3182
      %3199 = vst [vmem:[%s553 + $0x30] sm:$0xff] %v3183
      %3200 = vst [vmem:[%s553 + $0x38] sm:$0xff] %v3184
      %3201 = vst [vmem:[%s553 + $0x40] sm:$0xff] %v3185
      %3202 = vst [vmem:[%s553 + $0x48] sm:$0xff] %v3186
      %3203 = vst [vmem:[%s553 + $0x50] sm:$0xff] %v3187
      %3204 = vst [vmem:[%s553 + $0x58] sm:$0xff] %v3188
      %3205 = vst [vmem:[%s553 + $0x60] sm:$0xff] %v3189
      %3206 = vst [vmem:[%s553 + $0x68] sm:$0xff] %v3190
      %3207 = vst [vmem:[%s553 + $0x70] sm:$0xff] %v3191
      %3208 = vst [vmem:[%s553 + $0x78] sm:$0xff] %v3192
      %s3209 = smul.u32 8, %s27
      %p3210 = scmp.lt.s32.totalorder %s26, 1
      %s3211 = scalar_select %p3210, %s26, 1
      %p3212 = scmp.lt.s32.totalorder %s3209, 15
      %s3213 = scalar_select %p3212, %s3209, 15
      %s3214 = smul.addr %s3213, 2
      %s3215 = smul.addr %s3211, 32
      %s3216 = sadd.s32 %s3214, %s3215
      %s3217 = smul.addr %s3216, 8
      %s3218 = scalar_lea.vmem %s11, %s3217
      // Predicated region
      $region73: #{bottleneck_forward.1} parent=63 // pred_check
        %p3219 = pneg %p322
      $region74: #{bottleneck_forward.1} parent=63 // pred_check_branch
        %3221 = sbr.rel (%p3219) target = $region76
      $region75: #{bottleneck_forward.1} parent=63 // pred_region
        %s3222 = smul.u32 8, %s27
      $region76: #{bottleneck_forward.1} parent=63 // pred_fallthru
        _
    $region64: #{bottleneck_forward.1} parent=5 // pred_fallthru
      _
    %p3223 = scmp.le.s32.totalorder 2, %s17
    // Predicated region
    $region77: #{bottleneck_forward.1} parent=5 // pred_check
      %p3224 = pneg %p3223
    $region78: #{bottleneck_forward.1} parent=5 // pred_check_branch
      %3226 = sbr.rel (%p3224) target = $region80
    $region79: #{bottleneck_forward.1} parent=5 // pred_region
      %s3227 = ssub.s32 %s17, 2
      // Predicated region
      $region81: #{bottleneck_forward.1} parent=79 // pred_check
        %p3228 = pneg %p328
      $region82: #{bottleneck_forward.1} parent=79 // pred_check_branch
        %3230 = sbr.rel (%p3228) target = $region84
      $region83: #{bottleneck_forward.1} parent=79 // pred_region
        %s3231 = smul.u32 8, %s29
        %p3232 = scmp.lt.s32.totalorder %s28, 1
        %s3233 = scalar_select %p3232, %s28, 1
        %p3234 = scmp.lt.s32.totalorder %s3231, 15
        %s3235 = scalar_select %p3234, %s3231, 15
        %s3236 = smul.addr %s3235, 2
        %s3237 = smul.addr %s3233, 32
        %s3238 = sadd.s32 %s3236, %s3237
        %s3239 = smul.addr %s3238, 8
        %s3240 = scalar_lea.vmem %s11, %s3239
      $region84: #{bottleneck_forward.1} parent=79 // pred_fallthru
        _
    $region80: #{bottleneck_forward.1} parent=5 // pred_fallthru
      _
  $region6: #{bottleneck_forward.1} parent=0 // loop_footer
    %s21 = sadd.s32 1, %s17
  $region7: #{bottleneck_forward.1} parent=0 // loop_footer_branch
    %16 = sbr.rel target = $region3
  $region8: #{bottleneck_forward.1} parent=0 // loop_exit
    _

</llo_original>
